<compile_context>
chip_gen: v5e
topology: v5e:2x2
jax: 0.10.0
libtpu: 0.0.40
codegen_flags: <defaults>
</compile_context>

<pallas_src>
import functools
import math

import jax
import jax.numpy as jnp
from jax import lax
from jax.experimental import pallas as pl
from jax.experimental.pallas import tpu as pltpu


C_PAD = 128  # lane-dense padding of the class-logit output


def _lstm_cell(gates, c_prev, H):
    """One LSTM cell update from pre-activations (B, 4H); PyTorch gate order i,f,g,o.

    sigmoid runs on the full 128-lane gate vreg (one EUP op); tanh only on the
    32-lane g slice (quarter-width EUP) -- both off the VALU slots.
    """
    sg = jax.nn.sigmoid(gates)
    i = sg[:, 0 * H:1 * H]
    f = sg[:, 1 * H:2 * H]
    o = sg[:, 3 * H:4 * H]
    g = jnp.tanh(gates[:, 2 * H:3 * H])
    c = f * c_prev + i * g
    h = o * jnp.tanh(c)
    return h, c


# --------------- single fused kernel: embed + LN + biLSTM(x2) + fc head ------
def seq_classifier_fused(tokens_tm, params, *, T, B):
    """tokens_tm: (T*B, 1) int32, time-major rows (row = t*B + b).

    Returns (B, C_PAD) lane-dense logits (only the first num_class lanes real).
    """
    TB = T * B
    V, E = params["embeddings"].shape
    H = params["w_hh0"].shape[1]
    HID = params["b1"].shape[1]
    CP = params["w2p"].shape[1]
    w1_flat = params["w1"].reshape(2 * T, H, HID)   # (d*T + t, H, HID), free reshape

    def kernel(tok_ref, emb_ref, lng_ref, lnb_ref,
               wih0_ref, whh0_ref, b0_ref,
               wihf1_ref, wihb1_ref, whh1_ref, b1l_ref,
               w1_ref, b1_ref, bng_ref, bnb_ref, bnm_ref, bnv_ref,
               w2_ref, b2_ref, o_ref):
        # ---- embedding gather via one-hot matmul (table lives in VMEM) ----
        tok = tok_ref[...]                                     # (T*B, 1) int32
        iota = lax.broadcasted_iota(jnp.int32, (TB, V), 1)
        onehot = (iota == tok).astype(jnp.float32)             # (T*B, V)
        x = jnp.dot(onehot, emb_ref[...], preferred_element_type=jnp.float32)
        # ---- LayerNorm over the embedding dim ----
        mean = jnp.mean(x, axis=-1, keepdims=True)
        var = jnp.mean((x - mean) ** 2, axis=-1, keepdims=True)
        x = (x - mean) * lax.rsqrt(var + 1e-5) * lng_ref[...] + lnb_ref[...]

        # ---- layer 0: hoisted input projection (one matmul per direction over
        #      all T*B rows), then interleaved bidirectional recurrence -------
        whh0 = [whh0_ref[0], whh0_ref[1]]
        gin0 = [jnp.dot(x, wih0_ref[d], preferred_element_type=jnp.float32)
                + b0_ref[d] for d in range(2)]                 # (T*B, 4H) each
        g0 = [[gin0[d][t * B:(t + 1) * B, :] for t in range(T)] for d in range(2)]
        h = [jnp.zeros((B, H), jnp.float32) for _ in range(2)]
        c = [jnp.zeros((B, H), jnp.float32) for _ in range(2)]
        hs0 = [[None] * T for _ in range(2)]
        for step in range(T):
            for d in range(2):
                t = step if d == 0 else T - 1 - step
                gates = g0[d][t] + jnp.dot(h[d], whh0[d],
                                           preferred_element_type=jnp.float32)
                h[d], c[d] = _lstm_cell(gates, c[d], H)
                hs0[d][t] = h[d]

        # ---- layer 1: hoisted per-step input projections; the direction
        #      concat is folded into the split W_ih halves (no concatenate) ---
        whh1 = [whh1_ref[0], whh1_ref[1]]
        g1 = [[jnp.dot(hs0[0][t], wihf1_ref[d], preferred_element_type=jnp.float32)
               + jnp.dot(hs0[1][t], wihb1_ref[d], preferred_element_type=jnp.float32)
               + b1l_ref[d]
               for t in range(T)] for d in range(2)]           # (B, 4H) each
        h = [jnp.zeros((B, H), jnp.float32) for _ in range(2)]
        c = [jnp.zeros((B, H), jnp.float32) for _ in range(2)]
        hs1 = [[None] * T for _ in range(2)]
        for step in range(T):
            for d in range(2):
                t = step if d == 0 else T - 1 - step
                gates = g1[d][t] + jnp.dot(h[d], whh1[d],
                                           preferred_element_type=jnp.float32)
                h[d], c[d] = _lstm_cell(gates, c[d], H)
                hs1[d][t] = h[d]

        # ---- fc head: Linear over the flattened (B, T*2H) activation,
        #      expressed as sum_{d,t} hs1[d][t] @ W1[d,t]  (W1 pre-permuted to
        #      torch's view(B,-1) order); two accumulators shorten the add chain
        accf = jnp.zeros((B, HID), jnp.float32)
        accb = jnp.zeros((B, HID), jnp.float32)
        for t in range(T):
            accf = accf + jnp.dot(hs1[0][t], w1_ref[0 * T + t],
                                  preferred_element_type=jnp.float32)
            accb = accb + jnp.dot(hs1[1][t], w1_ref[1 * T + t],
                                  preferred_element_type=jnp.float32)
        h1 = accf + accb + b1_ref[...]
        # BatchNorm1d (eval: running stats) + LeakyReLU(0.2); Dropout = identity
        hn = ((h1 - bnm_ref[...]) * lax.rsqrt(bnv_ref[...] + 1e-5)
              * bng_ref[...] + bnb_ref[...])
        a = jnp.where(hn > 0, hn, 0.2 * hn)
        # lane-dense (B, 128) store; wrapper slices back to num_class
        o_ref[...] = jnp.dot(a, w2_ref[...],
                             preferred_element_type=jnp.float32) + b2_ref[...]

    operands = (tokens_tm, params["embeddings"], params["ln_gamma"],
                params["ln_beta"], params["w_ih0"], params["w_hh0"],
                params["b0"], params["w_ihf1"], params["w_ihb1"],
                params["w_hh1"], params["b1l"], w1_flat, params["b1"],
                params["bn_gamma"], params["bn_beta"], params["bn_mean"],
                params["bn_var"], params["w2p"], params["b2p"])

    def _full(a):
        nd = a.ndim
        return pl.BlockSpec(a.shape, lambda i, _nd=nd: (0,) * _nd)

    return pl.pallas_call(
        kernel,
        out_shape=jax.ShapeDtypeStruct((B, CP), jnp.float32),
        grid=(1,),
        in_specs=[_full(a) for a in operands],
        out_specs=pl.BlockSpec((B, CP), lambda i: (0, 0)),
        compiler_params=pltpu.CompilerParams(
            dimension_semantics=("arbitrary",)),
    )(*operands)


# ------------------------------- parameters ----------------------------------
def init_params(key, vocab, emb_dim, hidden, num_class, seq_len):
    H = hidden
    keys = iter(jax.random.split(key, 32))

    def u(shape, scale):
        return jax.random.uniform(next(keys), shape, jnp.float32, -scale, scale)

    k = 1.0 / math.sqrt(H)
    p = {}
    p["embeddings"] = jax.random.normal(next(keys), (vocab, emb_dim), jnp.float32)
    p["ln_gamma"] = jnp.ones((1, emb_dim), jnp.float32)
    p["ln_beta"] = jnp.zeros((1, emb_dim), jnp.float32)
    # LSTM layer 0 (input = emb_dim), stacked over direction, stored transposed
    # so the kernel computes x @ W.
    p["w_ih0"] = u((2, emb_dim, 4 * H), k)
    p["w_hh0"] = u((2, H, 4 * H), k)
    p["b0"] = u((2, 1, 4 * H), k) + u((2, 1, 4 * H), k)            # b_ih + b_hh
    # LSTM layer 1 (input = 2H): W_ih split into forward-input / backward-input
    # halves so the kernel never materializes the direction concat.
    p["w_ihf1"] = u((2, H, 4 * H), k)
    p["w_ihb1"] = u((2, H, 4 * H), k)
    p["w_hh1"] = u((2, H, 4 * H), k)
    p["b1l"] = u((2, 1, 4 * H), k) + u((2, 1, 4 * H), k)
    # fc head.  w1 stored as (dir, t, H, hidden) with
    # w1[d, t, j, :] == W1_torch_flat[t*2H + d*H + j, :]  (torch view(B,-1) order).
    F = 2 * H * seq_len
    k1 = 1.0 / math.sqrt(F)
    p["w1"] = u((2, seq_len, H, hidden), k1)
    p["b1"] = u((1, hidden), k1)
    p["bn_gamma"] = jnp.ones((1, hidden), jnp.float32)
    p["bn_beta"] = jnp.zeros((1, hidden), jnp.float32)
    p["bn_mean"] = jnp.zeros((1, hidden), jnp.float32)
    p["bn_var"] = jnp.ones((1, hidden), jnp.float32)
    k2 = 1.0 / math.sqrt(hidden)
    w2 = u((hidden, num_class), k2)
    b2 = u((1, num_class), k2)
    # lane-dense padding of the classifier output (sliced back in the wrapper)
    p["w2p"] = jnp.zeros((hidden, C_PAD), jnp.float32).at[:, :num_class].set(w2)
    p["b2p"] = jnp.zeros((1, C_PAD), jnp.float32).at[:, :num_class].set(b2)
    return p


# -------------------------------- full forward --------------------------------
@functools.partial(jax.jit, static_argnames=("num_class",))
def seq_classifier_forward(params, tokens, *, num_class):
    B, T = tokens.shape
    # time-major flattened tokens (row = t*B + b): tiny int reshuffle, the only
    # wrapper-side data movement.
    tokens_tm = tokens.astype(jnp.int32).T.reshape(T * B, 1)
    logits_p = seq_classifier_fused(tokens_tm, params, T=T, B=B)  # (B, 128)
    return logits_p[:, :num_class]


# ------------------------------ pure-JAX reference ----------------------------
def reference_forward(params, tokens, *, num_class):
    hp = lax.Precision.HIGHEST
    B, T = tokens.shape
    H = params["w_hh0"].shape[1]

    x = params["embeddings"][tokens]                           # (B, T, E)
    mean = jnp.mean(x, axis=-1, keepdims=True)
    var = jnp.mean((x - mean) ** 2, axis=-1, keepdims=True)
    x = (x - mean) * lax.rsqrt(var + 1e-5) * params["ln_gamma"] + params["ln_beta"]
    x = x.transpose(1, 0, 2)                                   # (T, B, E)

    def run_dir(xseq, w_ih, w_hh, b, reverse):
        if reverse:
            xseq = xseq[::-1]

        def cell(carry, x_t):
            h, c = carry
            g = (jnp.dot(x_t, w_ih, precision=hp)
                 + jnp.dot(h, w_hh, precision=hp) + b)
            i = jax.nn.sigmoid(g[:, :H])
            f = jax.nn.sigmoid(g[:, H:2 * H])
            gg = jnp.tanh(g[:, 2 * H:3 * H])
            o = jax.nn.sigmoid(g[:, 3 * H:])
            c = f * c + i * gg
            h = o * jnp.tanh(c)
            return (h, c), h

        init = (jnp.zeros((B, H), jnp.float32), jnp.zeros((B, H), jnp.float32))
        _, hseq = lax.scan(cell, init, xseq)
        if reverse:
            hseq = hseq[::-1]
        return hseq

    # layer 0
    h0f = run_dir(x, params["w_ih0"][0], params["w_hh0"][0], params["b0"][0], False)
    h0b = run_dir(x, params["w_ih0"][1], params["w_hh0"][1], params["b0"][1], True)
    x1 = jnp.concatenate([h0f, h0b], axis=-1)                  # (T, B, 2H)
    # layer 1
    wih1 = [jnp.concatenate([params["w_ihf1"][d], params["w_ihb1"][d]], axis=0)
            for d in range(2)]
    h1f = run_dir(x1, wih1[0], params["w_hh1"][0], params["b1l"][0], False)
    h1b = run_dir(x1, wih1[1], params["w_hh1"][1], params["b1l"][1], True)
    out = jnp.concatenate([h1f, h1b], axis=-1)                 # (T, B, 2H)

    z = out.transpose(1, 0, 2).reshape(B, -1)                  # (B, T*2H)
    W1 = params["w1"].transpose(1, 0, 2, 3).reshape(T * 2 * H, -1)
    h1 = jnp.dot(z, W1, precision=hp) + params["b1"]
    hn = ((h1 - params["bn_mean"]) * lax.rsqrt(params["bn_var"] + 1e-5)
          * params["bn_gamma"] + params["bn_beta"])
    a = jnp.where(hn > 0, hn, 0.2 * hn)
    C = num_class
    return jnp.dot(a, params["w2p"][:, :C], precision=hp) + params["b2p"][:, :C]


# -------------------------------------- main ----------------------------------
if __name__ == "__main__":
    B, T = 2, 8
    VOCAB, EMB = 20, 32
    HIDDEN, NUM_CLASS = 32, 4

    key = jax.random.PRNGKey(0)
    pkey, tkey = jax.random.split(key)
    params = init_params(pkey, VOCAB, EMB, HIDDEN, NUM_CLASS, T)
    tokens = jax.random.randint(tkey, (B, T), 0, VOCAB, dtype=jnp.int32)

    out = seq_classifier_forward(params, tokens, num_class=NUM_CLASS)
    out = jax.block_until_ready(out)

    ref = reference_forward(params, tokens, num_class=NUM_CLASS)
    assert out.shape == (B, NUM_CLASS), out.shape
    assert jnp.allclose(out, ref, atol=1e-2, rtol=1e-2), (out, ref)
    print("KERNEL_OK")
</pallas_src>

<mosaic_0001>
module attributes {stable_mosaic.version = 11 : i64} {
  func.func @kernel(%arg0: i32, %arg1: memref<16x1xi32, #tpu.memory_space<vmem>>, %arg2: memref<20x32xf32, #tpu.memory_space<vmem>>, %arg3: memref<1x32xf32, #tpu.memory_space<vmem>>, %arg4: memref<1x32xf32, #tpu.memory_space<vmem>>, %arg5: memref<2x32x128xf32, #tpu.memory_space<vmem>>, %arg6: memref<2x32x128xf32, #tpu.memory_space<vmem>>, %arg7: memref<2x1x128xf32, #tpu.memory_space<vmem>>, %arg8: memref<2x32x128xf32, #tpu.memory_space<vmem>>, %arg9: memref<2x32x128xf32, #tpu.memory_space<vmem>>, %arg10: memref<2x32x128xf32, #tpu.memory_space<vmem>>, %arg11: memref<2x1x128xf32, #tpu.memory_space<vmem>>, %arg12: memref<16x32x32xf32, #tpu.memory_space<vmem>>, %arg13: memref<1x32xf32, #tpu.memory_space<vmem>>, %arg14: memref<1x32xf32, #tpu.memory_space<vmem>>, %arg15: memref<1x32xf32, #tpu.memory_space<vmem>>, %arg16: memref<1x32xf32, #tpu.memory_space<vmem>>, %arg17: memref<1x32xf32, #tpu.memory_space<vmem>>, %arg18: memref<32x128xf32, #tpu.memory_space<vmem>>, %arg19: memref<1x128xf32, #tpu.memory_space<vmem>>, %arg20: memref<2x128xf32, #tpu.memory_space<vmem>>) attributes {dimension_semantics = [#tpu.dimension_semantics<arbitrary>], iteration_bounds = array<i64: 1>, scalar_prefetch = 0 : i64, scratch_operands = 0 : i64, tpu.core_type = #tpu.core_type<tc>, window_params = [{pipeline_mode = #tpu.pipeline_mode<synchronous>, transform_indices = @transform_0, window_bounds = array<i64: 16, 1>}, {pipeline_mode = #tpu.pipeline_mode<synchronous>, transform_indices = @transform_1, window_bounds = array<i64: 20, 32>}, {pipeline_mode = #tpu.pipeline_mode<synchronous>, transform_indices = @transform_2, window_bounds = array<i64: 1, 32>}, {pipeline_mode = #tpu.pipeline_mode<synchronous>, transform_indices = @transform_3, window_bounds = array<i64: 1, 32>}, {pipeline_mode = #tpu.pipeline_mode<synchronous>, transform_indices = @transform_4, window_bounds = array<i64: 2, 32, 128>}, {pipeline_mode = #tpu.pipeline_mode<synchronous>, transform_indices = @transform_5, window_bounds = array<i64: 2, 32, 128>}, {pipeline_mode = #tpu.pipeline_mode<synchronous>, transform_indices = @transform_6, window_bounds = array<i64: 2, 1, 128>}, {pipeline_mode = #tpu.pipeline_mode<synchronous>, transform_indices = @transform_7, window_bounds = array<i64: 2, 32, 128>}, {pipeline_mode = #tpu.pipeline_mode<synchronous>, transform_indices = @transform_8, window_bounds = array<i64: 2, 32, 128>}, {pipeline_mode = #tpu.pipeline_mode<synchronous>, transform_indices = @transform_9, window_bounds = array<i64: 2, 32, 128>}, {pipeline_mode = #tpu.pipeline_mode<synchronous>, transform_indices = @transform_10, window_bounds = array<i64: 2, 1, 128>}, {pipeline_mode = #tpu.pipeline_mode<synchronous>, transform_indices = @transform_11, window_bounds = array<i64: 16, 32, 32>}, {pipeline_mode = #tpu.pipeline_mode<synchronous>, transform_indices = @transform_12, window_bounds = array<i64: 1, 32>}, {pipeline_mode = #tpu.pipeline_mode<synchronous>, transform_indices = @transform_13, window_bounds = array<i64: 1, 32>}, {pipeline_mode = #tpu.pipeline_mode<synchronous>, transform_indices = @transform_14, window_bounds = array<i64: 1, 32>}, {pipeline_mode = #tpu.pipeline_mode<synchronous>, transform_indices = @transform_15, window_bounds = array<i64: 1, 32>}, {pipeline_mode = #tpu.pipeline_mode<synchronous>, transform_indices = @transform_16, window_bounds = array<i64: 1, 32>}, {pipeline_mode = #tpu.pipeline_mode<synchronous>, transform_indices = @transform_17, window_bounds = array<i64: 32, 128>}, {pipeline_mode = #tpu.pipeline_mode<synchronous>, transform_indices = @transform_18, window_bounds = array<i64: 1, 128>}, {pipeline_mode = #tpu.pipeline_mode<synchronous>, transform_indices = @transform_19, window_bounds = array<i64: 2, 128>}]} {
    %c0 = arith.constant 0 : index
    %c0_0 = arith.constant 0 : index
    %0 = vector.load %arg1[%c0, %c0_0] : memref<16x1xi32, #tpu.memory_space<vmem>>, vector<16x1xi32>
    %1 = tpu.iota {dimensions = array<i32: 1>} : vector<16x20xi32>
    %2 = vector.broadcast %0 : vector<16x1xi32> to vector<16x20xi32>
    %3 = arith.cmpi eq, %1, %2 : vector<16x20xi32>
    %4 = arith.extui %3 : vector<16x20xi1> to vector<16x20xi32>
    %5 = arith.sitofp %4 : vector<16x20xi32> to vector<16x20xf32>
    %c0_1 = arith.constant 0 : index
    %c0_2 = arith.constant 0 : index
    %6 = vector.load %arg2[%c0_1, %c0_2] : memref<20x32xf32, #tpu.memory_space<vmem>>, vector<20x32xf32>
    %cst = arith.constant dense<0.000000e+00> : vector<16x32xf32>
    %7 = tpu.matmul %5, %6, %cst {dimension_numbers = #tpu.dot_dimension_numbers<[1], [0], [0], [1], [0, 0, 1, 1], [], []>} : vector<16x20xf32>, vector<20x32xf32>, vector<16x32xf32> -> vector<16x32xf32>
    %cst_3 = arith.constant dense<0.000000e+00> : vector<16xf32>
    %8 = vector.multi_reduction <add>, %7, %cst_3 [1] : vector<16x32xf32> to vector<16xf32>
    %9 = vector.shape_cast %8 : vector<16xf32> to vector<16x1xf32>
    %cst_4 = arith.constant 3.200000e+01 : f32
    %10 = vector.broadcast %cst_4 : f32 to vector<16x1xf32>
    %11 = arith.divf %9, %10 : vector<16x1xf32>
    %12 = vector.broadcast %11 : vector<16x1xf32> to vector<16x32xf32>
    %13 = arith.subf %7, %12 : vector<16x32xf32>
    %14 = arith.mulf %13, %13 : vector<16x32xf32>
    %cst_5 = arith.constant dense<0.000000e+00> : vector<16xf32>
    %15 = vector.multi_reduction <add>, %14, %cst_5 [1] : vector<16x32xf32> to vector<16xf32>
    %16 = vector.shape_cast %15 : vector<16xf32> to vector<16x1xf32>
    %cst_6 = arith.constant 3.200000e+01 : f32
    %17 = vector.broadcast %cst_6 : f32 to vector<16x1xf32>
    %18 = arith.divf %16, %17 : vector<16x1xf32>
    %19 = vector.broadcast %11 : vector<16x1xf32> to vector<16x32xf32>
    %20 = arith.subf %7, %19 : vector<16x32xf32>
    %cst_7 = arith.constant 9.99999974E-6 : f32
    %21 = vector.broadcast %cst_7 : f32 to vector<16x1xf32>
    %22 = arith.addf %18, %21 : vector<16x1xf32>
    %23 = math.rsqrt %22 : vector<16x1xf32>
    %24 = vector.broadcast %23 : vector<16x1xf32> to vector<16x32xf32>
    %25 = arith.mulf %20, %24 : vector<16x32xf32>
    %c0_8 = arith.constant 0 : index
    %c0_9 = arith.constant 0 : index
    %26 = vector.load %arg3[%c0_8, %c0_9] : memref<1x32xf32, #tpu.memory_space<vmem>>, vector<1x32xf32>
    %27 = vector.broadcast %26 : vector<1x32xf32> to vector<16x32xf32>
    %28 = arith.mulf %25, %27 : vector<16x32xf32>
    %c0_10 = arith.constant 0 : index
    %c0_11 = arith.constant 0 : index
    %29 = vector.load %arg4[%c0_10, %c0_11] : memref<1x32xf32, #tpu.memory_space<vmem>>, vector<1x32xf32>
    %30 = vector.broadcast %29 : vector<1x32xf32> to vector<16x32xf32>
    %31 = arith.addf %28, %30 : vector<16x32xf32>
    %c0_12 = arith.constant 0 : index
    %c0_13 = arith.constant 0 : index
    %c0_14 = arith.constant 0 : index
    %32 = vector.load %arg6[%c0_12, %c0_13, %c0_14] : memref<2x32x128xf32, #tpu.memory_space<vmem>>, vector<1x32x128xf32>
    %33 = vector.shape_cast %32 : vector<1x32x128xf32> to vector<32x128xf32>
    %c1 = arith.constant 1 : index
    %c0_15 = arith.constant 0 : index
    %c0_16 = arith.constant 0 : index
    %34 = vector.load %arg6[%c1, %c0_15, %c0_16] : memref<2x32x128xf32, #tpu.memory_space<vmem>>, vector<1x32x128xf32>
    %35 = vector.shape_cast %34 : vector<1x32x128xf32> to vector<32x128xf32>
    %c0_17 = arith.constant 0 : index
    %c0_18 = arith.constant 0 : index
    %c0_19 = arith.constant 0 : index
    %36 = vector.load %arg5[%c0_17, %c0_18, %c0_19] : memref<2x32x128xf32, #tpu.memory_space<vmem>>, vector<1x32x128xf32>
    %37 = vector.shape_cast %36 : vector<1x32x128xf32> to vector<32x128xf32>
    %cst_20 = arith.constant dense<0.000000e+00> : vector<16x128xf32>
    %38 = tpu.matmul %31, %37, %cst_20 {dimension_numbers = #tpu.dot_dimension_numbers<[1], [0], [0], [1], [0, 0, 1, 1], [], []>} : vector<16x32xf32>, vector<32x128xf32>, vector<16x128xf32> -> vector<16x128xf32>
    %c0_21 = arith.constant 0 : index
    %c0_22 = arith.constant 0 : index
    %c0_23 = arith.constant 0 : index
    %39 = vector.load %arg7[%c0_21, %c0_22, %c0_23] : memref<2x1x128xf32, #tpu.memory_space<vmem>>, vector<1x1x128xf32>
    %40 = vector.shape_cast %39 : vector<1x1x128xf32> to vector<1x128xf32>
    %41 = vector.broadcast %40 : vector<1x128xf32> to vector<16x128xf32>
    %42 = arith.addf %38, %41 : vector<16x128xf32>
    %c1_24 = arith.constant 1 : index
    %c0_25 = arith.constant 0 : index
    %c0_26 = arith.constant 0 : index
    %43 = vector.load %arg5[%c1_24, %c0_25, %c0_26] : memref<2x32x128xf32, #tpu.memory_space<vmem>>, vector<1x32x128xf32>
    %44 = vector.shape_cast %43 : vector<1x32x128xf32> to vector<32x128xf32>
    %cst_27 = arith.constant dense<0.000000e+00> : vector<16x128xf32>
    %45 = tpu.matmul %31, %44, %cst_27 {dimension_numbers = #tpu.dot_dimension_numbers<[1], [0], [0], [1], [0, 0, 1, 1], [], []>} : vector<16x32xf32>, vector<32x128xf32>, vector<16x128xf32> -> vector<16x128xf32>
    %c1_28 = arith.constant 1 : index
    %c0_29 = arith.constant 0 : index
    %c0_30 = arith.constant 0 : index
    %46 = vector.load %arg7[%c1_28, %c0_29, %c0_30] : memref<2x1x128xf32, #tpu.memory_space<vmem>>, vector<1x1x128xf32>
    %47 = vector.shape_cast %46 : vector<1x1x128xf32> to vector<1x128xf32>
    %48 = vector.broadcast %47 : vector<1x128xf32> to vector<16x128xf32>
    %49 = arith.addf %45, %48 : vector<16x128xf32>
    %50 = vector.extract_strided_slice %42 {offsets = [0, 0], sizes = [2, 128], strides = [1, 1]} : vector<16x128xf32> to vector<2x128xf32>
    %51 = vector.extract_strided_slice %42 {offsets = [2, 0], sizes = [2, 128], strides = [1, 1]} : vector<16x128xf32> to vector<2x128xf32>
    %52 = vector.extract_strided_slice %42 {offsets = [4, 0], sizes = [2, 128], strides = [1, 1]} : vector<16x128xf32> to vector<2x128xf32>
    %53 = vector.extract_strided_slice %42 {offsets = [6, 0], sizes = [2, 128], strides = [1, 1]} : vector<16x128xf32> to vector<2x128xf32>
    %54 = vector.extract_strided_slice %42 {offsets = [8, 0], sizes = [2, 128], strides = [1, 1]} : vector<16x128xf32> to vector<2x128xf32>
    %55 = vector.extract_strided_slice %42 {offsets = [10, 0], sizes = [2, 128], strides = [1, 1]} : vector<16x128xf32> to vector<2x128xf32>
    %56 = vector.extract_strided_slice %42 {offsets = [12, 0], sizes = [2, 128], strides = [1, 1]} : vector<16x128xf32> to vector<2x128xf32>
    %57 = vector.extract_strided_slice %42 {offsets = [14, 0], sizes = [2, 128], strides = [1, 1]} : vector<16x128xf32> to vector<2x128xf32>
    %58 = vector.extract_strided_slice %49 {offsets = [0, 0], sizes = [2, 128], strides = [1, 1]} : vector<16x128xf32> to vector<2x128xf32>
    %59 = vector.extract_strided_slice %49 {offsets = [2, 0], sizes = [2, 128], strides = [1, 1]} : vector<16x128xf32> to vector<2x128xf32>
    %60 = vector.extract_strided_slice %49 {offsets = [4, 0], sizes = [2, 128], strides = [1, 1]} : vector<16x128xf32> to vector<2x128xf32>
    %61 = vector.extract_strided_slice %49 {offsets = [6, 0], sizes = [2, 128], strides = [1, 1]} : vector<16x128xf32> to vector<2x128xf32>
    %62 = vector.extract_strided_slice %49 {offsets = [8, 0], sizes = [2, 128], strides = [1, 1]} : vector<16x128xf32> to vector<2x128xf32>
    %63 = vector.extract_strided_slice %49 {offsets = [10, 0], sizes = [2, 128], strides = [1, 1]} : vector<16x128xf32> to vector<2x128xf32>
    %64 = vector.extract_strided_slice %49 {offsets = [12, 0], sizes = [2, 128], strides = [1, 1]} : vector<16x128xf32> to vector<2x128xf32>
    %65 = vector.extract_strided_slice %49 {offsets = [14, 0], sizes = [2, 128], strides = [1, 1]} : vector<16x128xf32> to vector<2x128xf32>
    %cst_31 = arith.constant 0.000000e+00 : f32
    %66 = vector.broadcast %cst_31 : f32 to vector<2x32xf32>
    %cst_32 = arith.constant 0.000000e+00 : f32
    %67 = vector.broadcast %cst_32 : f32 to vector<2x32xf32>
    %cst_33 = arith.constant 0.000000e+00 : f32
    %68 = vector.broadcast %cst_33 : f32 to vector<2x32xf32>
    %cst_34 = arith.constant 0.000000e+00 : f32
    %69 = vector.broadcast %cst_34 : f32 to vector<2x32xf32>
    %cst_35 = arith.constant dense<0.000000e+00> : vector<2x128xf32>
    %70 = tpu.matmul %66, %33, %cst_35 {dimension_numbers = #tpu.dot_dimension_numbers<[1], [0], [0], [1], [0, 0, 1, 1], [], []>} : vector<2x32xf32>, vector<32x128xf32>, vector<2x128xf32> -> vector<2x128xf32>
    %71 = arith.addf %50, %70 : vector<2x128xf32>
    %72 = arith.negf %71 : vector<2x128xf32>
    %73 = math.exp %72 : vector<2x128xf32>
    %cst_36 = arith.constant 1.000000e+00 : f32
    %74 = vector.broadcast %cst_36 : f32 to vector<2x128xf32>
    %75 = arith.addf %74, %73 : vector<2x128xf32>
    %76 = arith.divf %74, %75 : vector<2x128xf32>
    %77 = vector.extract_strided_slice %76 {offsets = [0, 0], sizes = [2, 32], strides = [1, 1]} : vector<2x128xf32> to vector<2x32xf32>
    %78 = vector.extract_strided_slice %76 {offsets = [0, 32], sizes = [2, 32], strides = [1, 1]} : vector<2x128xf32> to vector<2x32xf32>
    %79 = vector.extract_strided_slice %76 {offsets = [0, 96], sizes = [2, 32], strides = [1, 1]} : vector<2x128xf32> to vector<2x32xf32>
    %80 = vector.extract_strided_slice %71 {offsets = [0, 64], sizes = [2, 32], strides = [1, 1]} : vector<2x128xf32> to vector<2x32xf32>
    %81 = math.tanh %80 : vector<2x32xf32>
    %82 = arith.mulf %78, %68 : vector<2x32xf32>
    %83 = arith.mulf %77, %81 : vector<2x32xf32>
    %84 = arith.addf %82, %83 : vector<2x32xf32>
    %85 = math.tanh %84 : vector<2x32xf32>
    %86 = arith.mulf %79, %85 : vector<2x32xf32>
    %cst_37 = arith.constant dense<0.000000e+00> : vector<2x128xf32>
    %87 = tpu.matmul %67, %35, %cst_37 {dimension_numbers = #tpu.dot_dimension_numbers<[1], [0], [0], [1], [0, 0, 1, 1], [], []>} : vector<2x32xf32>, vector<32x128xf32>, vector<2x128xf32> -> vector<2x128xf32>
    %88 = arith.addf %65, %87 : vector<2x128xf32>
    %89 = arith.negf %88 : vector<2x128xf32>
    %90 = math.exp %89 : vector<2x128xf32>
    %cst_38 = arith.constant 1.000000e+00 : f32
    %91 = vector.broadcast %cst_38 : f32 to vector<2x128xf32>
    %92 = arith.addf %91, %90 : vector<2x128xf32>
    %93 = arith.divf %91, %92 : vector<2x128xf32>
    %94 = vector.extract_strided_slice %93 {offsets = [0, 0], sizes = [2, 32], strides = [1, 1]} : vector<2x128xf32> to vector<2x32xf32>
    %95 = vector.extract_strided_slice %93 {offsets = [0, 32], sizes = [2, 32], strides = [1, 1]} : vector<2x128xf32> to vector<2x32xf32>
    %96 = vector.extract_strided_slice %93 {offsets = [0, 96], sizes = [2, 32], strides = [1, 1]} : vector<2x128xf32> to vector<2x32xf32>
    %97 = vector.extract_strided_slice %88 {offsets = [0, 64], sizes = [2, 32], strides = [1, 1]} : vector<2x128xf32> to vector<2x32xf32>
    %98 = math.tanh %97 : vector<2x32xf32>
    %99 = arith.mulf %95, %69 : vector<2x32xf32>
    %100 = arith.mulf %94, %98 : vector<2x32xf32>
    %101 = arith.addf %99, %100 : vector<2x32xf32>
    %102 = math.tanh %101 : vector<2x32xf32>
    %103 = arith.mulf %96, %102 : vector<2x32xf32>
    %cst_39 = arith.constant dense<0.000000e+00> : vector<2x128xf32>
    %104 = tpu.matmul %86, %33, %cst_39 {dimension_numbers = #tpu.dot_dimension_numbers<[1], [0], [0], [1], [0, 0, 1, 1], [], []>} : vector<2x32xf32>, vector<32x128xf32>, vector<2x128xf32> -> vector<2x128xf32>
    %105 = arith.addf %51, %104 : vector<2x128xf32>
    %106 = arith.negf %105 : vector<2x128xf32>
    %107 = math.exp %106 : vector<2x128xf32>
    %cst_40 = arith.constant 1.000000e+00 : f32
    %108 = vector.broadcast %cst_40 : f32 to vector<2x128xf32>
    %109 = arith.addf %108, %107 : vector<2x128xf32>
    %110 = arith.divf %108, %109 : vector<2x128xf32>
    %111 = vector.extract_strided_slice %110 {offsets = [0, 0], sizes = [2, 32], strides = [1, 1]} : vector<2x128xf32> to vector<2x32xf32>
    %112 = vector.extract_strided_slice %110 {offsets = [0, 32], sizes = [2, 32], strides = [1, 1]} : vector<2x128xf32> to vector<2x32xf32>
    %113 = vector.extract_strided_slice %110 {offsets = [0, 96], sizes = [2, 32], strides = [1, 1]} : vector<2x128xf32> to vector<2x32xf32>
    %114 = vector.extract_strided_slice %105 {offsets = [0, 64], sizes = [2, 32], strides = [1, 1]} : vector<2x128xf32> to vector<2x32xf32>
    %115 = math.tanh %114 : vector<2x32xf32>
    %116 = arith.mulf %112, %84 : vector<2x32xf32>
    %117 = arith.mulf %111, %115 : vector<2x32xf32>
    %118 = arith.addf %116, %117 : vector<2x32xf32>
    %119 = math.tanh %118 : vector<2x32xf32>
    %120 = arith.mulf %113, %119 : vector<2x32xf32>
    %cst_41 = arith.constant dense<0.000000e+00> : vector<2x128xf32>
    %121 = tpu.matmul %103, %35, %cst_41 {dimension_numbers = #tpu.dot_dimension_numbers<[1], [0], [0], [1], [0, 0, 1, 1], [], []>} : vector<2x32xf32>, vector<32x128xf32>, vector<2x128xf32> -> vector<2x128xf32>
    %122 = arith.addf %64, %121 : vector<2x128xf32>
    %123 = arith.negf %122 : vector<2x128xf32>
    %124 = math.exp %123 : vector<2x128xf32>
    %cst_42 = arith.constant 1.000000e+00 : f32
    %125 = vector.broadcast %cst_42 : f32 to vector<2x128xf32>
    %126 = arith.addf %125, %124 : vector<2x128xf32>
    %127 = arith.divf %125, %126 : vector<2x128xf32>
    %128 = vector.extract_strided_slice %127 {offsets = [0, 0], sizes = [2, 32], strides = [1, 1]} : vector<2x128xf32> to vector<2x32xf32>
    %129 = vector.extract_strided_slice %127 {offsets = [0, 32], sizes = [2, 32], strides = [1, 1]} : vector<2x128xf32> to vector<2x32xf32>
    %130 = vector.extract_strided_slice %127 {offsets = [0, 96], sizes = [2, 32], strides = [1, 1]} : vector<2x128xf32> to vector<2x32xf32>
    %131 = vector.extract_strided_slice %122 {offsets = [0, 64], sizes = [2, 32], strides = [1, 1]} : vector<2x128xf32> to vector<2x32xf32>
    %132 = math.tanh %131 : vector<2x32xf32>
    %133 = arith.mulf %129, %101 : vector<2x32xf32>
    %134 = arith.mulf %128, %132 : vector<2x32xf32>
    %135 = arith.addf %133, %134 : vector<2x32xf32>
    %136 = math.tanh %135 : vector<2x32xf32>
    %137 = arith.mulf %130, %136 : vector<2x32xf32>
    %cst_43 = arith.constant dense<0.000000e+00> : vector<2x128xf32>
    %138 = tpu.matmul %120, %33, %cst_43 {dimension_numbers = #tpu.dot_dimension_numbers<[1], [0], [0], [1], [0, 0, 1, 1], [], []>} : vector<2x32xf32>, vector<32x128xf32>, vector<2x128xf32> -> vector<2x128xf32>
    %139 = arith.addf %52, %138 : vector<2x128xf32>
    %140 = arith.negf %139 : vector<2x128xf32>
    %141 = math.exp %140 : vector<2x128xf32>
    %cst_44 = arith.constant 1.000000e+00 : f32
    %142 = vector.broadcast %cst_44 : f32 to vector<2x128xf32>
    %143 = arith.addf %142, %141 : vector<2x128xf32>
    %144 = arith.divf %142, %143 : vector<2x128xf32>
    %145 = vector.extract_strided_slice %144 {offsets = [0, 0], sizes = [2, 32], strides = [1, 1]} : vector<2x128xf32> to vector<2x32xf32>
    %146 = vector.extract_strided_slice %144 {offsets = [0, 32], sizes = [2, 32], strides = [1, 1]} : vector<2x128xf32> to vector<2x32xf32>
    %147 = vector.extract_strided_slice %144 {offsets = [0, 96], sizes = [2, 32], strides = [1, 1]} : vector<2x128xf32> to vector<2x32xf32>
    %148 = vector.extract_strided_slice %139 {offsets = [0, 64], sizes = [2, 32], strides = [1, 1]} : vector<2x128xf32> to vector<2x32xf32>
    %149 = math.tanh %148 : vector<2x32xf32>
    %150 = arith.mulf %146, %118 : vector<2x32xf32>
    %151 = arith.mulf %145, %149 : vector<2x32xf32>
    %152 = arith.addf %150, %151 : vector<2x32xf32>
    %153 = math.tanh %152 : vector<2x32xf32>
    %154 = arith.mulf %147, %153 : vector<2x32xf32>
    %cst_45 = arith.constant dense<0.000000e+00> : vector<2x128xf32>
    %155 = tpu.matmul %137, %35, %cst_45 {dimension_numbers = #tpu.dot_dimension_numbers<[1], [0], [0], [1], [0, 0, 1, 1], [], []>} : vector<2x32xf32>, vector<32x128xf32>, vector<2x128xf32> -> vector<2x128xf32>
    %156 = arith.addf %63, %155 : vector<2x128xf32>
    %157 = arith.negf %156 : vector<2x128xf32>
    %158 = math.exp %157 : vector<2x128xf32>
    %cst_46 = arith.constant 1.000000e+00 : f32
    %159 = vector.broadcast %cst_46 : f32 to vector<2x128xf32>
    %160 = arith.addf %159, %158 : vector<2x128xf32>
    %161 = arith.divf %159, %160 : vector<2x128xf32>
    %162 = vector.extract_strided_slice %161 {offsets = [0, 0], sizes = [2, 32], strides = [1, 1]} : vector<2x128xf32> to vector<2x32xf32>
    %163 = vector.extract_strided_slice %161 {offsets = [0, 32], sizes = [2, 32], strides = [1, 1]} : vector<2x128xf32> to vector<2x32xf32>
    %164 = vector.extract_strided_slice %161 {offsets = [0, 96], sizes = [2, 32], strides = [1, 1]} : vector<2x128xf32> to vector<2x32xf32>
    %165 = vector.extract_strided_slice %156 {offsets = [0, 64], sizes = [2, 32], strides = [1, 1]} : vector<2x128xf32> to vector<2x32xf32>
    %166 = math.tanh %165 : vector<2x32xf32>
    %167 = arith.mulf %163, %135 : vector<2x32xf32>
    %168 = arith.mulf %162, %166 : vector<2x32xf32>
    %169 = arith.addf %167, %168 : vector<2x32xf32>
    %170 = math.tanh %169 : vector<2x32xf32>
    %171 = arith.mulf %164, %170 : vector<2x32xf32>
    %cst_47 = arith.constant dense<0.000000e+00> : vector<2x128xf32>
    %172 = tpu.matmul %154, %33, %cst_47 {dimension_numbers = #tpu.dot_dimension_numbers<[1], [0], [0], [1], [0, 0, 1, 1], [], []>} : vector<2x32xf32>, vector<32x128xf32>, vector<2x128xf32> -> vector<2x128xf32>
    %173 = arith.addf %53, %172 : vector<2x128xf32>
    %174 = arith.negf %173 : vector<2x128xf32>
    %175 = math.exp %174 : vector<2x128xf32>
    %cst_48 = arith.constant 1.000000e+00 : f32
    %176 = vector.broadcast %cst_48 : f32 to vector<2x128xf32>
    %177 = arith.addf %176, %175 : vector<2x128xf32>
    %178 = arith.divf %176, %177 : vector<2x128xf32>
    %179 = vector.extract_strided_slice %178 {offsets = [0, 0], sizes = [2, 32], strides = [1, 1]} : vector<2x128xf32> to vector<2x32xf32>
    %180 = vector.extract_strided_slice %178 {offsets = [0, 32], sizes = [2, 32], strides = [1, 1]} : vector<2x128xf32> to vector<2x32xf32>
    %181 = vector.extract_strided_slice %178 {offsets = [0, 96], sizes = [2, 32], strides = [1, 1]} : vector<2x128xf32> to vector<2x32xf32>
    %182 = vector.extract_strided_slice %173 {offsets = [0, 64], sizes = [2, 32], strides = [1, 1]} : vector<2x128xf32> to vector<2x32xf32>
    %183 = math.tanh %182 : vector<2x32xf32>
    %184 = arith.mulf %180, %152 : vector<2x32xf32>
    %185 = arith.mulf %179, %183 : vector<2x32xf32>
    %186 = arith.addf %184, %185 : vector<2x32xf32>
    %187 = math.tanh %186 : vector<2x32xf32>
    %188 = arith.mulf %181, %187 : vector<2x32xf32>
    %cst_49 = arith.constant dense<0.000000e+00> : vector<2x128xf32>
    %189 = tpu.matmul %171, %35, %cst_49 {dimension_numbers = #tpu.dot_dimension_numbers<[1], [0], [0], [1], [0, 0, 1, 1], [], []>} : vector<2x32xf32>, vector<32x128xf32>, vector<2x128xf32> -> vector<2x128xf32>
    %190 = arith.addf %62, %189 : vector<2x128xf32>
    %191 = arith.negf %190 : vector<2x128xf32>
    %192 = math.exp %191 : vector<2x128xf32>
    %cst_50 = arith.constant 1.000000e+00 : f32
    %193 = vector.broadcast %cst_50 : f32 to vector<2x128xf32>
    %194 = arith.addf %193, %192 : vector<2x128xf32>
    %195 = arith.divf %193, %194 : vector<2x128xf32>
    %196 = vector.extract_strided_slice %195 {offsets = [0, 0], sizes = [2, 32], strides = [1, 1]} : vector<2x128xf32> to vector<2x32xf32>
    %197 = vector.extract_strided_slice %195 {offsets = [0, 32], sizes = [2, 32], strides = [1, 1]} : vector<2x128xf32> to vector<2x32xf32>
    %198 = vector.extract_strided_slice %195 {offsets = [0, 96], sizes = [2, 32], strides = [1, 1]} : vector<2x128xf32> to vector<2x32xf32>
    %199 = vector.extract_strided_slice %190 {offsets = [0, 64], sizes = [2, 32], strides = [1, 1]} : vector<2x128xf32> to vector<2x32xf32>
    %200 = math.tanh %199 : vector<2x32xf32>
    %201 = arith.mulf %197, %169 : vector<2x32xf32>
    %202 = arith.mulf %196, %200 : vector<2x32xf32>
    %203 = arith.addf %201, %202 : vector<2x32xf32>
    %204 = math.tanh %203 : vector<2x32xf32>
    %205 = arith.mulf %198, %204 : vector<2x32xf32>
    %cst_51 = arith.constant dense<0.000000e+00> : vector<2x128xf32>
    %206 = tpu.matmul %188, %33, %cst_51 {dimension_numbers = #tpu.dot_dimension_numbers<[1], [0], [0], [1], [0, 0, 1, 1], [], []>} : vector<2x32xf32>, vector<32x128xf32>, vector<2x128xf32> -> vector<2x128xf32>
    %207 = arith.addf %54, %206 : vector<2x128xf32>
    %208 = arith.negf %207 : vector<2x128xf32>
    %209 = math.exp %208 : vector<2x128xf32>
    %cst_52 = arith.constant 1.000000e+00 : f32
    %210 = vector.broadcast %cst_52 : f32 to vector<2x128xf32>
    %211 = arith.addf %210, %209 : vector<2x128xf32>
    %212 = arith.divf %210, %211 : vector<2x128xf32>
    %213 = vector.extract_strided_slice %212 {offsets = [0, 0], sizes = [2, 32], strides = [1, 1]} : vector<2x128xf32> to vector<2x32xf32>
    %214 = vector.extract_strided_slice %212 {offsets = [0, 32], sizes = [2, 32], strides = [1, 1]} : vector<2x128xf32> to vector<2x32xf32>
    %215 = vector.extract_strided_slice %212 {offsets = [0, 96], sizes = [2, 32], strides = [1, 1]} : vector<2x128xf32> to vector<2x32xf32>
    %216 = vector.extract_strided_slice %207 {offsets = [0, 64], sizes = [2, 32], strides = [1, 1]} : vector<2x128xf32> to vector<2x32xf32>
    %217 = math.tanh %216 : vector<2x32xf32>
    %218 = arith.mulf %214, %186 : vector<2x32xf32>
    %219 = arith.mulf %213, %217 : vector<2x32xf32>
    %220 = arith.addf %218, %219 : vector<2x32xf32>
    %221 = math.tanh %220 : vector<2x32xf32>
    %222 = arith.mulf %215, %221 : vector<2x32xf32>
    %cst_53 = arith.constant dense<0.000000e+00> : vector<2x128xf32>
    %223 = tpu.matmul %205, %35, %cst_53 {dimension_numbers = #tpu.dot_dimension_numbers<[1], [0], [0], [1], [0, 0, 1, 1], [], []>} : vector<2x32xf32>, vector<32x128xf32>, vector<2x128xf32> -> vector<2x128xf32>
    %224 = arith.addf %61, %223 : vector<2x128xf32>
    %225 = arith.negf %224 : vector<2x128xf32>
    %226 = math.exp %225 : vector<2x128xf32>
    %cst_54 = arith.constant 1.000000e+00 : f32
    %227 = vector.broadcast %cst_54 : f32 to vector<2x128xf32>
    %228 = arith.addf %227, %226 : vector<2x128xf32>
    %229 = arith.divf %227, %228 : vector<2x128xf32>
    %230 = vector.extract_strided_slice %229 {offsets = [0, 0], sizes = [2, 32], strides = [1, 1]} : vector<2x128xf32> to vector<2x32xf32>
    %231 = vector.extract_strided_slice %229 {offsets = [0, 32], sizes = [2, 32], strides = [1, 1]} : vector<2x128xf32> to vector<2x32xf32>
    %232 = vector.extract_strided_slice %229 {offsets = [0, 96], sizes = [2, 32], strides = [1, 1]} : vector<2x128xf32> to vector<2x32xf32>
    %233 = vector.extract_strided_slice %224 {offsets = [0, 64], sizes = [2, 32], strides = [1, 1]} : vector<2x128xf32> to vector<2x32xf32>
    %234 = math.tanh %233 : vector<2x32xf32>
    %235 = arith.mulf %231, %203 : vector<2x32xf32>
    %236 = arith.mulf %230, %234 : vector<2x32xf32>
    %237 = arith.addf %235, %236 : vector<2x32xf32>
    %238 = math.tanh %237 : vector<2x32xf32>
    %239 = arith.mulf %232, %238 : vector<2x32xf32>
    %cst_55 = arith.constant dense<0.000000e+00> : vector<2x128xf32>
    %240 = tpu.matmul %222, %33, %cst_55 {dimension_numbers = #tpu.dot_dimension_numbers<[1], [0], [0], [1], [0, 0, 1, 1], [], []>} : vector<2x32xf32>, vector<32x128xf32>, vector<2x128xf32> -> vector<2x128xf32>
    %241 = arith.addf %55, %240 : vector<2x128xf32>
    %242 = arith.negf %241 : vector<2x128xf32>
    %243 = math.exp %242 : vector<2x128xf32>
    %cst_56 = arith.constant 1.000000e+00 : f32
    %244 = vector.broadcast %cst_56 : f32 to vector<2x128xf32>
    %245 = arith.addf %244, %243 : vector<2x128xf32>
    %246 = arith.divf %244, %245 : vector<2x128xf32>
    %247 = vector.extract_strided_slice %246 {offsets = [0, 0], sizes = [2, 32], strides = [1, 1]} : vector<2x128xf32> to vector<2x32xf32>
    %248 = vector.extract_strided_slice %246 {offsets = [0, 32], sizes = [2, 32], strides = [1, 1]} : vector<2x128xf32> to vector<2x32xf32>
    %249 = vector.extract_strided_slice %246 {offsets = [0, 96], sizes = [2, 32], strides = [1, 1]} : vector<2x128xf32> to vector<2x32xf32>
    %250 = vector.extract_strided_slice %241 {offsets = [0, 64], sizes = [2, 32], strides = [1, 1]} : vector<2x128xf32> to vector<2x32xf32>
    %251 = math.tanh %250 : vector<2x32xf32>
    %252 = arith.mulf %248, %220 : vector<2x32xf32>
    %253 = arith.mulf %247, %251 : vector<2x32xf32>
    %254 = arith.addf %252, %253 : vector<2x32xf32>
    %255 = math.tanh %254 : vector<2x32xf32>
    %256 = arith.mulf %249, %255 : vector<2x32xf32>
    %cst_57 = arith.constant dense<0.000000e+00> : vector<2x128xf32>
    %257 = tpu.matmul %239, %35, %cst_57 {dimension_numbers = #tpu.dot_dimension_numbers<[1], [0], [0], [1], [0, 0, 1, 1], [], []>} : vector<2x32xf32>, vector<32x128xf32>, vector<2x128xf32> -> vector<2x128xf32>
    %258 = arith.addf %60, %257 : vector<2x128xf32>
    %259 = arith.negf %258 : vector<2x128xf32>
    %260 = math.exp %259 : vector<2x128xf32>
    %cst_58 = arith.constant 1.000000e+00 : f32
    %261 = vector.broadcast %cst_58 : f32 to vector<2x128xf32>
    %262 = arith.addf %261, %260 : vector<2x128xf32>
    %263 = arith.divf %261, %262 : vector<2x128xf32>
    %264 = vector.extract_strided_slice %263 {offsets = [0, 0], sizes = [2, 32], strides = [1, 1]} : vector<2x128xf32> to vector<2x32xf32>
    %265 = vector.extract_strided_slice %263 {offsets = [0, 32], sizes = [2, 32], strides = [1, 1]} : vector<2x128xf32> to vector<2x32xf32>
    %266 = vector.extract_strided_slice %263 {offsets = [0, 96], sizes = [2, 32], strides = [1, 1]} : vector<2x128xf32> to vector<2x32xf32>
    %267 = vector.extract_strided_slice %258 {offsets = [0, 64], sizes = [2, 32], strides = [1, 1]} : vector<2x128xf32> to vector<2x32xf32>
    %268 = math.tanh %267 : vector<2x32xf32>
    %269 = arith.mulf %265, %237 : vector<2x32xf32>
    %270 = arith.mulf %264, %268 : vector<2x32xf32>
    %271 = arith.addf %269, %270 : vector<2x32xf32>
    %272 = math.tanh %271 : vector<2x32xf32>
    %273 = arith.mulf %266, %272 : vector<2x32xf32>
    %cst_59 = arith.constant dense<0.000000e+00> : vector<2x128xf32>
    %274 = tpu.matmul %256, %33, %cst_59 {dimension_numbers = #tpu.dot_dimension_numbers<[1], [0], [0], [1], [0, 0, 1, 1], [], []>} : vector<2x32xf32>, vector<32x128xf32>, vector<2x128xf32> -> vector<2x128xf32>
    %275 = arith.addf %56, %274 : vector<2x128xf32>
    %276 = arith.negf %275 : vector<2x128xf32>
    %277 = math.exp %276 : vector<2x128xf32>
    %cst_60 = arith.constant 1.000000e+00 : f32
    %278 = vector.broadcast %cst_60 : f32 to vector<2x128xf32>
    %279 = arith.addf %278, %277 : vector<2x128xf32>
    %280 = arith.divf %278, %279 : vector<2x128xf32>
    %281 = vector.extract_strided_slice %280 {offsets = [0, 0], sizes = [2, 32], strides = [1, 1]} : vector<2x128xf32> to vector<2x32xf32>
    %282 = vector.extract_strided_slice %280 {offsets = [0, 32], sizes = [2, 32], strides = [1, 1]} : vector<2x128xf32> to vector<2x32xf32>
    %283 = vector.extract_strided_slice %280 {offsets = [0, 96], sizes = [2, 32], strides = [1, 1]} : vector<2x128xf32> to vector<2x32xf32>
    %284 = vector.extract_strided_slice %275 {offsets = [0, 64], sizes = [2, 32], strides = [1, 1]} : vector<2x128xf32> to vector<2x32xf32>
    %285 = math.tanh %284 : vector<2x32xf32>
    %286 = arith.mulf %282, %254 : vector<2x32xf32>
    %287 = arith.mulf %281, %285 : vector<2x32xf32>
    %288 = arith.addf %286, %287 : vector<2x32xf32>
    %289 = math.tanh %288 : vector<2x32xf32>
    %290 = arith.mulf %283, %289 : vector<2x32xf32>
    %cst_61 = arith.constant dense<0.000000e+00> : vector<2x128xf32>
    %291 = tpu.matmul %273, %35, %cst_61 {dimension_numbers = #tpu.dot_dimension_numbers<[1], [0], [0], [1], [0, 0, 1, 1], [], []>} : vector<2x32xf32>, vector<32x128xf32>, vector<2x128xf32> -> vector<2x128xf32>
    %292 = arith.addf %59, %291 : vector<2x128xf32>
    %293 = arith.negf %292 : vector<2x128xf32>
    %294 = math.exp %293 : vector<2x128xf32>
    %cst_62 = arith.constant 1.000000e+00 : f32
    %295 = vector.broadcast %cst_62 : f32 to vector<2x128xf32>
    %296 = arith.addf %295, %294 : vector<2x128xf32>
    %297 = arith.divf %295, %296 : vector<2x128xf32>
    %298 = vector.extract_strided_slice %297 {offsets = [0, 0], sizes = [2, 32], strides = [1, 1]} : vector<2x128xf32> to vector<2x32xf32>
    %299 = vector.extract_strided_slice %297 {offsets = [0, 32], sizes = [2, 32], strides = [1, 1]} : vector<2x128xf32> to vector<2x32xf32>
    %300 = vector.extract_strided_slice %297 {offsets = [0, 96], sizes = [2, 32], strides = [1, 1]} : vector<2x128xf32> to vector<2x32xf32>
    %301 = vector.extract_strided_slice %292 {offsets = [0, 64], sizes = [2, 32], strides = [1, 1]} : vector<2x128xf32> to vector<2x32xf32>
    %302 = math.tanh %301 : vector<2x32xf32>
    %303 = arith.mulf %299, %271 : vector<2x32xf32>
    %304 = arith.mulf %298, %302 : vector<2x32xf32>
    %305 = arith.addf %303, %304 : vector<2x32xf32>
    %306 = math.tanh %305 : vector<2x32xf32>
    %307 = arith.mulf %300, %306 : vector<2x32xf32>
    %cst_63 = arith.constant dense<0.000000e+00> : vector<2x128xf32>
    %308 = tpu.matmul %290, %33, %cst_63 {dimension_numbers = #tpu.dot_dimension_numbers<[1], [0], [0], [1], [0, 0, 1, 1], [], []>} : vector<2x32xf32>, vector<32x128xf32>, vector<2x128xf32> -> vector<2x128xf32>
    %309 = arith.addf %57, %308 : vector<2x128xf32>
    %310 = arith.negf %309 : vector<2x128xf32>
    %311 = math.exp %310 : vector<2x128xf32>
    %cst_64 = arith.constant 1.000000e+00 : f32
    %312 = vector.broadcast %cst_64 : f32 to vector<2x128xf32>
    %313 = arith.addf %312, %311 : vector<2x128xf32>
    %314 = arith.divf %312, %313 : vector<2x128xf32>
    %315 = vector.extract_strided_slice %314 {offsets = [0, 0], sizes = [2, 32], strides = [1, 1]} : vector<2x128xf32> to vector<2x32xf32>
    %316 = vector.extract_strided_slice %314 {offsets = [0, 32], sizes = [2, 32], strides = [1, 1]} : vector<2x128xf32> to vector<2x32xf32>
    %317 = vector.extract_strided_slice %314 {offsets = [0, 96], sizes = [2, 32], strides = [1, 1]} : vector<2x128xf32> to vector<2x32xf32>
    %318 = vector.extract_strided_slice %309 {offsets = [0, 64], sizes = [2, 32], strides = [1, 1]} : vector<2x128xf32> to vector<2x32xf32>
    %319 = math.tanh %318 : vector<2x32xf32>
    %320 = arith.mulf %316, %288 : vector<2x32xf32>
    %321 = arith.mulf %315, %319 : vector<2x32xf32>
    %322 = arith.addf %320, %321 : vector<2x32xf32>
    %323 = math.tanh %322 : vector<2x32xf32>
    %324 = arith.mulf %317, %323 : vector<2x32xf32>
    %cst_65 = arith.constant dense<0.000000e+00> : vector<2x128xf32>
    %325 = tpu.matmul %307, %35, %cst_65 {dimension_numbers = #tpu.dot_dimension_numbers<[1], [0], [0], [1], [0, 0, 1, 1], [], []>} : vector<2x32xf32>, vector<32x128xf32>, vector<2x128xf32> -> vector<2x128xf32>
    %326 = arith.addf %58, %325 : vector<2x128xf32>
    %327 = arith.negf %326 : vector<2x128xf32>
    %328 = math.exp %327 : vector<2x128xf32>
    %cst_66 = arith.constant 1.000000e+00 : f32
    %329 = vector.broadcast %cst_66 : f32 to vector<2x128xf32>
    %330 = arith.addf %329, %328 : vector<2x128xf32>
    %331 = arith.divf %329, %330 : vector<2x128xf32>
    %332 = vector.extract_strided_slice %331 {offsets = [0, 0], sizes = [2, 32], strides = [1, 1]} : vector<2x128xf32> to vector<2x32xf32>
    %333 = vector.extract_strided_slice %331 {offsets = [0, 32], sizes = [2, 32], strides = [1, 1]} : vector<2x128xf32> to vector<2x32xf32>
    %334 = vector.extract_strided_slice %331 {offsets = [0, 96], sizes = [2, 32], strides = [1, 1]} : vector<2x128xf32> to vector<2x32xf32>
    %335 = vector.extract_strided_slice %326 {offsets = [0, 64], sizes = [2, 32], strides = [1, 1]} : vector<2x128xf32> to vector<2x32xf32>
    %336 = math.tanh %335 : vector<2x32xf32>
    %337 = arith.mulf %333, %305 : vector<2x32xf32>
    %338 = arith.mulf %332, %336 : vector<2x32xf32>
    %339 = arith.addf %337, %338 : vector<2x32xf32>
    %340 = math.tanh %339 : vector<2x32xf32>
    %341 = arith.mulf %334, %340 : vector<2x32xf32>
    %c0_67 = arith.constant 0 : index
    %c0_68 = arith.constant 0 : index
    %c0_69 = arith.constant 0 : index
    %342 = vector.load %arg10[%c0_67, %c0_68, %c0_69] : memref<2x32x128xf32, #tpu.memory_space<vmem>>, vector<1x32x128xf32>
    %343 = vector.shape_cast %342 : vector<1x32x128xf32> to vector<32x128xf32>
    %c1_70 = arith.constant 1 : index
    %c0_71 = arith.constant 0 : index
    %c0_72 = arith.constant 0 : index
    %344 = vector.load %arg10[%c1_70, %c0_71, %c0_72] : memref<2x32x128xf32, #tpu.memory_space<vmem>>, vector<1x32x128xf32>
    %345 = vector.shape_cast %344 : vector<1x32x128xf32> to vector<32x128xf32>
    %c0_73 = arith.constant 0 : index
    %c0_74 = arith.constant 0 : index
    %c0_75 = arith.constant 0 : index
    %346 = vector.load %arg8[%c0_73, %c0_74, %c0_75] : memref<2x32x128xf32, #tpu.memory_space<vmem>>, vector<1x32x128xf32>
    %347 = vector.shape_cast %346 : vector<1x32x128xf32> to vector<32x128xf32>
    %cst_76 = arith.constant dense<0.000000e+00> : vector<2x128xf32>
    %348 = tpu.matmul %86, %347, %cst_76 {dimension_numbers = #tpu.dot_dimension_numbers<[1], [0], [0], [1], [0, 0, 1, 1], [], []>} : vector<2x32xf32>, vector<32x128xf32>, vector<2x128xf32> -> vector<2x128xf32>
    %c0_77 = arith.constant 0 : index
    %c0_78 = arith.constant 0 : index
    %c0_79 = arith.constant 0 : index
    %349 = vector.load %arg9[%c0_77, %c0_78, %c0_79] : memref<2x32x128xf32, #tpu.memory_space<vmem>>, vector<1x32x128xf32>
    %350 = vector.shape_cast %349 : vector<1x32x128xf32> to vector<32x128xf32>
    %cst_80 = arith.constant dense<0.000000e+00> : vector<2x128xf32>
    %351 = tpu.matmul %341, %350, %cst_80 {dimension_numbers = #tpu.dot_dimension_numbers<[1], [0], [0], [1], [0, 0, 1, 1], [], []>} : vector<2x32xf32>, vector<32x128xf32>, vector<2x128xf32> -> vector<2x128xf32>
    %352 = arith.addf %348, %351 : vector<2x128xf32>
    %c0_81 = arith.constant 0 : index
    %c0_82 = arith.constant 0 : index
    %c0_83 = arith.constant 0 : index
    %353 = vector.load %arg11[%c0_81, %c0_82, %c0_83] : memref<2x1x128xf32, #tpu.memory_space<vmem>>, vector<1x1x128xf32>
    %354 = vector.shape_cast %353 : vector<1x1x128xf32> to vector<1x128xf32>
    %355 = vector.broadcast %354 : vector<1x128xf32> to vector<2x128xf32>
    %356 = arith.addf %352, %355 : vector<2x128xf32>
    %c0_84 = arith.constant 0 : index
    %c0_85 = arith.constant 0 : index
    %c0_86 = arith.constant 0 : index
    %357 = vector.load %arg8[%c0_84, %c0_85, %c0_86] : memref<2x32x128xf32, #tpu.memory_space<vmem>>, vector<1x32x128xf32>
    %358 = vector.shape_cast %357 : vector<1x32x128xf32> to vector<32x128xf32>
    %cst_87 = arith.constant dense<0.000000e+00> : vector<2x128xf32>
    %359 = tpu.matmul %120, %358, %cst_87 {dimension_numbers = #tpu.dot_dimension_numbers<[1], [0], [0], [1], [0, 0, 1, 1], [], []>} : vector<2x32xf32>, vector<32x128xf32>, vector<2x128xf32> -> vector<2x128xf32>
    %c0_88 = arith.constant 0 : index
    %c0_89 = arith.constant 0 : index
    %c0_90 = arith.constant 0 : index
    %360 = vector.load %arg9[%c0_88, %c0_89, %c0_90] : memref<2x32x128xf32, #tpu.memory_space<vmem>>, vector<1x32x128xf32>
    %361 = vector.shape_cast %360 : vector<1x32x128xf32> to vector<32x128xf32>
    %cst_91 = arith.constant dense<0.000000e+00> : vector<2x128xf32>
    %362 = tpu.matmul %307, %361, %cst_91 {dimension_numbers = #tpu.dot_dimension_numbers<[1], [0], [0], [1], [0, 0, 1, 1], [], []>} : vector<2x32xf32>, vector<32x128xf32>, vector<2x128xf32> -> vector<2x128xf32>
    %363 = arith.addf %359, %362 : vector<2x128xf32>
    %c0_92 = arith.constant 0 : index
    %c0_93 = arith.constant 0 : index
    %c0_94 = arith.constant 0 : index
    %364 = vector.load %arg11[%c0_92, %c0_93, %c0_94] : memref<2x1x128xf32, #tpu.memory_space<vmem>>, vector<1x1x128xf32>
    %365 = vector.shape_cast %364 : vector<1x1x128xf32> to vector<1x128xf32>
    %366 = vector.broadcast %365 : vector<1x128xf32> to vector<2x128xf32>
    %367 = arith.addf %363, %366 : vector<2x128xf32>
    %c0_95 = arith.constant 0 : index
    %c0_96 = arith.constant 0 : index
    %c0_97 = arith.constant 0 : index
    %368 = vector.load %arg8[%c0_95, %c0_96, %c0_97] : memref<2x32x128xf32, #tpu.memory_space<vmem>>, vector<1x32x128xf32>
    %369 = vector.shape_cast %368 : vector<1x32x128xf32> to vector<32x128xf32>
    %cst_98 = arith.constant dense<0.000000e+00> : vector<2x128xf32>
    %370 = tpu.matmul %154, %369, %cst_98 {dimension_numbers = #tpu.dot_dimension_numbers<[1], [0], [0], [1], [0, 0, 1, 1], [], []>} : vector<2x32xf32>, vector<32x128xf32>, vector<2x128xf32> -> vector<2x128xf32>
    %c0_99 = arith.constant 0 : index
    %c0_100 = arith.constant 0 : index
    %c0_101 = arith.constant 0 : index
    %371 = vector.load %arg9[%c0_99, %c0_100, %c0_101] : memref<2x32x128xf32, #tpu.memory_space<vmem>>, vector<1x32x128xf32>
    %372 = vector.shape_cast %371 : vector<1x32x128xf32> to vector<32x128xf32>
    %cst_102 = arith.constant dense<0.000000e+00> : vector<2x128xf32>
    %373 = tpu.matmul %273, %372, %cst_102 {dimension_numbers = #tpu.dot_dimension_numbers<[1], [0], [0], [1], [0, 0, 1, 1], [], []>} : vector<2x32xf32>, vector<32x128xf32>, vector<2x128xf32> -> vector<2x128xf32>
    %374 = arith.addf %370, %373 : vector<2x128xf32>
    %c0_103 = arith.constant 0 : index
    %c0_104 = arith.constant 0 : index
    %c0_105 = arith.constant 0 : index
    %375 = vector.load %arg11[%c0_103, %c0_104, %c0_105] : memref<2x1x128xf32, #tpu.memory_space<vmem>>, vector<1x1x128xf32>
    %376 = vector.shape_cast %375 : vector<1x1x128xf32> to vector<1x128xf32>
    %377 = vector.broadcast %376 : vector<1x128xf32> to vector<2x128xf32>
    %378 = arith.addf %374, %377 : vector<2x128xf32>
    %c0_106 = arith.constant 0 : index
    %c0_107 = arith.constant 0 : index
    %c0_108 = arith.constant 0 : index
    %379 = vector.load %arg8[%c0_106, %c0_107, %c0_108] : memref<2x32x128xf32, #tpu.memory_space<vmem>>, vector<1x32x128xf32>
    %380 = vector.shape_cast %379 : vector<1x32x128xf32> to vector<32x128xf32>
    %cst_109 = arith.constant dense<0.000000e+00> : vector<2x128xf32>
    %381 = tpu.matmul %188, %380, %cst_109 {dimension_numbers = #tpu.dot_dimension_numbers<[1], [0], [0], [1], [0, 0, 1, 1], [], []>} : vector<2x32xf32>, vector<32x128xf32>, vector<2x128xf32> -> vector<2x128xf32>
    %c0_110 = arith.constant 0 : index
    %c0_111 = arith.constant 0 : index
    %c0_112 = arith.constant 0 : index
    %382 = vector.load %arg9[%c0_110, %c0_111, %c0_112] : memref<2x32x128xf32, #tpu.memory_space<vmem>>, vector<1x32x128xf32>
    %383 = vector.shape_cast %382 : vector<1x32x128xf32> to vector<32x128xf32>
    %cst_113 = arith.constant dense<0.000000e+00> : vector<2x128xf32>
    %384 = tpu.matmul %239, %383, %cst_113 {dimension_numbers = #tpu.dot_dimension_numbers<[1], [0], [0], [1], [0, 0, 1, 1], [], []>} : vector<2x32xf32>, vector<32x128xf32>, vector<2x128xf32> -> vector<2x128xf32>
    %385 = arith.addf %381, %384 : vector<2x128xf32>
    %c0_114 = arith.constant 0 : index
    %c0_115 = arith.constant 0 : index
    %c0_116 = arith.constant 0 : index
    %386 = vector.load %arg11[%c0_114, %c0_115, %c0_116] : memref<2x1x128xf32, #tpu.memory_space<vmem>>, vector<1x1x128xf32>
    %387 = vector.shape_cast %386 : vector<1x1x128xf32> to vector<1x128xf32>
    %388 = vector.broadcast %387 : vector<1x128xf32> to vector<2x128xf32>
    %389 = arith.addf %385, %388 : vector<2x128xf32>
    %c0_117 = arith.constant 0 : index
    %c0_118 = arith.constant 0 : index
    %c0_119 = arith.constant 0 : index
    %390 = vector.load %arg8[%c0_117, %c0_118, %c0_119] : memref<2x32x128xf32, #tpu.memory_space<vmem>>, vector<1x32x128xf32>
    %391 = vector.shape_cast %390 : vector<1x32x128xf32> to vector<32x128xf32>
    %cst_120 = arith.constant dense<0.000000e+00> : vector<2x128xf32>
    %392 = tpu.matmul %222, %391, %cst_120 {dimension_numbers = #tpu.dot_dimension_numbers<[1], [0], [0], [1], [0, 0, 1, 1], [], []>} : vector<2x32xf32>, vector<32x128xf32>, vector<2x128xf32> -> vector<2x128xf32>
    %c0_121 = arith.constant 0 : index
    %c0_122 = arith.constant 0 : index
    %c0_123 = arith.constant 0 : index
    %393 = vector.load %arg9[%c0_121, %c0_122, %c0_123] : memref<2x32x128xf32, #tpu.memory_space<vmem>>, vector<1x32x128xf32>
    %394 = vector.shape_cast %393 : vector<1x32x128xf32> to vector<32x128xf32>
    %cst_124 = arith.constant dense<0.000000e+00> : vector<2x128xf32>
    %395 = tpu.matmul %205, %394, %cst_124 {dimension_numbers = #tpu.dot_dimension_numbers<[1], [0], [0], [1], [0, 0, 1, 1], [], []>} : vector<2x32xf32>, vector<32x128xf32>, vector<2x128xf32> -> vector<2x128xf32>
    %396 = arith.addf %392, %395 : vector<2x128xf32>
    %c0_125 = arith.constant 0 : index
    %c0_126 = arith.constant 0 : index
    %c0_127 = arith.constant 0 : index
    %397 = vector.load %arg11[%c0_125, %c0_126, %c0_127] : memref<2x1x128xf32, #tpu.memory_space<vmem>>, vector<1x1x128xf32>
    %398 = vector.shape_cast %397 : vector<1x1x128xf32> to vector<1x128xf32>
    %399 = vector.broadcast %398 : vector<1x128xf32> to vector<2x128xf32>
    %400 = arith.addf %396, %399 : vector<2x128xf32>
    %c0_128 = arith.constant 0 : index
    %c0_129 = arith.constant 0 : index
    %c0_130 = arith.constant 0 : index
    %401 = vector.load %arg8[%c0_128, %c0_129, %c0_130] : memref<2x32x128xf32, #tpu.memory_space<vmem>>, vector<1x32x128xf32>
    %402 = vector.shape_cast %401 : vector<1x32x128xf32> to vector<32x128xf32>
    %cst_131 = arith.constant dense<0.000000e+00> : vector<2x128xf32>
    %403 = tpu.matmul %256, %402, %cst_131 {dimension_numbers = #tpu.dot_dimension_numbers<[1], [0], [0], [1], [0, 0, 1, 1], [], []>} : vector<2x32xf32>, vector<32x128xf32>, vector<2x128xf32> -> vector<2x128xf32>
    %c0_132 = arith.constant 0 : index
    %c0_133 = arith.constant 0 : index
    %c0_134 = arith.constant 0 : index
    %404 = vector.load %arg9[%c0_132, %c0_133, %c0_134] : memref<2x32x128xf32, #tpu.memory_space<vmem>>, vector<1x32x128xf32>
    %405 = vector.shape_cast %404 : vector<1x32x128xf32> to vector<32x128xf32>
    %cst_135 = arith.constant dense<0.000000e+00> : vector<2x128xf32>
    %406 = tpu.matmul %171, %405, %cst_135 {dimension_numbers = #tpu.dot_dimension_numbers<[1], [0], [0], [1], [0, 0, 1, 1], [], []>} : vector<2x32xf32>, vector<32x128xf32>, vector<2x128xf32> -> vector<2x128xf32>
    %407 = arith.addf %403, %406 : vector<2x128xf32>
    %c0_136 = arith.constant 0 : index
    %c0_137 = arith.constant 0 : index
    %c0_138 = arith.constant 0 : index
    %408 = vector.load %arg11[%c0_136, %c0_137, %c0_138] : memref<2x1x128xf32, #tpu.memory_space<vmem>>, vector<1x1x128xf32>
    %409 = vector.shape_cast %408 : vector<1x1x128xf32> to vector<1x128xf32>
    %410 = vector.broadcast %409 : vector<1x128xf32> to vector<2x128xf32>
    %411 = arith.addf %407, %410 : vector<2x128xf32>
    %c0_139 = arith.constant 0 : index
    %c0_140 = arith.constant 0 : index
    %c0_141 = arith.constant 0 : index
    %412 = vector.load %arg8[%c0_139, %c0_140, %c0_141] : memref<2x32x128xf32, #tpu.memory_space<vmem>>, vector<1x32x128xf32>
    %413 = vector.shape_cast %412 : vector<1x32x128xf32> to vector<32x128xf32>
    %cst_142 = arith.constant dense<0.000000e+00> : vector<2x128xf32>
    %414 = tpu.matmul %290, %413, %cst_142 {dimension_numbers = #tpu.dot_dimension_numbers<[1], [0], [0], [1], [0, 0, 1, 1], [], []>} : vector<2x32xf32>, vector<32x128xf32>, vector<2x128xf32> -> vector<2x128xf32>
    %c0_143 = arith.constant 0 : index
    %c0_144 = arith.constant 0 : index
    %c0_145 = arith.constant 0 : index
    %415 = vector.load %arg9[%c0_143, %c0_144, %c0_145] : memref<2x32x128xf32, #tpu.memory_space<vmem>>, vector<1x32x128xf32>
    %416 = vector.shape_cast %415 : vector<1x32x128xf32> to vector<32x128xf32>
    %cst_146 = arith.constant dense<0.000000e+00> : vector<2x128xf32>
    %417 = tpu.matmul %137, %416, %cst_146 {dimension_numbers = #tpu.dot_dimension_numbers<[1], [0], [0], [1], [0, 0, 1, 1], [], []>} : vector<2x32xf32>, vector<32x128xf32>, vector<2x128xf32> -> vector<2x128xf32>
    %418 = arith.addf %414, %417 : vector<2x128xf32>
    %c0_147 = arith.constant 0 : index
    %c0_148 = arith.constant 0 : index
    %c0_149 = arith.constant 0 : index
    %419 = vector.load %arg11[%c0_147, %c0_148, %c0_149] : memref<2x1x128xf32, #tpu.memory_space<vmem>>, vector<1x1x128xf32>
    %420 = vector.shape_cast %419 : vector<1x1x128xf32> to vector<1x128xf32>
    %421 = vector.broadcast %420 : vector<1x128xf32> to vector<2x128xf32>
    %422 = arith.addf %418, %421 : vector<2x128xf32>
    %c0_150 = arith.constant 0 : index
    %c0_151 = arith.constant 0 : index
    %c0_152 = arith.constant 0 : index
    %423 = vector.load %arg8[%c0_150, %c0_151, %c0_152] : memref<2x32x128xf32, #tpu.memory_space<vmem>>, vector<1x32x128xf32>
    %424 = vector.shape_cast %423 : vector<1x32x128xf32> to vector<32x128xf32>
    %cst_153 = arith.constant dense<0.000000e+00> : vector<2x128xf32>
    %425 = tpu.matmul %324, %424, %cst_153 {dimension_numbers = #tpu.dot_dimension_numbers<[1], [0], [0], [1], [0, 0, 1, 1], [], []>} : vector<2x32xf32>, vector<32x128xf32>, vector<2x128xf32> -> vector<2x128xf32>
    %c0_154 = arith.constant 0 : index
    %c0_155 = arith.constant 0 : index
    %c0_156 = arith.constant 0 : index
    %426 = vector.load %arg9[%c0_154, %c0_155, %c0_156] : memref<2x32x128xf32, #tpu.memory_space<vmem>>, vector<1x32x128xf32>
    %427 = vector.shape_cast %426 : vector<1x32x128xf32> to vector<32x128xf32>
    %cst_157 = arith.constant dense<0.000000e+00> : vector<2x128xf32>
    %428 = tpu.matmul %103, %427, %cst_157 {dimension_numbers = #tpu.dot_dimension_numbers<[1], [0], [0], [1], [0, 0, 1, 1], [], []>} : vector<2x32xf32>, vector<32x128xf32>, vector<2x128xf32> -> vector<2x128xf32>
    %429 = arith.addf %425, %428 : vector<2x128xf32>
    %c0_158 = arith.constant 0 : index
    %c0_159 = arith.constant 0 : index
    %c0_160 = arith.constant 0 : index
    %430 = vector.load %arg11[%c0_158, %c0_159, %c0_160] : memref<2x1x128xf32, #tpu.memory_space<vmem>>, vector<1x1x128xf32>
    %431 = vector.shape_cast %430 : vector<1x1x128xf32> to vector<1x128xf32>
    %432 = vector.broadcast %431 : vector<1x128xf32> to vector<2x128xf32>
    %433 = arith.addf %429, %432 : vector<2x128xf32>
    %c1_161 = arith.constant 1 : index
    %c0_162 = arith.constant 0 : index
    %c0_163 = arith.constant 0 : index
    %434 = vector.load %arg8[%c1_161, %c0_162, %c0_163] : memref<2x32x128xf32, #tpu.memory_space<vmem>>, vector<1x32x128xf32>
    %435 = vector.shape_cast %434 : vector<1x32x128xf32> to vector<32x128xf32>
    %cst_164 = arith.constant dense<0.000000e+00> : vector<2x128xf32>
    %436 = tpu.matmul %86, %435, %cst_164 {dimension_numbers = #tpu.dot_dimension_numbers<[1], [0], [0], [1], [0, 0, 1, 1], [], []>} : vector<2x32xf32>, vector<32x128xf32>, vector<2x128xf32> -> vector<2x128xf32>
    %c1_165 = arith.constant 1 : index
    %c0_166 = arith.constant 0 : index
    %c0_167 = arith.constant 0 : index
    %437 = vector.load %arg9[%c1_165, %c0_166, %c0_167] : memref<2x32x128xf32, #tpu.memory_space<vmem>>, vector<1x32x128xf32>
    %438 = vector.shape_cast %437 : vector<1x32x128xf32> to vector<32x128xf32>
    %cst_168 = arith.constant dense<0.000000e+00> : vector<2x128xf32>
    %439 = tpu.matmul %341, %438, %cst_168 {dimension_numbers = #tpu.dot_dimension_numbers<[1], [0], [0], [1], [0, 0, 1, 1], [], []>} : vector<2x32xf32>, vector<32x128xf32>, vector<2x128xf32> -> vector<2x128xf32>
    %440 = arith.addf %436, %439 : vector<2x128xf32>
    %c1_169 = arith.constant 1 : index
    %c0_170 = arith.constant 0 : index
    %c0_171 = arith.constant 0 : index
    %441 = vector.load %arg11[%c1_169, %c0_170, %c0_171] : memref<2x1x128xf32, #tpu.memory_space<vmem>>, vector<1x1x128xf32>
    %442 = vector.shape_cast %441 : vector<1x1x128xf32> to vector<1x128xf32>
    %443 = vector.broadcast %442 : vector<1x128xf32> to vector<2x128xf32>
    %444 = arith.addf %440, %443 : vector<2x128xf32>
    %c1_172 = arith.constant 1 : index
    %c0_173 = arith.constant 0 : index
    %c0_174 = arith.constant 0 : index
    %445 = vector.load %arg8[%c1_172, %c0_173, %c0_174] : memref<2x32x128xf32, #tpu.memory_space<vmem>>, vector<1x32x128xf32>
    %446 = vector.shape_cast %445 : vector<1x32x128xf32> to vector<32x128xf32>
    %cst_175 = arith.constant dense<0.000000e+00> : vector<2x128xf32>
    %447 = tpu.matmul %120, %446, %cst_175 {dimension_numbers = #tpu.dot_dimension_numbers<[1], [0], [0], [1], [0, 0, 1, 1], [], []>} : vector<2x32xf32>, vector<32x128xf32>, vector<2x128xf32> -> vector<2x128xf32>
    %c1_176 = arith.constant 1 : index
    %c0_177 = arith.constant 0 : index
    %c0_178 = arith.constant 0 : index
    %448 = vector.load %arg9[%c1_176, %c0_177, %c0_178] : memref<2x32x128xf32, #tpu.memory_space<vmem>>, vector<1x32x128xf32>
    %449 = vector.shape_cast %448 : vector<1x32x128xf32> to vector<32x128xf32>
    %cst_179 = arith.constant dense<0.000000e+00> : vector<2x128xf32>
    %450 = tpu.matmul %307, %449, %cst_179 {dimension_numbers = #tpu.dot_dimension_numbers<[1], [0], [0], [1], [0, 0, 1, 1], [], []>} : vector<2x32xf32>, vector<32x128xf32>, vector<2x128xf32> -> vector<2x128xf32>
    %451 = arith.addf %447, %450 : vector<2x128xf32>
    %c1_180 = arith.constant 1 : index
    %c0_181 = arith.constant 0 : index
    %c0_182 = arith.constant 0 : index
    %452 = vector.load %arg11[%c1_180, %c0_181, %c0_182] : memref<2x1x128xf32, #tpu.memory_space<vmem>>, vector<1x1x128xf32>
    %453 = vector.shape_cast %452 : vector<1x1x128xf32> to vector<1x128xf32>
    %454 = vector.broadcast %453 : vector<1x128xf32> to vector<2x128xf32>
    %455 = arith.addf %451, %454 : vector<2x128xf32>
    %c1_183 = arith.constant 1 : index
    %c0_184 = arith.constant 0 : index
    %c0_185 = arith.constant 0 : index
    %456 = vector.load %arg8[%c1_183, %c0_184, %c0_185] : memref<2x32x128xf32, #tpu.memory_space<vmem>>, vector<1x32x128xf32>
    %457 = vector.shape_cast %456 : vector<1x32x128xf32> to vector<32x128xf32>
    %cst_186 = arith.constant dense<0.000000e+00> : vector<2x128xf32>
    %458 = tpu.matmul %154, %457, %cst_186 {dimension_numbers = #tpu.dot_dimension_numbers<[1], [0], [0], [1], [0, 0, 1, 1], [], []>} : vector<2x32xf32>, vector<32x128xf32>, vector<2x128xf32> -> vector<2x128xf32>
    %c1_187 = arith.constant 1 : index
    %c0_188 = arith.constant 0 : index
    %c0_189 = arith.constant 0 : index
    %459 = vector.load %arg9[%c1_187, %c0_188, %c0_189] : memref<2x32x128xf32, #tpu.memory_space<vmem>>, vector<1x32x128xf32>
    %460 = vector.shape_cast %459 : vector<1x32x128xf32> to vector<32x128xf32>
    %cst_190 = arith.constant dense<0.000000e+00> : vector<2x128xf32>
    %461 = tpu.matmul %273, %460, %cst_190 {dimension_numbers = #tpu.dot_dimension_numbers<[1], [0], [0], [1], [0, 0, 1, 1], [], []>} : vector<2x32xf32>, vector<32x128xf32>, vector<2x128xf32> -> vector<2x128xf32>
    %462 = arith.addf %458, %461 : vector<2x128xf32>
    %c1_191 = arith.constant 1 : index
    %c0_192 = arith.constant 0 : index
    %c0_193 = arith.constant 0 : index
    %463 = vector.load %arg11[%c1_191, %c0_192, %c0_193] : memref<2x1x128xf32, #tpu.memory_space<vmem>>, vector<1x1x128xf32>
    %464 = vector.shape_cast %463 : vector<1x1x128xf32> to vector<1x128xf32>
    %465 = vector.broadcast %464 : vector<1x128xf32> to vector<2x128xf32>
    %466 = arith.addf %462, %465 : vector<2x128xf32>
    %c1_194 = arith.constant 1 : index
    %c0_195 = arith.constant 0 : index
    %c0_196 = arith.constant 0 : index
    %467 = vector.load %arg8[%c1_194, %c0_195, %c0_196] : memref<2x32x128xf32, #tpu.memory_space<vmem>>, vector<1x32x128xf32>
    %468 = vector.shape_cast %467 : vector<1x32x128xf32> to vector<32x128xf32>
    %cst_197 = arith.constant dense<0.000000e+00> : vector<2x128xf32>
    %469 = tpu.matmul %188, %468, %cst_197 {dimension_numbers = #tpu.dot_dimension_numbers<[1], [0], [0], [1], [0, 0, 1, 1], [], []>} : vector<2x32xf32>, vector<32x128xf32>, vector<2x128xf32> -> vector<2x128xf32>
    %c1_198 = arith.constant 1 : index
    %c0_199 = arith.constant 0 : index
    %c0_200 = arith.constant 0 : index
    %470 = vector.load %arg9[%c1_198, %c0_199, %c0_200] : memref<2x32x128xf32, #tpu.memory_space<vmem>>, vector<1x32x128xf32>
    %471 = vector.shape_cast %470 : vector<1x32x128xf32> to vector<32x128xf32>
    %cst_201 = arith.constant dense<0.000000e+00> : vector<2x128xf32>
    %472 = tpu.matmul %239, %471, %cst_201 {dimension_numbers = #tpu.dot_dimension_numbers<[1], [0], [0], [1], [0, 0, 1, 1], [], []>} : vector<2x32xf32>, vector<32x128xf32>, vector<2x128xf32> -> vector<2x128xf32>
    %473 = arith.addf %469, %472 : vector<2x128xf32>
    %c1_202 = arith.constant 1 : index
    %c0_203 = arith.constant 0 : index
    %c0_204 = arith.constant 0 : index
    %474 = vector.load %arg11[%c1_202, %c0_203, %c0_204] : memref<2x1x128xf32, #tpu.memory_space<vmem>>, vector<1x1x128xf32>
    %475 = vector.shape_cast %474 : vector<1x1x128xf32> to vector<1x128xf32>
    %476 = vector.broadcast %475 : vector<1x128xf32> to vector<2x128xf32>
    %477 = arith.addf %473, %476 : vector<2x128xf32>
    %c1_205 = arith.constant 1 : index
    %c0_206 = arith.constant 0 : index
    %c0_207 = arith.constant 0 : index
    %478 = vector.load %arg8[%c1_205, %c0_206, %c0_207] : memref<2x32x128xf32, #tpu.memory_space<vmem>>, vector<1x32x128xf32>
    %479 = vector.shape_cast %478 : vector<1x32x128xf32> to vector<32x128xf32>
    %cst_208 = arith.constant dense<0.000000e+00> : vector<2x128xf32>
    %480 = tpu.matmul %222, %479, %cst_208 {dimension_numbers = #tpu.dot_dimension_numbers<[1], [0], [0], [1], [0, 0, 1, 1], [], []>} : vector<2x32xf32>, vector<32x128xf32>, vector<2x128xf32> -> vector<2x128xf32>
    %c1_209 = arith.constant 1 : index
    %c0_210 = arith.constant 0 : index
    %c0_211 = arith.constant 0 : index
    %481 = vector.load %arg9[%c1_209, %c0_210, %c0_211] : memref<2x32x128xf32, #tpu.memory_space<vmem>>, vector<1x32x128xf32>
    %482 = vector.shape_cast %481 : vector<1x32x128xf32> to vector<32x128xf32>
    %cst_212 = arith.constant dense<0.000000e+00> : vector<2x128xf32>
    %483 = tpu.matmul %205, %482, %cst_212 {dimension_numbers = #tpu.dot_dimension_numbers<[1], [0], [0], [1], [0, 0, 1, 1], [], []>} : vector<2x32xf32>, vector<32x128xf32>, vector<2x128xf32> -> vector<2x128xf32>
    %484 = arith.addf %480, %483 : vector<2x128xf32>
    %c1_213 = arith.constant 1 : index
    %c0_214 = arith.constant 0 : index
    %c0_215 = arith.constant 0 : index
    %485 = vector.load %arg11[%c1_213, %c0_214, %c0_215] : memref<2x1x128xf32, #tpu.memory_space<vmem>>, vector<1x1x128xf32>
    %486 = vector.shape_cast %485 : vector<1x1x128xf32> to vector<1x128xf32>
    %487 = vector.broadcast %486 : vector<1x128xf32> to vector<2x128xf32>
    %488 = arith.addf %484, %487 : vector<2x128xf32>
    %c1_216 = arith.constant 1 : index
    %c0_217 = arith.constant 0 : index
    %c0_218 = arith.constant 0 : index
    %489 = vector.load %arg8[%c1_216, %c0_217, %c0_218] : memref<2x32x128xf32, #tpu.memory_space<vmem>>, vector<1x32x128xf32>
    %490 = vector.shape_cast %489 : vector<1x32x128xf32> to vector<32x128xf32>
    %cst_219 = arith.constant dense<0.000000e+00> : vector<2x128xf32>
    %491 = tpu.matmul %256, %490, %cst_219 {dimension_numbers = #tpu.dot_dimension_numbers<[1], [0], [0], [1], [0, 0, 1, 1], [], []>} : vector<2x32xf32>, vector<32x128xf32>, vector<2x128xf32> -> vector<2x128xf32>
    %c1_220 = arith.constant 1 : index
    %c0_221 = arith.constant 0 : index
    %c0_222 = arith.constant 0 : index
    %492 = vector.load %arg9[%c1_220, %c0_221, %c0_222] : memref<2x32x128xf32, #tpu.memory_space<vmem>>, vector<1x32x128xf32>
    %493 = vector.shape_cast %492 : vector<1x32x128xf32> to vector<32x128xf32>
    %cst_223 = arith.constant dense<0.000000e+00> : vector<2x128xf32>
    %494 = tpu.matmul %171, %493, %cst_223 {dimension_numbers = #tpu.dot_dimension_numbers<[1], [0], [0], [1], [0, 0, 1, 1], [], []>} : vector<2x32xf32>, vector<32x128xf32>, vector<2x128xf32> -> vector<2x128xf32>
    %495 = arith.addf %491, %494 : vector<2x128xf32>
    %c1_224 = arith.constant 1 : index
    %c0_225 = arith.constant 0 : index
    %c0_226 = arith.constant 0 : index
    %496 = vector.load %arg11[%c1_224, %c0_225, %c0_226] : memref<2x1x128xf32, #tpu.memory_space<vmem>>, vector<1x1x128xf32>
    %497 = vector.shape_cast %496 : vector<1x1x128xf32> to vector<1x128xf32>
    %498 = vector.broadcast %497 : vector<1x128xf32> to vector<2x128xf32>
    %499 = arith.addf %495, %498 : vector<2x128xf32>
    %c1_227 = arith.constant 1 : index
    %c0_228 = arith.constant 0 : index
    %c0_229 = arith.constant 0 : index
    %500 = vector.load %arg8[%c1_227, %c0_228, %c0_229] : memref<2x32x128xf32, #tpu.memory_space<vmem>>, vector<1x32x128xf32>
    %501 = vector.shape_cast %500 : vector<1x32x128xf32> to vector<32x128xf32>
    %cst_230 = arith.constant dense<0.000000e+00> : vector<2x128xf32>
    %502 = tpu.matmul %290, %501, %cst_230 {dimension_numbers = #tpu.dot_dimension_numbers<[1], [0], [0], [1], [0, 0, 1, 1], [], []>} : vector<2x32xf32>, vector<32x128xf32>, vector<2x128xf32> -> vector<2x128xf32>
    %c1_231 = arith.constant 1 : index
    %c0_232 = arith.constant 0 : index
    %c0_233 = arith.constant 0 : index
    %503 = vector.load %arg9[%c1_231, %c0_232, %c0_233] : memref<2x32x128xf32, #tpu.memory_space<vmem>>, vector<1x32x128xf32>
    %504 = vector.shape_cast %503 : vector<1x32x128xf32> to vector<32x128xf32>
    %cst_234 = arith.constant dense<0.000000e+00> : vector<2x128xf32>
    %505 = tpu.matmul %137, %504, %cst_234 {dimension_numbers = #tpu.dot_dimension_numbers<[1], [0], [0], [1], [0, 0, 1, 1], [], []>} : vector<2x32xf32>, vector<32x128xf32>, vector<2x128xf32> -> vector<2x128xf32>
    %506 = arith.addf %502, %505 : vector<2x128xf32>
    %c1_235 = arith.constant 1 : index
    %c0_236 = arith.constant 0 : index
    %c0_237 = arith.constant 0 : index
    %507 = vector.load %arg11[%c1_235, %c0_236, %c0_237] : memref<2x1x128xf32, #tpu.memory_space<vmem>>, vector<1x1x128xf32>
    %508 = vector.shape_cast %507 : vector<1x1x128xf32> to vector<1x128xf32>
    %509 = vector.broadcast %508 : vector<1x128xf32> to vector<2x128xf32>
    %510 = arith.addf %506, %509 : vector<2x128xf32>
    %c1_238 = arith.constant 1 : index
    %c0_239 = arith.constant 0 : index
    %c0_240 = arith.constant 0 : index
    %511 = vector.load %arg8[%c1_238, %c0_239, %c0_240] : memref<2x32x128xf32, #tpu.memory_space<vmem>>, vector<1x32x128xf32>
    %512 = vector.shape_cast %511 : vector<1x32x128xf32> to vector<32x128xf32>
    %cst_241 = arith.constant dense<0.000000e+00> : vector<2x128xf32>
    %513 = tpu.matmul %324, %512, %cst_241 {dimension_numbers = #tpu.dot_dimension_numbers<[1], [0], [0], [1], [0, 0, 1, 1], [], []>} : vector<2x32xf32>, vector<32x128xf32>, vector<2x128xf32> -> vector<2x128xf32>
    %c1_242 = arith.constant 1 : index
    %c0_243 = arith.constant 0 : index
    %c0_244 = arith.constant 0 : index
    %514 = vector.load %arg9[%c1_242, %c0_243, %c0_244] : memref<2x32x128xf32, #tpu.memory_space<vmem>>, vector<1x32x128xf32>
    %515 = vector.shape_cast %514 : vector<1x32x128xf32> to vector<32x128xf32>
    %cst_245 = arith.constant dense<0.000000e+00> : vector<2x128xf32>
    %516 = tpu.matmul %103, %515, %cst_245 {dimension_numbers = #tpu.dot_dimension_numbers<[1], [0], [0], [1], [0, 0, 1, 1], [], []>} : vector<2x32xf32>, vector<32x128xf32>, vector<2x128xf32> -> vector<2x128xf32>
    %517 = arith.addf %513, %516 : vector<2x128xf32>
    %c1_246 = arith.constant 1 : index
    %c0_247 = arith.constant 0 : index
    %c0_248 = arith.constant 0 : index
    %518 = vector.load %arg11[%c1_246, %c0_247, %c0_248] : memref<2x1x128xf32, #tpu.memory_space<vmem>>, vector<1x1x128xf32>
    %519 = vector.shape_cast %518 : vector<1x1x128xf32> to vector<1x128xf32>
    %520 = vector.broadcast %519 : vector<1x128xf32> to vector<2x128xf32>
    %521 = arith.addf %517, %520 : vector<2x128xf32>
    %cst_249 = arith.constant 0.000000e+00 : f32
    %522 = vector.broadcast %cst_249 : f32 to vector<2x32xf32>
    %cst_250 = arith.constant 0.000000e+00 : f32
    %523 = vector.broadcast %cst_250 : f32 to vector<2x32xf32>
    %cst_251 = arith.constant 0.000000e+00 : f32
    %524 = vector.broadcast %cst_251 : f32 to vector<2x32xf32>
    %cst_252 = arith.constant 0.000000e+00 : f32
    %525 = vector.broadcast %cst_252 : f32 to vector<2x32xf32>
    %cst_253 = arith.constant dense<0.000000e+00> : vector<2x128xf32>
    %526 = tpu.matmul %522, %343, %cst_253 {dimension_numbers = #tpu.dot_dimension_numbers<[1], [0], [0], [1], [0, 0, 1, 1], [], []>} : vector<2x32xf32>, vector<32x128xf32>, vector<2x128xf32> -> vector<2x128xf32>
    %527 = arith.addf %356, %526 : vector<2x128xf32>
    %528 = arith.negf %527 : vector<2x128xf32>
    %529 = math.exp %528 : vector<2x128xf32>
    %cst_254 = arith.constant 1.000000e+00 : f32
    %530 = vector.broadcast %cst_254 : f32 to vector<2x128xf32>
    %531 = arith.addf %530, %529 : vector<2x128xf32>
    %532 = arith.divf %530, %531 : vector<2x128xf32>
    %533 = vector.extract_strided_slice %532 {offsets = [0, 0], sizes = [2, 32], strides = [1, 1]} : vector<2x128xf32> to vector<2x32xf32>
    %534 = vector.extract_strided_slice %532 {offsets = [0, 32], sizes = [2, 32], strides = [1, 1]} : vector<2x128xf32> to vector<2x32xf32>
    %535 = vector.extract_strided_slice %532 {offsets = [0, 96], sizes = [2, 32], strides = [1, 1]} : vector<2x128xf32> to vector<2x32xf32>
    %536 = vector.extract_strided_slice %527 {offsets = [0, 64], sizes = [2, 32], strides = [1, 1]} : vector<2x128xf32> to vector<2x32xf32>
    %537 = math.tanh %536 : vector<2x32xf32>
    %538 = arith.mulf %534, %524 : vector<2x32xf32>
    %539 = arith.mulf %533, %537 : vector<2x32xf32>
    %540 = arith.addf %538, %539 : vector<2x32xf32>
    %541 = math.tanh %540 : vector<2x32xf32>
    %542 = arith.mulf %535, %541 : vector<2x32xf32>
    %cst_255 = arith.constant dense<0.000000e+00> : vector<2x128xf32>
    %543 = tpu.matmul %523, %345, %cst_255 {dimension_numbers = #tpu.dot_dimension_numbers<[1], [0], [0], [1], [0, 0, 1, 1], [], []>} : vector<2x32xf32>, vector<32x128xf32>, vector<2x128xf32> -> vector<2x128xf32>
    %544 = arith.addf %521, %543 : vector<2x128xf32>
    %545 = arith.negf %544 : vector<2x128xf32>
    %546 = math.exp %545 : vector<2x128xf32>
    %cst_256 = arith.constant 1.000000e+00 : f32
    %547 = vector.broadcast %cst_256 : f32 to vector<2x128xf32>
    %548 = arith.addf %547, %546 : vector<2x128xf32>
    %549 = arith.divf %547, %548 : vector<2x128xf32>
    %550 = vector.extract_strided_slice %549 {offsets = [0, 0], sizes = [2, 32], strides = [1, 1]} : vector<2x128xf32> to vector<2x32xf32>
    %551 = vector.extract_strided_slice %549 {offsets = [0, 32], sizes = [2, 32], strides = [1, 1]} : vector<2x128xf32> to vector<2x32xf32>
    %552 = vector.extract_strided_slice %549 {offsets = [0, 96], sizes = [2, 32], strides = [1, 1]} : vector<2x128xf32> to vector<2x32xf32>
    %553 = vector.extract_strided_slice %544 {offsets = [0, 64], sizes = [2, 32], strides = [1, 1]} : vector<2x128xf32> to vector<2x32xf32>
    %554 = math.tanh %553 : vector<2x32xf32>
    %555 = arith.mulf %551, %525 : vector<2x32xf32>
    %556 = arith.mulf %550, %554 : vector<2x32xf32>
    %557 = arith.addf %555, %556 : vector<2x32xf32>
    %558 = math.tanh %557 : vector<2x32xf32>
    %559 = arith.mulf %552, %558 : vector<2x32xf32>
    %cst_257 = arith.constant dense<0.000000e+00> : vector<2x128xf32>
    %560 = tpu.matmul %542, %343, %cst_257 {dimension_numbers = #tpu.dot_dimension_numbers<[1], [0], [0], [1], [0, 0, 1, 1], [], []>} : vector<2x32xf32>, vector<32x128xf32>, vector<2x128xf32> -> vector<2x128xf32>
    %561 = arith.addf %367, %560 : vector<2x128xf32>
    %562 = arith.negf %561 : vector<2x128xf32>
    %563 = math.exp %562 : vector<2x128xf32>
    %cst_258 = arith.constant 1.000000e+00 : f32
    %564 = vector.broadcast %cst_258 : f32 to vector<2x128xf32>
    %565 = arith.addf %564, %563 : vector<2x128xf32>
    %566 = arith.divf %564, %565 : vector<2x128xf32>
    %567 = vector.extract_strided_slice %566 {offsets = [0, 0], sizes = [2, 32], strides = [1, 1]} : vector<2x128xf32> to vector<2x32xf32>
    %568 = vector.extract_strided_slice %566 {offsets = [0, 32], sizes = [2, 32], strides = [1, 1]} : vector<2x128xf32> to vector<2x32xf32>
    %569 = vector.extract_strided_slice %566 {offsets = [0, 96], sizes = [2, 32], strides = [1, 1]} : vector<2x128xf32> to vector<2x32xf32>
    %570 = vector.extract_strided_slice %561 {offsets = [0, 64], sizes = [2, 32], strides = [1, 1]} : vector<2x128xf32> to vector<2x32xf32>
    %571 = math.tanh %570 : vector<2x32xf32>
    %572 = arith.mulf %568, %540 : vector<2x32xf32>
    %573 = arith.mulf %567, %571 : vector<2x32xf32>
    %574 = arith.addf %572, %573 : vector<2x32xf32>
    %575 = math.tanh %574 : vector<2x32xf32>
    %576 = arith.mulf %569, %575 : vector<2x32xf32>
    %cst_259 = arith.constant dense<0.000000e+00> : vector<2x128xf32>
    %577 = tpu.matmul %559, %345, %cst_259 {dimension_numbers = #tpu.dot_dimension_numbers<[1], [0], [0], [1], [0, 0, 1, 1], [], []>} : vector<2x32xf32>, vector<32x128xf32>, vector<2x128xf32> -> vector<2x128xf32>
    %578 = arith.addf %510, %577 : vector<2x128xf32>
    %579 = arith.negf %578 : vector<2x128xf32>
    %580 = math.exp %579 : vector<2x128xf32>
    %cst_260 = arith.constant 1.000000e+00 : f32
    %581 = vector.broadcast %cst_260 : f32 to vector<2x128xf32>
    %582 = arith.addf %581, %580 : vector<2x128xf32>
    %583 = arith.divf %581, %582 : vector<2x128xf32>
    %584 = vector.extract_strided_slice %583 {offsets = [0, 0], sizes = [2, 32], strides = [1, 1]} : vector<2x128xf32> to vector<2x32xf32>
    %585 = vector.extract_strided_slice %583 {offsets = [0, 32], sizes = [2, 32], strides = [1, 1]} : vector<2x128xf32> to vector<2x32xf32>
    %586 = vector.extract_strided_slice %583 {offsets = [0, 96], sizes = [2, 32], strides = [1, 1]} : vector<2x128xf32> to vector<2x32xf32>
    %587 = vector.extract_strided_slice %578 {offsets = [0, 64], sizes = [2, 32], strides = [1, 1]} : vector<2x128xf32> to vector<2x32xf32>
    %588 = math.tanh %587 : vector<2x32xf32>
    %589 = arith.mulf %585, %557 : vector<2x32xf32>
    %590 = arith.mulf %584, %588 : vector<2x32xf32>
    %591 = arith.addf %589, %590 : vector<2x32xf32>
    %592 = math.tanh %591 : vector<2x32xf32>
    %593 = arith.mulf %586, %592 : vector<2x32xf32>
    %cst_261 = arith.constant dense<0.000000e+00> : vector<2x128xf32>
    %594 = tpu.matmul %576, %343, %cst_261 {dimension_numbers = #tpu.dot_dimension_numbers<[1], [0], [0], [1], [0, 0, 1, 1], [], []>} : vector<2x32xf32>, vector<32x128xf32>, vector<2x128xf32> -> vector<2x128xf32>
    %595 = arith.addf %378, %594 : vector<2x128xf32>
    %596 = arith.negf %595 : vector<2x128xf32>
    %597 = math.exp %596 : vector<2x128xf32>
    %cst_262 = arith.constant 1.000000e+00 : f32
    %598 = vector.broadcast %cst_262 : f32 to vector<2x128xf32>
    %599 = arith.addf %598, %597 : vector<2x128xf32>
    %600 = arith.divf %598, %599 : vector<2x128xf32>
    %601 = vector.extract_strided_slice %600 {offsets = [0, 0], sizes = [2, 32], strides = [1, 1]} : vector<2x128xf32> to vector<2x32xf32>
    %602 = vector.extract_strided_slice %600 {offsets = [0, 32], sizes = [2, 32], strides = [1, 1]} : vector<2x128xf32> to vector<2x32xf32>
    %603 = vector.extract_strided_slice %600 {offsets = [0, 96], sizes = [2, 32], strides = [1, 1]} : vector<2x128xf32> to vector<2x32xf32>
    %604 = vector.extract_strided_slice %595 {offsets = [0, 64], sizes = [2, 32], strides = [1, 1]} : vector<2x128xf32> to vector<2x32xf32>
    %605 = math.tanh %604 : vector<2x32xf32>
    %606 = arith.mulf %602, %574 : vector<2x32xf32>
    %607 = arith.mulf %601, %605 : vector<2x32xf32>
    %608 = arith.addf %606, %607 : vector<2x32xf32>
    %609 = math.tanh %608 : vector<2x32xf32>
    %610 = arith.mulf %603, %609 : vector<2x32xf32>
    %cst_263 = arith.constant dense<0.000000e+00> : vector<2x128xf32>
    %611 = tpu.matmul %593, %345, %cst_263 {dimension_numbers = #tpu.dot_dimension_numbers<[1], [0], [0], [1], [0, 0, 1, 1], [], []>} : vector<2x32xf32>, vector<32x128xf32>, vector<2x128xf32> -> vector<2x128xf32>
    %612 = arith.addf %499, %611 : vector<2x128xf32>
    %613 = arith.negf %612 : vector<2x128xf32>
    %614 = math.exp %613 : vector<2x128xf32>
    %cst_264 = arith.constant 1.000000e+00 : f32
    %615 = vector.broadcast %cst_264 : f32 to vector<2x128xf32>
    %616 = arith.addf %615, %614 : vector<2x128xf32>
    %617 = arith.divf %615, %616 : vector<2x128xf32>
    %618 = vector.extract_strided_slice %617 {offsets = [0, 0], sizes = [2, 32], strides = [1, 1]} : vector<2x128xf32> to vector<2x32xf32>
    %619 = vector.extract_strided_slice %617 {offsets = [0, 32], sizes = [2, 32], strides = [1, 1]} : vector<2x128xf32> to vector<2x32xf32>
    %620 = vector.extract_strided_slice %617 {offsets = [0, 96], sizes = [2, 32], strides = [1, 1]} : vector<2x128xf32> to vector<2x32xf32>
    %621 = vector.extract_strided_slice %612 {offsets = [0, 64], sizes = [2, 32], strides = [1, 1]} : vector<2x128xf32> to vector<2x32xf32>
    %622 = math.tanh %621 : vector<2x32xf32>
    %623 = arith.mulf %619, %591 : vector<2x32xf32>
    %624 = arith.mulf %618, %622 : vector<2x32xf32>
    %625 = arith.addf %623, %624 : vector<2x32xf32>
    %626 = math.tanh %625 : vector<2x32xf32>
    %627 = arith.mulf %620, %626 : vector<2x32xf32>
    %cst_265 = arith.constant dense<0.000000e+00> : vector<2x128xf32>
    %628 = tpu.matmul %610, %343, %cst_265 {dimension_numbers = #tpu.dot_dimension_numbers<[1], [0], [0], [1], [0, 0, 1, 1], [], []>} : vector<2x32xf32>, vector<32x128xf32>, vector<2x128xf32> -> vector<2x128xf32>
    %629 = arith.addf %389, %628 : vector<2x128xf32>
    %630 = arith.negf %629 : vector<2x128xf32>
    %631 = math.exp %630 : vector<2x128xf32>
    %cst_266 = arith.constant 1.000000e+00 : f32
    %632 = vector.broadcast %cst_266 : f32 to vector<2x128xf32>
    %633 = arith.addf %632, %631 : vector<2x128xf32>
    %634 = arith.divf %632, %633 : vector<2x128xf32>
    %635 = vector.extract_strided_slice %634 {offsets = [0, 0], sizes = [2, 32], strides = [1, 1]} : vector<2x128xf32> to vector<2x32xf32>
    %636 = vector.extract_strided_slice %634 {offsets = [0, 32], sizes = [2, 32], strides = [1, 1]} : vector<2x128xf32> to vector<2x32xf32>
    %637 = vector.extract_strided_slice %634 {offsets = [0, 96], sizes = [2, 32], strides = [1, 1]} : vector<2x128xf32> to vector<2x32xf32>
    %638 = vector.extract_strided_slice %629 {offsets = [0, 64], sizes = [2, 32], strides = [1, 1]} : vector<2x128xf32> to vector<2x32xf32>
    %639 = math.tanh %638 : vector<2x32xf32>
    %640 = arith.mulf %636, %608 : vector<2x32xf32>
    %641 = arith.mulf %635, %639 : vector<2x32xf32>
    %642 = arith.addf %640, %641 : vector<2x32xf32>
    %643 = math.tanh %642 : vector<2x32xf32>
    %644 = arith.mulf %637, %643 : vector<2x32xf32>
    %cst_267 = arith.constant dense<0.000000e+00> : vector<2x128xf32>
    %645 = tpu.matmul %627, %345, %cst_267 {dimension_numbers = #tpu.dot_dimension_numbers<[1], [0], [0], [1], [0, 0, 1, 1], [], []>} : vector<2x32xf32>, vector<32x128xf32>, vector<2x128xf32> -> vector<2x128xf32>
    %646 = arith.addf %488, %645 : vector<2x128xf32>
    %647 = arith.negf %646 : vector<2x128xf32>
    %648 = math.exp %647 : vector<2x128xf32>
    %cst_268 = arith.constant 1.000000e+00 : f32
    %649 = vector.broadcast %cst_268 : f32 to vector<2x128xf32>
    %650 = arith.addf %649, %648 : vector<2x128xf32>
    %651 = arith.divf %649, %650 : vector<2x128xf32>
    %652 = vector.extract_strided_slice %651 {offsets = [0, 0], sizes = [2, 32], strides = [1, 1]} : vector<2x128xf32> to vector<2x32xf32>
    %653 = vector.extract_strided_slice %651 {offsets = [0, 32], sizes = [2, 32], strides = [1, 1]} : vector<2x128xf32> to vector<2x32xf32>
    %654 = vector.extract_strided_slice %651 {offsets = [0, 96], sizes = [2, 32], strides = [1, 1]} : vector<2x128xf32> to vector<2x32xf32>
    %655 = vector.extract_strided_slice %646 {offsets = [0, 64], sizes = [2, 32], strides = [1, 1]} : vector<2x128xf32> to vector<2x32xf32>
    %656 = math.tanh %655 : vector<2x32xf32>
    %657 = arith.mulf %653, %625 : vector<2x32xf32>
    %658 = arith.mulf %652, %656 : vector<2x32xf32>
    %659 = arith.addf %657, %658 : vector<2x32xf32>
    %660 = math.tanh %659 : vector<2x32xf32>
    %661 = arith.mulf %654, %660 : vector<2x32xf32>
    %cst_269 = arith.constant dense<0.000000e+00> : vector<2x128xf32>
    %662 = tpu.matmul %644, %343, %cst_269 {dimension_numbers = #tpu.dot_dimension_numbers<[1], [0], [0], [1], [0, 0, 1, 1], [], []>} : vector<2x32xf32>, vector<32x128xf32>, vector<2x128xf32> -> vector<2x128xf32>
    %663 = arith.addf %400, %662 : vector<2x128xf32>
    %664 = arith.negf %663 : vector<2x128xf32>
    %665 = math.exp %664 : vector<2x128xf32>
    %cst_270 = arith.constant 1.000000e+00 : f32
    %666 = vector.broadcast %cst_270 : f32 to vector<2x128xf32>
    %667 = arith.addf %666, %665 : vector<2x128xf32>
    %668 = arith.divf %666, %667 : vector<2x128xf32>
    %669 = vector.extract_strided_slice %668 {offsets = [0, 0], sizes = [2, 32], strides = [1, 1]} : vector<2x128xf32> to vector<2x32xf32>
    %670 = vector.extract_strided_slice %668 {offsets = [0, 32], sizes = [2, 32], strides = [1, 1]} : vector<2x128xf32> to vector<2x32xf32>
    %671 = vector.extract_strided_slice %668 {offsets = [0, 96], sizes = [2, 32], strides = [1, 1]} : vector<2x128xf32> to vector<2x32xf32>
    %672 = vector.extract_strided_slice %663 {offsets = [0, 64], sizes = [2, 32], strides = [1, 1]} : vector<2x128xf32> to vector<2x32xf32>
    %673 = math.tanh %672 : vector<2x32xf32>
    %674 = arith.mulf %670, %642 : vector<2x32xf32>
    %675 = arith.mulf %669, %673 : vector<2x32xf32>
    %676 = arith.addf %674, %675 : vector<2x32xf32>
    %677 = math.tanh %676 : vector<2x32xf32>
    %678 = arith.mulf %671, %677 : vector<2x32xf32>
    %cst_271 = arith.constant dense<0.000000e+00> : vector<2x128xf32>
    %679 = tpu.matmul %661, %345, %cst_271 {dimension_numbers = #tpu.dot_dimension_numbers<[1], [0], [0], [1], [0, 0, 1, 1], [], []>} : vector<2x32xf32>, vector<32x128xf32>, vector<2x128xf32> -> vector<2x128xf32>
    %680 = arith.addf %477, %679 : vector<2x128xf32>
    %681 = arith.negf %680 : vector<2x128xf32>
    %682 = math.exp %681 : vector<2x128xf32>
    %cst_272 = arith.constant 1.000000e+00 : f32
    %683 = vector.broadcast %cst_272 : f32 to vector<2x128xf32>
    %684 = arith.addf %683, %682 : vector<2x128xf32>
    %685 = arith.divf %683, %684 : vector<2x128xf32>
    %686 = vector.extract_strided_slice %685 {offsets = [0, 0], sizes = [2, 32], strides = [1, 1]} : vector<2x128xf32> to vector<2x32xf32>
    %687 = vector.extract_strided_slice %685 {offsets = [0, 32], sizes = [2, 32], strides = [1, 1]} : vector<2x128xf32> to vector<2x32xf32>
    %688 = vector.extract_strided_slice %685 {offsets = [0, 96], sizes = [2, 32], strides = [1, 1]} : vector<2x128xf32> to vector<2x32xf32>
    %689 = vector.extract_strided_slice %680 {offsets = [0, 64], sizes = [2, 32], strides = [1, 1]} : vector<2x128xf32> to vector<2x32xf32>
    %690 = math.tanh %689 : vector<2x32xf32>
    %691 = arith.mulf %687, %659 : vector<2x32xf32>
    %692 = arith.mulf %686, %690 : vector<2x32xf32>
    %693 = arith.addf %691, %692 : vector<2x32xf32>
    %694 = math.tanh %693 : vector<2x32xf32>
    %695 = arith.mulf %688, %694 : vector<2x32xf32>
    %cst_273 = arith.constant dense<0.000000e+00> : vector<2x128xf32>
    %696 = tpu.matmul %678, %343, %cst_273 {dimension_numbers = #tpu.dot_dimension_numbers<[1], [0], [0], [1], [0, 0, 1, 1], [], []>} : vector<2x32xf32>, vector<32x128xf32>, vector<2x128xf32> -> vector<2x128xf32>
    %697 = arith.addf %411, %696 : vector<2x128xf32>
    %698 = arith.negf %697 : vector<2x128xf32>
    %699 = math.exp %698 : vector<2x128xf32>
    %cst_274 = arith.constant 1.000000e+00 : f32
    %700 = vector.broadcast %cst_274 : f32 to vector<2x128xf32>
    %701 = arith.addf %700, %699 : vector<2x128xf32>
    %702 = arith.divf %700, %701 : vector<2x128xf32>
    %703 = vector.extract_strided_slice %702 {offsets = [0, 0], sizes = [2, 32], strides = [1, 1]} : vector<2x128xf32> to vector<2x32xf32>
    %704 = vector.extract_strided_slice %702 {offsets = [0, 32], sizes = [2, 32], strides = [1, 1]} : vector<2x128xf32> to vector<2x32xf32>
    %705 = vector.extract_strided_slice %702 {offsets = [0, 96], sizes = [2, 32], strides = [1, 1]} : vector<2x128xf32> to vector<2x32xf32>
    %706 = vector.extract_strided_slice %697 {offsets = [0, 64], sizes = [2, 32], strides = [1, 1]} : vector<2x128xf32> to vector<2x32xf32>
    %707 = math.tanh %706 : vector<2x32xf32>
    %708 = arith.mulf %704, %676 : vector<2x32xf32>
    %709 = arith.mulf %703, %707 : vector<2x32xf32>
    %710 = arith.addf %708, %709 : vector<2x32xf32>
    %711 = math.tanh %710 : vector<2x32xf32>
    %712 = arith.mulf %705, %711 : vector<2x32xf32>
    %cst_275 = arith.constant dense<0.000000e+00> : vector<2x128xf32>
    %713 = tpu.matmul %695, %345, %cst_275 {dimension_numbers = #tpu.dot_dimension_numbers<[1], [0], [0], [1], [0, 0, 1, 1], [], []>} : vector<2x32xf32>, vector<32x128xf32>, vector<2x128xf32> -> vector<2x128xf32>
    %714 = arith.addf %466, %713 : vector<2x128xf32>
    %715 = arith.negf %714 : vector<2x128xf32>
    %716 = math.exp %715 : vector<2x128xf32>
    %cst_276 = arith.constant 1.000000e+00 : f32
    %717 = vector.broadcast %cst_276 : f32 to vector<2x128xf32>
    %718 = arith.addf %717, %716 : vector<2x128xf32>
    %719 = arith.divf %717, %718 : vector<2x128xf32>
    %720 = vector.extract_strided_slice %719 {offsets = [0, 0], sizes = [2, 32], strides = [1, 1]} : vector<2x128xf32> to vector<2x32xf32>
    %721 = vector.extract_strided_slice %719 {offsets = [0, 32], sizes = [2, 32], strides = [1, 1]} : vector<2x128xf32> to vector<2x32xf32>
    %722 = vector.extract_strided_slice %719 {offsets = [0, 96], sizes = [2, 32], strides = [1, 1]} : vector<2x128xf32> to vector<2x32xf32>
    %723 = vector.extract_strided_slice %714 {offsets = [0, 64], sizes = [2, 32], strides = [1, 1]} : vector<2x128xf32> to vector<2x32xf32>
    %724 = math.tanh %723 : vector<2x32xf32>
    %725 = arith.mulf %721, %693 : vector<2x32xf32>
    %726 = arith.mulf %720, %724 : vector<2x32xf32>
    %727 = arith.addf %725, %726 : vector<2x32xf32>
    %728 = math.tanh %727 : vector<2x32xf32>
    %729 = arith.mulf %722, %728 : vector<2x32xf32>
    %cst_277 = arith.constant dense<0.000000e+00> : vector<2x128xf32>
    %730 = tpu.matmul %712, %343, %cst_277 {dimension_numbers = #tpu.dot_dimension_numbers<[1], [0], [0], [1], [0, 0, 1, 1], [], []>} : vector<2x32xf32>, vector<32x128xf32>, vector<2x128xf32> -> vector<2x128xf32>
    %731 = arith.addf %422, %730 : vector<2x128xf32>
    %732 = arith.negf %731 : vector<2x128xf32>
    %733 = math.exp %732 : vector<2x128xf32>
    %cst_278 = arith.constant 1.000000e+00 : f32
    %734 = vector.broadcast %cst_278 : f32 to vector<2x128xf32>
    %735 = arith.addf %734, %733 : vector<2x128xf32>
    %736 = arith.divf %734, %735 : vector<2x128xf32>
    %737 = vector.extract_strided_slice %736 {offsets = [0, 0], sizes = [2, 32], strides = [1, 1]} : vector<2x128xf32> to vector<2x32xf32>
    %738 = vector.extract_strided_slice %736 {offsets = [0, 32], sizes = [2, 32], strides = [1, 1]} : vector<2x128xf32> to vector<2x32xf32>
    %739 = vector.extract_strided_slice %736 {offsets = [0, 96], sizes = [2, 32], strides = [1, 1]} : vector<2x128xf32> to vector<2x32xf32>
    %740 = vector.extract_strided_slice %731 {offsets = [0, 64], sizes = [2, 32], strides = [1, 1]} : vector<2x128xf32> to vector<2x32xf32>
    %741 = math.tanh %740 : vector<2x32xf32>
    %742 = arith.mulf %738, %710 : vector<2x32xf32>
    %743 = arith.mulf %737, %741 : vector<2x32xf32>
    %744 = arith.addf %742, %743 : vector<2x32xf32>
    %745 = math.tanh %744 : vector<2x32xf32>
    %746 = arith.mulf %739, %745 : vector<2x32xf32>
    %cst_279 = arith.constant dense<0.000000e+00> : vector<2x128xf32>
    %747 = tpu.matmul %729, %345, %cst_279 {dimension_numbers = #tpu.dot_dimension_numbers<[1], [0], [0], [1], [0, 0, 1, 1], [], []>} : vector<2x32xf32>, vector<32x128xf32>, vector<2x128xf32> -> vector<2x128xf32>
    %748 = arith.addf %455, %747 : vector<2x128xf32>
    %749 = arith.negf %748 : vector<2x128xf32>
    %750 = math.exp %749 : vector<2x128xf32>
    %cst_280 = arith.constant 1.000000e+00 : f32
    %751 = vector.broadcast %cst_280 : f32 to vector<2x128xf32>
    %752 = arith.addf %751, %750 : vector<2x128xf32>
    %753 = arith.divf %751, %752 : vector<2x128xf32>
    %754 = vector.extract_strided_slice %753 {offsets = [0, 0], sizes = [2, 32], strides = [1, 1]} : vector<2x128xf32> to vector<2x32xf32>
    %755 = vector.extract_strided_slice %753 {offsets = [0, 32], sizes = [2, 32], strides = [1, 1]} : vector<2x128xf32> to vector<2x32xf32>
    %756 = vector.extract_strided_slice %753 {offsets = [0, 96], sizes = [2, 32], strides = [1, 1]} : vector<2x128xf32> to vector<2x32xf32>
    %757 = vector.extract_strided_slice %748 {offsets = [0, 64], sizes = [2, 32], strides = [1, 1]} : vector<2x128xf32> to vector<2x32xf32>
    %758 = math.tanh %757 : vector<2x32xf32>
    %759 = arith.mulf %755, %727 : vector<2x32xf32>
    %760 = arith.mulf %754, %758 : vector<2x32xf32>
    %761 = arith.addf %759, %760 : vector<2x32xf32>
    %762 = math.tanh %761 : vector<2x32xf32>
    %763 = arith.mulf %756, %762 : vector<2x32xf32>
    %cst_281 = arith.constant dense<0.000000e+00> : vector<2x128xf32>
    %764 = tpu.matmul %746, %343, %cst_281 {dimension_numbers = #tpu.dot_dimension_numbers<[1], [0], [0], [1], [0, 0, 1, 1], [], []>} : vector<2x32xf32>, vector<32x128xf32>, vector<2x128xf32> -> vector<2x128xf32>
    %765 = arith.addf %433, %764 : vector<2x128xf32>
    %766 = arith.negf %765 : vector<2x128xf32>
    %767 = math.exp %766 : vector<2x128xf32>
    %cst_282 = arith.constant 1.000000e+00 : f32
    %768 = vector.broadcast %cst_282 : f32 to vector<2x128xf32>
    %769 = arith.addf %768, %767 : vector<2x128xf32>
    %770 = arith.divf %768, %769 : vector<2x128xf32>
    %771 = vector.extract_strided_slice %770 {offsets = [0, 0], sizes = [2, 32], strides = [1, 1]} : vector<2x128xf32> to vector<2x32xf32>
    %772 = vector.extract_strided_slice %770 {offsets = [0, 32], sizes = [2, 32], strides = [1, 1]} : vector<2x128xf32> to vector<2x32xf32>
    %773 = vector.extract_strided_slice %770 {offsets = [0, 96], sizes = [2, 32], strides = [1, 1]} : vector<2x128xf32> to vector<2x32xf32>
    %774 = vector.extract_strided_slice %765 {offsets = [0, 64], sizes = [2, 32], strides = [1, 1]} : vector<2x128xf32> to vector<2x32xf32>
    %775 = math.tanh %774 : vector<2x32xf32>
    %776 = arith.mulf %772, %744 : vector<2x32xf32>
    %777 = arith.mulf %771, %775 : vector<2x32xf32>
    %778 = arith.addf %776, %777 : vector<2x32xf32>
    %779 = math.tanh %778 : vector<2x32xf32>
    %780 = arith.mulf %773, %779 : vector<2x32xf32>
    %cst_283 = arith.constant dense<0.000000e+00> : vector<2x128xf32>
    %781 = tpu.matmul %763, %345, %cst_283 {dimension_numbers = #tpu.dot_dimension_numbers<[1], [0], [0], [1], [0, 0, 1, 1], [], []>} : vector<2x32xf32>, vector<32x128xf32>, vector<2x128xf32> -> vector<2x128xf32>
    %782 = arith.addf %444, %781 : vector<2x128xf32>
    %783 = arith.negf %782 : vector<2x128xf32>
    %784 = math.exp %783 : vector<2x128xf32>
    %cst_284 = arith.constant 1.000000e+00 : f32
    %785 = vector.broadcast %cst_284 : f32 to vector<2x128xf32>
    %786 = arith.addf %785, %784 : vector<2x128xf32>
    %787 = arith.divf %785, %786 : vector<2x128xf32>
    %788 = vector.extract_strided_slice %787 {offsets = [0, 0], sizes = [2, 32], strides = [1, 1]} : vector<2x128xf32> to vector<2x32xf32>
    %789 = vector.extract_strided_slice %787 {offsets = [0, 32], sizes = [2, 32], strides = [1, 1]} : vector<2x128xf32> to vector<2x32xf32>
    %790 = vector.extract_strided_slice %787 {offsets = [0, 96], sizes = [2, 32], strides = [1, 1]} : vector<2x128xf32> to vector<2x32xf32>
    %791 = vector.extract_strided_slice %782 {offsets = [0, 64], sizes = [2, 32], strides = [1, 1]} : vector<2x128xf32> to vector<2x32xf32>
    %792 = math.tanh %791 : vector<2x32xf32>
    %793 = arith.mulf %789, %761 : vector<2x32xf32>
    %794 = arith.mulf %788, %792 : vector<2x32xf32>
    %795 = arith.addf %793, %794 : vector<2x32xf32>
    %796 = math.tanh %795 : vector<2x32xf32>
    %797 = arith.mulf %790, %796 : vector<2x32xf32>
    %cst_285 = arith.constant 0.000000e+00 : f32
    %798 = vector.broadcast %cst_285 : f32 to vector<2x32xf32>
    %cst_286 = arith.constant 0.000000e+00 : f32
    %799 = vector.broadcast %cst_286 : f32 to vector<2x32xf32>
    %c0_287 = arith.constant 0 : index
    %c0_288 = arith.constant 0 : index
    %c0_289 = arith.constant 0 : index
    %800 = vector.load %arg12[%c0_287, %c0_288, %c0_289] : memref<16x32x32xf32, #tpu.memory_space<vmem>>, vector<1x32x32xf32>
    %801 = vector.shape_cast %800 : vector<1x32x32xf32> to vector<32x32xf32>
    %cst_290 = arith.constant dense<0.000000e+00> : vector<2x32xf32>
    %802 = tpu.matmul %542, %801, %cst_290 {dimension_numbers = #tpu.dot_dimension_numbers<[1], [0], [0], [1], [0, 0, 1, 1], [], []>} : vector<2x32xf32>, vector<32x32xf32>, vector<2x32xf32> -> vector<2x32xf32>
    %803 = arith.addf %798, %802 : vector<2x32xf32>
    %c8 = arith.constant 8 : index
    %c0_291 = arith.constant 0 : index
    %c0_292 = arith.constant 0 : index
    %804 = vector.load %arg12[%c8, %c0_291, %c0_292] : memref<16x32x32xf32, #tpu.memory_space<vmem>>, vector<1x32x32xf32>
    %805 = vector.shape_cast %804 : vector<1x32x32xf32> to vector<32x32xf32>
    %cst_293 = arith.constant dense<0.000000e+00> : vector<2x32xf32>
    %806 = tpu.matmul %797, %805, %cst_293 {dimension_numbers = #tpu.dot_dimension_numbers<[1], [0], [0], [1], [0, 0, 1, 1], [], []>} : vector<2x32xf32>, vector<32x32xf32>, vector<2x32xf32> -> vector<2x32xf32>
    %807 = arith.addf %799, %806 : vector<2x32xf32>
    %c1_294 = arith.constant 1 : index
    %c0_295 = arith.constant 0 : index
    %c0_296 = arith.constant 0 : index
    %808 = vector.load %arg12[%c1_294, %c0_295, %c0_296] : memref<16x32x32xf32, #tpu.memory_space<vmem>>, vector<1x32x32xf32>
    %809 = vector.shape_cast %808 : vector<1x32x32xf32> to vector<32x32xf32>
    %cst_297 = arith.constant dense<0.000000e+00> : vector<2x32xf32>
    %810 = tpu.matmul %576, %809, %cst_297 {dimension_numbers = #tpu.dot_dimension_numbers<[1], [0], [0], [1], [0, 0, 1, 1], [], []>} : vector<2x32xf32>, vector<32x32xf32>, vector<2x32xf32> -> vector<2x32xf32>
    %811 = arith.addf %803, %810 : vector<2x32xf32>
    %c9 = arith.constant 9 : index
    %c0_298 = arith.constant 0 : index
    %c0_299 = arith.constant 0 : index
    %812 = vector.load %arg12[%c9, %c0_298, %c0_299] : memref<16x32x32xf32, #tpu.memory_space<vmem>>, vector<1x32x32xf32>
    %813 = vector.shape_cast %812 : vector<1x32x32xf32> to vector<32x32xf32>
    %cst_300 = arith.constant dense<0.000000e+00> : vector<2x32xf32>
    %814 = tpu.matmul %763, %813, %cst_300 {dimension_numbers = #tpu.dot_dimension_numbers<[1], [0], [0], [1], [0, 0, 1, 1], [], []>} : vector<2x32xf32>, vector<32x32xf32>, vector<2x32xf32> -> vector<2x32xf32>
    %815 = arith.addf %807, %814 : vector<2x32xf32>
    %c2 = arith.constant 2 : index
    %c0_301 = arith.constant 0 : index
    %c0_302 = arith.constant 0 : index
    %816 = vector.load %arg12[%c2, %c0_301, %c0_302] : memref<16x32x32xf32, #tpu.memory_space<vmem>>, vector<1x32x32xf32>
    %817 = vector.shape_cast %816 : vector<1x32x32xf32> to vector<32x32xf32>
    %cst_303 = arith.constant dense<0.000000e+00> : vector<2x32xf32>
    %818 = tpu.matmul %610, %817, %cst_303 {dimension_numbers = #tpu.dot_dimension_numbers<[1], [0], [0], [1], [0, 0, 1, 1], [], []>} : vector<2x32xf32>, vector<32x32xf32>, vector<2x32xf32> -> vector<2x32xf32>
    %819 = arith.addf %811, %818 : vector<2x32xf32>
    %c10 = arith.constant 10 : index
    %c0_304 = arith.constant 0 : index
    %c0_305 = arith.constant 0 : index
    %820 = vector.load %arg12[%c10, %c0_304, %c0_305] : memref<16x32x32xf32, #tpu.memory_space<vmem>>, vector<1x32x32xf32>
    %821 = vector.shape_cast %820 : vector<1x32x32xf32> to vector<32x32xf32>
    %cst_306 = arith.constant dense<0.000000e+00> : vector<2x32xf32>
    %822 = tpu.matmul %729, %821, %cst_306 {dimension_numbers = #tpu.dot_dimension_numbers<[1], [0], [0], [1], [0, 0, 1, 1], [], []>} : vector<2x32xf32>, vector<32x32xf32>, vector<2x32xf32> -> vector<2x32xf32>
    %823 = arith.addf %815, %822 : vector<2x32xf32>
    %c3 = arith.constant 3 : index
    %c0_307 = arith.constant 0 : index
    %c0_308 = arith.constant 0 : index
    %824 = vector.load %arg12[%c3, %c0_307, %c0_308] : memref<16x32x32xf32, #tpu.memory_space<vmem>>, vector<1x32x32xf32>
    %825 = vector.shape_cast %824 : vector<1x32x32xf32> to vector<32x32xf32>
    %cst_309 = arith.constant dense<0.000000e+00> : vector<2x32xf32>
    %826 = tpu.matmul %644, %825, %cst_309 {dimension_numbers = #tpu.dot_dimension_numbers<[1], [0], [0], [1], [0, 0, 1, 1], [], []>} : vector<2x32xf32>, vector<32x32xf32>, vector<2x32xf32> -> vector<2x32xf32>
    %827 = arith.addf %819, %826 : vector<2x32xf32>
    %c11 = arith.constant 11 : index
    %c0_310 = arith.constant 0 : index
    %c0_311 = arith.constant 0 : index
    %828 = vector.load %arg12[%c11, %c0_310, %c0_311] : memref<16x32x32xf32, #tpu.memory_space<vmem>>, vector<1x32x32xf32>
    %829 = vector.shape_cast %828 : vector<1x32x32xf32> to vector<32x32xf32>
    %cst_312 = arith.constant dense<0.000000e+00> : vector<2x32xf32>
    %830 = tpu.matmul %695, %829, %cst_312 {dimension_numbers = #tpu.dot_dimension_numbers<[1], [0], [0], [1], [0, 0, 1, 1], [], []>} : vector<2x32xf32>, vector<32x32xf32>, vector<2x32xf32> -> vector<2x32xf32>
    %831 = arith.addf %823, %830 : vector<2x32xf32>
    %c4 = arith.constant 4 : index
    %c0_313 = arith.constant 0 : index
    %c0_314 = arith.constant 0 : index
    %832 = vector.load %arg12[%c4, %c0_313, %c0_314] : memref<16x32x32xf32, #tpu.memory_space<vmem>>, vector<1x32x32xf32>
    %833 = vector.shape_cast %832 : vector<1x32x32xf32> to vector<32x32xf32>
    %cst_315 = arith.constant dense<0.000000e+00> : vector<2x32xf32>
    %834 = tpu.matmul %678, %833, %cst_315 {dimension_numbers = #tpu.dot_dimension_numbers<[1], [0], [0], [1], [0, 0, 1, 1], [], []>} : vector<2x32xf32>, vector<32x32xf32>, vector<2x32xf32> -> vector<2x32xf32>
    %835 = arith.addf %827, %834 : vector<2x32xf32>
    %c12 = arith.constant 12 : index
    %c0_316 = arith.constant 0 : index
    %c0_317 = arith.constant 0 : index
    %836 = vector.load %arg12[%c12, %c0_316, %c0_317] : memref<16x32x32xf32, #tpu.memory_space<vmem>>, vector<1x32x32xf32>
    %837 = vector.shape_cast %836 : vector<1x32x32xf32> to vector<32x32xf32>
    %cst_318 = arith.constant dense<0.000000e+00> : vector<2x32xf32>
    %838 = tpu.matmul %661, %837, %cst_318 {dimension_numbers = #tpu.dot_dimension_numbers<[1], [0], [0], [1], [0, 0, 1, 1], [], []>} : vector<2x32xf32>, vector<32x32xf32>, vector<2x32xf32> -> vector<2x32xf32>
    %839 = arith.addf %831, %838 : vector<2x32xf32>
    %c5 = arith.constant 5 : index
    %c0_319 = arith.constant 0 : index
    %c0_320 = arith.constant 0 : index
    %840 = vector.load %arg12[%c5, %c0_319, %c0_320] : memref<16x32x32xf32, #tpu.memory_space<vmem>>, vector<1x32x32xf32>
    %841 = vector.shape_cast %840 : vector<1x32x32xf32> to vector<32x32xf32>
    %cst_321 = arith.constant dense<0.000000e+00> : vector<2x32xf32>
    %842 = tpu.matmul %712, %841, %cst_321 {dimension_numbers = #tpu.dot_dimension_numbers<[1], [0], [0], [1], [0, 0, 1, 1], [], []>} : vector<2x32xf32>, vector<32x32xf32>, vector<2x32xf32> -> vector<2x32xf32>
    %843 = arith.addf %835, %842 : vector<2x32xf32>
    %c13 = arith.constant 13 : index
    %c0_322 = arith.constant 0 : index
    %c0_323 = arith.constant 0 : index
    %844 = vector.load %arg12[%c13, %c0_322, %c0_323] : memref<16x32x32xf32, #tpu.memory_space<vmem>>, vector<1x32x32xf32>
    %845 = vector.shape_cast %844 : vector<1x32x32xf32> to vector<32x32xf32>
    %cst_324 = arith.constant dense<0.000000e+00> : vector<2x32xf32>
    %846 = tpu.matmul %627, %845, %cst_324 {dimension_numbers = #tpu.dot_dimension_numbers<[1], [0], [0], [1], [0, 0, 1, 1], [], []>} : vector<2x32xf32>, vector<32x32xf32>, vector<2x32xf32> -> vector<2x32xf32>
    %847 = arith.addf %839, %846 : vector<2x32xf32>
    %c6 = arith.constant 6 : index
    %c0_325 = arith.constant 0 : index
    %c0_326 = arith.constant 0 : index
    %848 = vector.load %arg12[%c6, %c0_325, %c0_326] : memref<16x32x32xf32, #tpu.memory_space<vmem>>, vector<1x32x32xf32>
    %849 = vector.shape_cast %848 : vector<1x32x32xf32> to vector<32x32xf32>
    %cst_327 = arith.constant dense<0.000000e+00> : vector<2x32xf32>
    %850 = tpu.matmul %746, %849, %cst_327 {dimension_numbers = #tpu.dot_dimension_numbers<[1], [0], [0], [1], [0, 0, 1, 1], [], []>} : vector<2x32xf32>, vector<32x32xf32>, vector<2x32xf32> -> vector<2x32xf32>
    %851 = arith.addf %843, %850 : vector<2x32xf32>
    %c14 = arith.constant 14 : index
    %c0_328 = arith.constant 0 : index
    %c0_329 = arith.constant 0 : index
    %852 = vector.load %arg12[%c14, %c0_328, %c0_329] : memref<16x32x32xf32, #tpu.memory_space<vmem>>, vector<1x32x32xf32>
    %853 = vector.shape_cast %852 : vector<1x32x32xf32> to vector<32x32xf32>
    %cst_330 = arith.constant dense<0.000000e+00> : vector<2x32xf32>
    %854 = tpu.matmul %593, %853, %cst_330 {dimension_numbers = #tpu.dot_dimension_numbers<[1], [0], [0], [1], [0, 0, 1, 1], [], []>} : vector<2x32xf32>, vector<32x32xf32>, vector<2x32xf32> -> vector<2x32xf32>
    %855 = arith.addf %847, %854 : vector<2x32xf32>
    %c7 = arith.constant 7 : index
    %c0_331 = arith.constant 0 : index
    %c0_332 = arith.constant 0 : index
    %856 = vector.load %arg12[%c7, %c0_331, %c0_332] : memref<16x32x32xf32, #tpu.memory_space<vmem>>, vector<1x32x32xf32>
    %857 = vector.shape_cast %856 : vector<1x32x32xf32> to vector<32x32xf32>
    %cst_333 = arith.constant dense<0.000000e+00> : vector<2x32xf32>
    %858 = tpu.matmul %780, %857, %cst_333 {dimension_numbers = #tpu.dot_dimension_numbers<[1], [0], [0], [1], [0, 0, 1, 1], [], []>} : vector<2x32xf32>, vector<32x32xf32>, vector<2x32xf32> -> vector<2x32xf32>
    %859 = arith.addf %851, %858 : vector<2x32xf32>
    %c15 = arith.constant 15 : index
    %c0_334 = arith.constant 0 : index
    %c0_335 = arith.constant 0 : index
    %860 = vector.load %arg12[%c15, %c0_334, %c0_335] : memref<16x32x32xf32, #tpu.memory_space<vmem>>, vector<1x32x32xf32>
    %861 = vector.shape_cast %860 : vector<1x32x32xf32> to vector<32x32xf32>
    %cst_336 = arith.constant dense<0.000000e+00> : vector<2x32xf32>
    %862 = tpu.matmul %559, %861, %cst_336 {dimension_numbers = #tpu.dot_dimension_numbers<[1], [0], [0], [1], [0, 0, 1, 1], [], []>} : vector<2x32xf32>, vector<32x32xf32>, vector<2x32xf32> -> vector<2x32xf32>
    %863 = arith.addf %855, %862 : vector<2x32xf32>
    %864 = arith.addf %859, %863 : vector<2x32xf32>
    %c0_337 = arith.constant 0 : index
    %c0_338 = arith.constant 0 : index
    %865 = vector.load %arg13[%c0_337, %c0_338] : memref<1x32xf32, #tpu.memory_space<vmem>>, vector<1x32xf32>
    %866 = vector.broadcast %865 : vector<1x32xf32> to vector<2x32xf32>
    %867 = arith.addf %864, %866 : vector<2x32xf32>
    %c0_339 = arith.constant 0 : index
    %c0_340 = arith.constant 0 : index
    %868 = vector.load %arg16[%c0_339, %c0_340] : memref<1x32xf32, #tpu.memory_space<vmem>>, vector<1x32xf32>
    %869 = vector.broadcast %868 : vector<1x32xf32> to vector<2x32xf32>
    %870 = arith.subf %867, %869 : vector<2x32xf32>
    %c0_341 = arith.constant 0 : index
    %c0_342 = arith.constant 0 : index
    %871 = vector.load %arg17[%c0_341, %c0_342] : memref<1x32xf32, #tpu.memory_space<vmem>>, vector<1x32xf32>
    %cst_343 = arith.constant 9.99999974E-6 : f32
    %872 = vector.broadcast %cst_343 : f32 to vector<1x32xf32>
    %873 = arith.addf %871, %872 : vector<1x32xf32>
    %874 = math.rsqrt %873 : vector<1x32xf32>
    %875 = vector.broadcast %874 : vector<1x32xf32> to vector<2x32xf32>
    %876 = arith.mulf %870, %875 : vector<2x32xf32>
    %c0_344 = arith.constant 0 : index
    %c0_345 = arith.constant 0 : index
    %877 = vector.load %arg14[%c0_344, %c0_345] : memref<1x32xf32, #tpu.memory_space<vmem>>, vector<1x32xf32>
    %878 = vector.broadcast %877 : vector<1x32xf32> to vector<2x32xf32>
    %879 = arith.mulf %876, %878 : vector<2x32xf32>
    %c0_346 = arith.constant 0 : index
    %c0_347 = arith.constant 0 : index
    %880 = vector.load %arg15[%c0_346, %c0_347] : memref<1x32xf32, #tpu.memory_space<vmem>>, vector<1x32xf32>
    %881 = vector.broadcast %880 : vector<1x32xf32> to vector<2x32xf32>
    %882 = arith.addf %879, %881 : vector<2x32xf32>
    %cst_348 = arith.constant 0.000000e+00 : f32
    %883 = vector.broadcast %cst_348 : f32 to vector<2x32xf32>
    %884 = arith.cmpf ogt, %882, %883 : vector<2x32xf32>
    %cst_349 = arith.constant 2.000000e-01 : f32
    %885 = vector.broadcast %cst_349 : f32 to vector<2x32xf32>
    %886 = arith.mulf %885, %882 : vector<2x32xf32>
    %887 = arith.select %884, %882, %886 : vector<2x32xi1>, vector<2x32xf32>
    %c0_350 = arith.constant 0 : index
    %c0_351 = arith.constant 0 : index
    %888 = vector.load %arg18[%c0_350, %c0_351] : memref<32x128xf32, #tpu.memory_space<vmem>>, vector<32x128xf32>
    %cst_352 = arith.constant dense<0.000000e+00> : vector<2x128xf32>
    %889 = tpu.matmul %887, %888, %cst_352 {dimension_numbers = #tpu.dot_dimension_numbers<[1], [0], [0], [1], [0, 0, 1, 1], [], []>} : vector<2x32xf32>, vector<32x128xf32>, vector<2x128xf32> -> vector<2x128xf32>
    %c0_353 = arith.constant 0 : index
    %c0_354 = arith.constant 0 : index
    %890 = vector.load %arg19[%c0_353, %c0_354] : memref<1x128xf32, #tpu.memory_space<vmem>>, vector<1x128xf32>
    %891 = vector.broadcast %890 : vector<1x128xf32> to vector<2x128xf32>
    %892 = arith.addf %889, %891 : vector<2x128xf32>
    %c0_355 = arith.constant 0 : index
    %c0_356 = arith.constant 0 : index
    %893 = vector.load %arg20[%c0_355, %c0_356] : memref<2x128xf32, #tpu.memory_space<vmem>>, vector<2x128xf32>
    tpu.vector_store %arg20[%c0_355, %c0_356], %892 {strides = array<i32>} : memref<2x128xf32, #tpu.memory_space<vmem>>, vector<2x128xf32>,
    return
  }
  func.func @transform_0(%arg0: i32) -> (i32, i32) {
    %c0_i32 = arith.constant 0 : i32
    %c0_i32_0 = arith.constant 0 : i32
    %c0_i32_1 = arith.constant 0 : i32
    return %c0_i32, %c0_i32_0 : i32, i32
  }
  func.func @transform_1(%arg0: i32) -> (i32, i32) {
    %c0_i32 = arith.constant 0 : i32
    %c0_i32_0 = arith.constant 0 : i32
    %c0_i32_1 = arith.constant 0 : i32
    return %c0_i32, %c0_i32_0 : i32, i32
  }
  func.func @transform_2(%arg0: i32) -> (i32, i32) {
    %c0_i32 = arith.constant 0 : i32
    %c0_i32_0 = arith.constant 0 : i32
    %c0_i32_1 = arith.constant 0 : i32
    return %c0_i32, %c0_i32_0 : i32, i32
  }
  func.func @transform_3(%arg0: i32) -> (i32, i32) {
    %c0_i32 = arith.constant 0 : i32
    %c0_i32_0 = arith.constant 0 : i32
    %c0_i32_1 = arith.constant 0 : i32
    return %c0_i32, %c0_i32_0 : i32, i32
  }
  func.func @transform_4(%arg0: i32) -> (i32, i32, i32) {
    %c0_i32 = arith.constant 0 : i32
    %c0_i32_0 = arith.constant 0 : i32
    %c0_i32_1 = arith.constant 0 : i32
    %c0_i32_2 = arith.constant 0 : i32
    return %c0_i32, %c0_i32_0, %c0_i32_1 : i32, i32, i32
  }
  func.func @transform_5(%arg0: i32) -> (i32, i32, i32) {
    %c0_i32 = arith.constant 0 : i32
    %c0_i32_0 = arith.constant 0 : i32
    %c0_i32_1 = arith.constant 0 : i32
    %c0_i32_2 = arith.constant 0 : i32
    return %c0_i32, %c0_i32_0, %c0_i32_1 : i32, i32, i32
  }
  func.func @transform_6(%arg0: i32) -> (i32, i32, i32) {
    %c0_i32 = arith.constant 0 : i32
    %c0_i32_0 = arith.constant 0 : i32
    %c0_i32_1 = arith.constant 0 : i32
    %c0_i32_2 = arith.constant 0 : i32
    return %c0_i32, %c0_i32_0, %c0_i32_1 : i32, i32, i32
  }
  func.func @transform_7(%arg0: i32) -> (i32, i32, i32) {
    %c0_i32 = arith.constant 0 : i32
    %c0_i32_0 = arith.constant 0 : i32
    %c0_i32_1 = arith.constant 0 : i32
    %c0_i32_2 = arith.constant 0 : i32
    return %c0_i32, %c0_i32_0, %c0_i32_1 : i32, i32, i32
  }
  func.func @transform_8(%arg0: i32) -> (i32, i32, i32) {
    %c0_i32 = arith.constant 0 : i32
    %c0_i32_0 = arith.constant 0 : i32
    %c0_i32_1 = arith.constant 0 : i32
    %c0_i32_2 = arith.constant 0 : i32
    return %c0_i32, %c0_i32_0, %c0_i32_1 : i32, i32, i32
  }
  func.func @transform_9(%arg0: i32) -> (i32, i32, i32) {
    %c0_i32 = arith.constant 0 : i32
    %c0_i32_0 = arith.constant 0 : i32
    %c0_i32_1 = arith.constant 0 : i32
    %c0_i32_2 = arith.constant 0 : i32
    return %c0_i32, %c0_i32_0, %c0_i32_1 : i32, i32, i32
  }
  func.func @transform_10(%arg0: i32) -> (i32, i32, i32) {
    %c0_i32 = arith.constant 0 : i32
    %c0_i32_0 = arith.constant 0 : i32
    %c0_i32_1 = arith.constant 0 : i32
    %c0_i32_2 = arith.constant 0 : i32
    return %c0_i32, %c0_i32_0, %c0_i32_1 : i32, i32, i32
  }
  func.func @transform_11(%arg0: i32) -> (i32, i32, i32) {
    %c0_i32 = arith.constant 0 : i32
    %c0_i32_0 = arith.constant 0 : i32
    %c0_i32_1 = arith.constant 0 : i32
    %c0_i32_2 = arith.constant 0 : i32
    return %c0_i32, %c0_i32_0, %c0_i32_1 : i32, i32, i32
  }
  func.func @transform_12(%arg0: i32) -> (i32, i32) {
    %c0_i32 = arith.constant 0 : i32
    %c0_i32_0 = arith.constant 0 : i32
    %c0_i32_1 = arith.constant 0 : i32
    return %c0_i32, %c0_i32_0 : i32, i32
  }
  func.func @transform_13(%arg0: i32) -> (i32, i32) {
    %c0_i32 = arith.constant 0 : i32
    %c0_i32_0 = arith.constant 0 : i32
    %c0_i32_1 = arith.constant 0 : i32
    return %c0_i32, %c0_i32_0 : i32, i32
  }
  func.func @transform_14(%arg0: i32) -> (i32, i32) {
    %c0_i32 = arith.constant 0 : i32
    %c0_i32_0 = arith.constant 0 : i32
    %c0_i32_1 = arith.constant 0 : i32
    return %c0_i32, %c0_i32_0 : i32, i32
  }
  func.func @transform_15(%arg0: i32) -> (i32, i32) {
    %c0_i32 = arith.constant 0 : i32
    %c0_i32_0 = arith.constant 0 : i32
    %c0_i32_1 = arith.constant 0 : i32
    return %c0_i32, %c0_i32_0 : i32, i32
  }
  func.func @transform_16(%arg0: i32) -> (i32, i32) {
    %c0_i32 = arith.constant 0 : i32
    %c0_i32_0 = arith.constant 0 : i32
    %c0_i32_1 = arith.constant 0 : i32
    return %c0_i32, %c0_i32_0 : i32, i32
  }
  func.func @transform_17(%arg0: i32) -> (i32, i32) {
    %c0_i32 = arith.constant 0 : i32
    %c0_i32_0 = arith.constant 0 : i32
    %c0_i32_1 = arith.constant 0 : i32
    return %c0_i32, %c0_i32_0 : i32, i32
  }
  func.func @transform_18(%arg0: i32) -> (i32, i32) {
    %c0_i32 = arith.constant 0 : i32
    %c0_i32_0 = arith.constant 0 : i32
    %c0_i32_1 = arith.constant 0 : i32
    return %c0_i32, %c0_i32_0 : i32, i32
  }
  func.func @transform_19(%arg0: i32) -> (i32, i32) {
    %c0_i32 = arith.constant 0 : i32
    %c0_i32_0 = arith.constant 0 : i32
    %c0_i32_1 = arith.constant 0 : i32
    return %c0_i32, %c0_i32_0 : i32, i32
  }
}

</mosaic_0001>

<llo_original>
// kernel: seq_classifier_forward.1
$region0: #{seq_classifier_forward.1}
  #allocation0 [shape = 'u32[]', space=smem, size = 0x4, offset = 0x4, fixed_abs, tag = 'smem constant byte address 0x4 - core index']
  #allocation1 [shape = 'u32[72,128]{1,0:T(1,128)}', space=vmem, size = 0x9000, scoped, tag = 'internal scratch']
  %s0 = inlined_call_operand.vmem [shape: s32[16,1], index: 0, kind: input, shape index: {}]
  %s1 = inlined_call_operand.hbm [shape: f32[20,32], index: 1, kind: input, shape index: {}]
  %s2 = inlined_call_operand.vmem [shape: f32[1,32], index: 2, kind: input, shape index: {}]
  %s3 = inlined_call_operand.vmem [shape: f32[1,32], index: 3, kind: input, shape index: {}]
  %s4 = inlined_call_operand.hbm [shape: f32[2,32,128], index: 4, kind: input, shape index: {}]
  %s5 = inlined_call_operand.hbm [shape: f32[2,32,128], index: 5, kind: input, shape index: {}]
  %s6 = inlined_call_operand.vmem [shape: f32[2,1,128], index: 6, kind: input, shape index: {}]
  %s7 = inlined_call_operand.hbm [shape: f32[2,32,128], index: 7, kind: input, shape index: {}]
  %s8 = inlined_call_operand.hbm [shape: f32[2,32,128], index: 8, kind: input, shape index: {}]
  %s9 = inlined_call_operand.hbm [shape: f32[2,32,128], index: 9, kind: input, shape index: {}]
  %s10 = inlined_call_operand.hbm [shape: f32[2,1,128], index: 10, kind: input, shape index: {}]
  %s11 = inlined_call_operand.hbm [shape: f32[16,32,32], index: 11, kind: input, shape index: {}]
  %s12 = inlined_call_operand.hbm [shape: f32[1,32], index: 12, kind: input, shape index: {}]
  %s13 = inlined_call_operand.vmem [shape: f32[1,32], index: 13, kind: input, shape index: {}]
  %s14 = inlined_call_operand.hbm [shape: f32[1,32], index: 14, kind: input, shape index: {}]
  %s15 = inlined_call_operand.vmem [shape: f32[1,32], index: 15, kind: input, shape index: {}]
  %s16 = inlined_call_operand.vmem [shape: f32[1,32], index: 16, kind: input, shape index: {}]
  %s17 = inlined_call_operand.vmem [shape: f32[32,128], index: 17, kind: input, shape index: {}]
  %s18 = inlined_call_operand.hbm [shape: f32[1,128], index: 18, kind: input, shape index: {}]
  %s19 = inlined_call_operand.hbm [shape: f32[2,128], index: 19, kind: output, shape index: {}]
  %s20 = sld [smem:[#allocation0]]
  $region130: #{seq_classifier_forward.1} parent=0
    _
  %s22 = ssub.s32 1, %s20
  %s23 = scalar_select 0, %s22, %s20
  $region1: #{seq_classifier_forward.1} parent=0
    #allocation2 [shape = 'u8[12288]{0}', space=vmem, size = 0x3000, scoped, tag = 'input window, operand 1, single buffered']
    #allocation3 [shape = 's32[1]{0}', space=sflag, size = 0x4, scoped, tag = 'scoped memory for seq_classifier_forward.1']
    #allocation4 [shape = 's32[1]{0}', space=sflag, size = 0x4, scoped, tag = 'scoped memory for seq_classifier_forward.1']
    #allocation5 [shape = 'u8[32768]{0}', space=vmem, size = 0x8000, scoped, tag = 'input window, operand 4, single buffered']
    #allocation6 [shape = 's32[1]{0}', space=sflag, size = 0x4, scoped, tag = 'scoped memory for seq_classifier_forward.1']
    #allocation7 [shape = 'u8[32768]{0}', space=vmem, size = 0x8000, scoped, tag = 'input window, operand 5, single buffered']
    #allocation8 [shape = 'u8[32768]{0}', space=vmem, size = 0x8000, scoped, tag = 'input window, operand 7, single buffered']
    #allocation9 [shape = 's32[1]{0}', space=sflag, size = 0x4, scoped, tag = 'scoped memory for seq_classifier_forward.1']
    #allocation10 [shape = 'u8[32768]{0}', space=vmem, size = 0x8000, scoped, tag = 'input window, operand 8, single buffered']
    #allocation11 [shape = 'u8[32768]{0}', space=vmem, size = 0x8000, scoped, tag = 'input window, operand 9, single buffered']
    #allocation12 [shape = 's32[1]{0}', space=sflag, size = 0x4, scoped, tag = 'scoped memory for seq_classifier_forward.1']
    #allocation13 [shape = 'u8[1024]{0}', space=vmem, size = 0x400, scoped, tag = 'input window, operand 10, single buffered']
    #allocation14 [shape = 'u8[262144]{0}', space=vmem, size = 0x40000, scoped, tag = 'input window, operand 11, single buffered']
    #allocation15 [shape = 's32[1]{0}', space=sflag, size = 0x4, scoped, tag = 'scoped memory for seq_classifier_forward.1']
    #allocation16 [shape = 'u8[512]{0}', space=vmem, size = 0x400, scoped, tag = 'input window, operand 12, single buffered']
    #allocation17 [shape = 'u8[512]{0}', space=vmem, size = 0x400, scoped, tag = 'input window, operand 14, single buffered']
    #allocation18 [shape = 's32[1]{0}', space=sflag, size = 0x4, scoped, tag = 'scoped memory for seq_classifier_forward.1']
    #allocation19 [shape = 'u8[512]{0}', space=vmem, size = 0x400, scoped, tag = 'input window, operand 18, single buffered']
    #allocation20 [shape = 'u8[1024]{0}', space=vmem, size = 0x400, scoped, tag = 'output window, operand 0, single buffered']
    %24 = vsyncpa [#allocation3], 0
    %25 = vsyncpa [#allocation6], 0
    %26 = vsyncpa [#allocation9], 0
    %27 = vsyncpa [#allocation12], 0
    %28 = vsyncpa [#allocation15], 0
    %29 = vsyncpa [#allocation18], 0
    %30 = vsyncpa [#allocation4], 0
    // Predicated region
    $region2: #{seq_classifier_forward.1} parent=1 // pred_check
      _
    $region3: #{seq_classifier_forward.1} parent=1 // pred_check_branch
      %32 = sbr.rel (0) target = $region5
    $region4: #{seq_classifier_forward.1} parent=1 // pred_region
      _
    $region5: #{seq_classifier_forward.1} parent=1 // pred_fallthru
      _
    // Predicated region
    $region6: #{seq_classifier_forward.1} parent=1 // pred_check
      _
    $region7: #{seq_classifier_forward.1} parent=1 // pred_check_branch
      %34 = sbr.rel (0) target = $region9
    $region8: #{seq_classifier_forward.1} parent=1 // pred_region
      %36 = vsyncadd [#allocation3], 0
      %s37 = sshll.u32 %s1, 4
      %s38 = int_to_ptr.hbm [resolvable:$true] %s37
      %s39 = sshll.u32 [#allocation2], 4
      %s40 = int_to_ptr.vmem [resolvable:$true] %s39
      %45 = dma.hbm_to_vmem [thread:$0]  %s38, 384, %s40, [#allocation3], 128, 128, 8
    $region9: #{seq_classifier_forward.1} parent=1 // pred_fallthru
      _
    // Predicated region
    $region10: #{seq_classifier_forward.1} parent=1 // pred_check
      _
    $region11: #{seq_classifier_forward.1} parent=1 // pred_check_branch
      %47 = sbr.rel (0) target = $region13
    $region12: #{seq_classifier_forward.1} parent=1 // pred_region
      _
    $region13: #{seq_classifier_forward.1} parent=1 // pred_fallthru
      _
    // Predicated region
    $region14: #{seq_classifier_forward.1} parent=1 // pred_check
      _
    $region15: #{seq_classifier_forward.1} parent=1 // pred_check_branch
      %49 = sbr.rel (0) target = $region17
    $region16: #{seq_classifier_forward.1} parent=1 // pred_region
      _
    $region17: #{seq_classifier_forward.1} parent=1 // pred_fallthru
      _
    // Predicated region
    $region18: #{seq_classifier_forward.1} parent=1 // pred_check
      _
    $region19: #{seq_classifier_forward.1} parent=1 // pred_check_branch
      %51 = sbr.rel (0) target = $region21
    $region20: #{seq_classifier_forward.1} parent=1 // pred_region
      %53 = vsyncadd [#allocation6], 0
      %s54 = sshll.u32 %s4, 4
      %s55 = int_to_ptr.hbm [resolvable:$true] %s54
      %s56 = sshll.u32 [#allocation5], 4
      %s57 = int_to_ptr.vmem [resolvable:$true] %s56
      %62 = dma.hbm_to_vmem [thread:$0]  %s55, 1024, %s57, [#allocation6], 128, 128, 8
    $region21: #{seq_classifier_forward.1} parent=1 // pred_fallthru
      _
    // Predicated region
    $region22: #{seq_classifier_forward.1} parent=1 // pred_check
      _
    $region23: #{seq_classifier_forward.1} parent=1 // pred_check_branch
      %64 = sbr.rel (0) target = $region25
    $region24: #{seq_classifier_forward.1} parent=1 // pred_region
      %66 = vsyncadd [#allocation6], 0
      %s67 = sshll.u32 %s5, 4
      %s68 = int_to_ptr.hbm [resolvable:$true] %s67
      %s69 = sshll.u32 [#allocation7], 4
      %s70 = int_to_ptr.vmem [resolvable:$true] %s69
      %75 = dma.hbm_to_vmem [thread:$0]  %s68, 1024, %s70, [#allocation6], 128, 128, 8
    $region25: #{seq_classifier_forward.1} parent=1 // pred_fallthru
      _
    // Predicated region
    $region26: #{seq_classifier_forward.1} parent=1 // pred_check
      _
    $region27: #{seq_classifier_forward.1} parent=1 // pred_check_branch
      %77 = sbr.rel (0) target = $region29
    $region28: #{seq_classifier_forward.1} parent=1 // pred_region
      _
    $region29: #{seq_classifier_forward.1} parent=1 // pred_fallthru
      _
    // Predicated region
    $region30: #{seq_classifier_forward.1} parent=1 // pred_check
      _
    $region31: #{seq_classifier_forward.1} parent=1 // pred_check_branch
      %79 = sbr.rel (0) target = $region33
    $region32: #{seq_classifier_forward.1} parent=1 // pred_region
      %81 = vsyncadd [#allocation9], 0
      %s82 = sshll.u32 %s7, 4
      %s83 = int_to_ptr.hbm [resolvable:$true] %s82
      %s84 = sshll.u32 [#allocation8], 4
      %s85 = int_to_ptr.vmem [resolvable:$true] %s84
      %90 = dma.hbm_to_vmem [thread:$0]  %s83, 1024, %s85, [#allocation9], 128, 128, 8
    $region33: #{seq_classifier_forward.1} parent=1 // pred_fallthru
      _
    // Predicated region
    $region34: #{seq_classifier_forward.1} parent=1 // pred_check
      _
    $region35: #{seq_classifier_forward.1} parent=1 // pred_check_branch
      %92 = sbr.rel (0) target = $region37
    $region36: #{seq_classifier_forward.1} parent=1 // pred_region
      %94 = vsyncadd [#allocation9], 0
      %s95 = sshll.u32 %s8, 4
      %s96 = int_to_ptr.hbm [resolvable:$true] %s95
      %s97 = sshll.u32 [#allocation10], 4
      %s98 = int_to_ptr.vmem [resolvable:$true] %s97
      %103 = dma.hbm_to_vmem [thread:$0]  %s96, 1024, %s98, [#allocation9], 128, 128, 8
    $region37: #{seq_classifier_forward.1} parent=1 // pred_fallthru
      _
    // Predicated region
    $region38: #{seq_classifier_forward.1} parent=1 // pred_check
      _
    $region39: #{seq_classifier_forward.1} parent=1 // pred_check_branch
      %105 = sbr.rel (0) target = $region41
    $region40: #{seq_classifier_forward.1} parent=1 // pred_region
      %107 = vsyncadd [#allocation12], 0
      %s108 = sshll.u32 %s9, 4
      %s109 = int_to_ptr.hbm [resolvable:$true] %s108
      %s110 = sshll.u32 [#allocation11], 4
      %s111 = int_to_ptr.vmem [resolvable:$true] %s110
      %116 = dma.hbm_to_vmem [thread:$0]  %s109, 1024, %s111, [#allocation12], 128, 128, 8
    $region41: #{seq_classifier_forward.1} parent=1 // pred_fallthru
      _
    // Predicated region
    $region42: #{seq_classifier_forward.1} parent=1 // pred_check
      _
    $region43: #{seq_classifier_forward.1} parent=1 // pred_check_branch
      %118 = sbr.rel (0) target = $region45
    $region44: #{seq_classifier_forward.1} parent=1 // pred_region
      %120 = vsyncadd [#allocation12], 0
      %s121 = sshll.u32 %s10, 4
      %s122 = int_to_ptr.hbm [resolvable:$true] %s121
      %s123 = sshll.u32 [#allocation13], 4
      %s124 = int_to_ptr.vmem [resolvable:$true] %s123
      %129 = dma.hbm_to_vmem [thread:$0]  %s122, 32, %s124, [#allocation12], 16, 16, 1
    $region45: #{seq_classifier_forward.1} parent=1 // pred_fallthru
      _
    // Predicated region
    $region46: #{seq_classifier_forward.1} parent=1 // pred_check
      _
    $region47: #{seq_classifier_forward.1} parent=1 // pred_check_branch
      %131 = sbr.rel (0) target = $region49
    $region48: #{seq_classifier_forward.1} parent=1 // pred_region
      %133 = vsyncadd [#allocation15], 0
      %s134 = sshll.u32 %s11, 4
      %s135 = int_to_ptr.hbm [resolvable:$true] %s134
      %s136 = sshll.u32 [#allocation14], 4
      %s137 = int_to_ptr.vmem [resolvable:$true] %s136
      %142 = dma.hbm_to_vmem [thread:$0]  %s135, 8192, %s137, [#allocation15], 128, 128, 8
    $region49: #{seq_classifier_forward.1} parent=1 // pred_fallthru
      _
    // Predicated region
    $region50: #{seq_classifier_forward.1} parent=1 // pred_check
      _
    $region51: #{seq_classifier_forward.1} parent=1 // pred_check_branch
      %144 = sbr.rel (0) target = $region53
    $region52: #{seq_classifier_forward.1} parent=1 // pred_region
      %146 = vsyncadd [#allocation15], 0
      %s148 = sshll.u32 %s12, 4
      %s149 = int_to_ptr.hbm [resolvable:$true] %s148
      %s150 = sshll.u32 [#allocation16], 4
      %s151 = int_to_ptr.vmem [resolvable:$true] %s150
      %153 = dma.hbm_to_vmem [thread:$0]  %s149, 16, %s151, [#allocation15]
    $region53: #{seq_classifier_forward.1} parent=1 // pred_fallthru
      _
    // Predicated region
    $region54: #{seq_classifier_forward.1} parent=1 // pred_check
      _
    $region55: #{seq_classifier_forward.1} parent=1 // pred_check_branch
      %155 = sbr.rel (0) target = $region57
    $region56: #{seq_classifier_forward.1} parent=1 // pred_region
      _
    $region57: #{seq_classifier_forward.1} parent=1 // pred_fallthru
      _
    // Predicated region
    $region58: #{seq_classifier_forward.1} parent=1 // pred_check
      _
    $region59: #{seq_classifier_forward.1} parent=1 // pred_check_branch
      %157 = sbr.rel (0) target = $region61
    $region60: #{seq_classifier_forward.1} parent=1 // pred_region
      %159 = vsyncadd [#allocation18], 0
      %s161 = sshll.u32 %s14, 4
      %s162 = int_to_ptr.hbm [resolvable:$true] %s161
      %s163 = sshll.u32 [#allocation17], 4
      %s164 = int_to_ptr.vmem [resolvable:$true] %s163
      %166 = dma.hbm_to_vmem [thread:$0]  %s162, 16, %s164, [#allocation18]
    $region61: #{seq_classifier_forward.1} parent=1 // pred_fallthru
      _
    // Predicated region
    $region62: #{seq_classifier_forward.1} parent=1 // pred_check
      _
    $region63: #{seq_classifier_forward.1} parent=1 // pred_check_branch
      %168 = sbr.rel (0) target = $region65
    $region64: #{seq_classifier_forward.1} parent=1 // pred_region
      _
    $region65: #{seq_classifier_forward.1} parent=1 // pred_fallthru
      _
    // Predicated region
    $region66: #{seq_classifier_forward.1} parent=1 // pred_check
      _
    $region67: #{seq_classifier_forward.1} parent=1 // pred_check_branch
      %170 = sbr.rel (0) target = $region69
    $region68: #{seq_classifier_forward.1} parent=1 // pred_region
      _
    $region69: #{seq_classifier_forward.1} parent=1 // pred_fallthru
      _
    // Predicated region
    $region70: #{seq_classifier_forward.1} parent=1 // pred_check
      _
    $region71: #{seq_classifier_forward.1} parent=1 // pred_check_branch
      %172 = sbr.rel (0) target = $region73
    $region72: #{seq_classifier_forward.1} parent=1 // pred_region
      _
    $region73: #{seq_classifier_forward.1} parent=1 // pred_fallthru
      _
    // Predicated region
    $region74: #{seq_classifier_forward.1} parent=1 // pred_check
      _
    $region75: #{seq_classifier_forward.1} parent=1 // pred_check_branch
      %174 = sbr.rel (0) target = $region77
    $region76: #{seq_classifier_forward.1} parent=1 // pred_region
      %176 = vsyncadd [#allocation18], 0
      %s178 = sshll.u32 %s18, 4
      %s179 = int_to_ptr.hbm [resolvable:$true] %s178
      %s180 = sshll.u32 [#allocation19], 4
      %s181 = int_to_ptr.vmem [resolvable:$true] %s180
      %183 = dma.hbm_to_vmem [thread:$0]  %s179, 16, %s181, [#allocation18]
    $region77: #{seq_classifier_forward.1} parent=1 // pred_fallthru
      _
    // Predicated region
    $region78: #{seq_classifier_forward.1} parent=1 // pred_check
      _
    $region79: #{seq_classifier_forward.1} parent=1 // pred_check_branch
      %185 = sbr.rel (0) target = $region81
    $region80: #{seq_classifier_forward.1} parent=1 // pred_region
      %187 = dma.done [#allocation3], 384
    $region81: #{seq_classifier_forward.1} parent=1 // pred_fallthru
      _
    // Predicated region
    $region82: #{seq_classifier_forward.1} parent=1 // pred_check
      _
    $region83: #{seq_classifier_forward.1} parent=1 // pred_check_branch
      %189 = sbr.rel (0) target = $region85
    $region84: #{seq_classifier_forward.1} parent=1 // pred_region
      %191 = dma.done [#allocation6], 1024
    $region85: #{seq_classifier_forward.1} parent=1 // pred_fallthru
      _
    // Predicated region
    $region86: #{seq_classifier_forward.1} parent=1 // pred_check
      _
    $region87: #{seq_classifier_forward.1} parent=1 // pred_check_branch
      %193 = sbr.rel (0) target = $region89
    $region88: #{seq_classifier_forward.1} parent=1 // pred_region
      %195 = dma.done [#allocation6], 1024
    $region89: #{seq_classifier_forward.1} parent=1 // pred_fallthru
      _
    // Predicated region
    $region90: #{seq_classifier_forward.1} parent=1 // pred_check
      _
    $region91: #{seq_classifier_forward.1} parent=1 // pred_check_branch
      %197 = sbr.rel (0) target = $region93
    $region92: #{seq_classifier_forward.1} parent=1 // pred_region
      %199 = dma.done [#allocation9], 1024
    $region93: #{seq_classifier_forward.1} parent=1 // pred_fallthru
      _
    // Predicated region
    $region94: #{seq_classifier_forward.1} parent=1 // pred_check
      _
    $region95: #{seq_classifier_forward.1} parent=1 // pred_check_branch
      %201 = sbr.rel (0) target = $region97
    $region96: #{seq_classifier_forward.1} parent=1 // pred_region
      %203 = dma.done [#allocation9], 1024
    $region97: #{seq_classifier_forward.1} parent=1 // pred_fallthru
      _
    // Predicated region
    $region98: #{seq_classifier_forward.1} parent=1 // pred_check
      _
    $region99: #{seq_classifier_forward.1} parent=1 // pred_check_branch
      %205 = sbr.rel (0) target = $region101
    $region100: #{seq_classifier_forward.1} parent=1 // pred_region
      %207 = dma.done [#allocation12], 1024
    $region101: #{seq_classifier_forward.1} parent=1 // pred_fallthru
      _
    // Predicated region
    $region102: #{seq_classifier_forward.1} parent=1 // pred_check
      _
    $region103: #{seq_classifier_forward.1} parent=1 // pred_check_branch
      %209 = sbr.rel (0) target = $region105
    $region104: #{seq_classifier_forward.1} parent=1 // pred_region
      %211 = dma.done [#allocation12], 32
    $region105: #{seq_classifier_forward.1} parent=1 // pred_fallthru
      _
    // Predicated region
    $region106: #{seq_classifier_forward.1} parent=1 // pred_check
      _
    $region107: #{seq_classifier_forward.1} parent=1 // pred_check_branch
      %213 = sbr.rel (0) target = $region109
    $region108: #{seq_classifier_forward.1} parent=1 // pred_region
      %215 = dma.done [#allocation15], 8192
    $region109: #{seq_classifier_forward.1} parent=1 // pred_fallthru
      _
    // Predicated region
    $region110: #{seq_classifier_forward.1} parent=1 // pred_check
      _
    $region111: #{seq_classifier_forward.1} parent=1 // pred_check_branch
      %217 = sbr.rel (0) target = $region113
    $region112: #{seq_classifier_forward.1} parent=1 // pred_region
      %219 = dma.done [#allocation15], 16
    $region113: #{seq_classifier_forward.1} parent=1 // pred_fallthru
      _
    // Predicated region
    $region114: #{seq_classifier_forward.1} parent=1 // pred_check
      _
    $region115: #{seq_classifier_forward.1} parent=1 // pred_check_branch
      %221 = sbr.rel (0) target = $region117
    $region116: #{seq_classifier_forward.1} parent=1 // pred_region
      %223 = dma.done [#allocation18], 16
    $region117: #{seq_classifier_forward.1} parent=1 // pred_fallthru
      _
    // Predicated region
    $region118: #{seq_classifier_forward.1} parent=1 // pred_check
      _
    $region119: #{seq_classifier_forward.1} parent=1 // pred_check_branch
      %225 = sbr.rel (0) target = $region121
    $region120: #{seq_classifier_forward.1} parent=1 // pred_region
      %227 = dma.done [#allocation18], 16
    $region121: #{seq_classifier_forward.1} parent=1 // pred_fallthru
      _
    %v228 = vld [vmem:[%s0] sm:$0xff]
    %v229 = vld [vmem:[%s0 + $0x8] sm:$0xff]
    %v230 = vlaneseq
    %v231 = vand.u32 %v230, 127
    %232 = vset.pattern.permute.xlu0 0
    %233 = vperm.xlu0 %232, %v228
    %v234 = vpop.permute.xlu0 %233
    %235 = vset.pattern.permute.xlu0 0
    %236 = vperm.xlu0 %235, %v229
    %v237 = vpop.permute.xlu0 %236
    %vm238 = vcmp.eq.s32.totalorder %v231, %v234
    %vm239 = vcmp.eq.s32.totalorder %v231, %v237
    %v240 = vsel %vm238, 1, 0
    %v241 = vsel %vm239, 1, 0
    %v242 = vcvt.s32.f32 %v240
    %v243 = vcvt.s32.f32 %v241
    %v244 = vld [vmem:[#allocation2] sm:$0xff]
    %v245 = vld [vmem:[#allocation2 + $0x8] sm:$0xff]
    %v246 = vld [vmem:[#allocation2 + $0x10] sm:$0xf]
    %vm247 = vcmask 162816
    %v249 = vsel %vm247, %v242, 0
    %v252 = vsel %vm247, %v243, 0
    %vm254 = vcmask 1043456
    %v256 = vsel %vm254, %v246, 0
    %258 = vmatpush.msra.mxu0 0.0
    %259 = vmatpush.msra.mxu0 0.0
    %260 = vmatpush.msra.mxu0 0.0
    %261 = vmatpush.msra.mxu0 0.0
    %262 = vmatpush.msra.mxu0 0.0
    %263 = vmatpush.msra.mxu0 0.0
    %264 = vmatpush.msra.mxu0 0.0
    %265 = vmatpush.msra.mxu0 0.0
    %266 = vmatpush.msra.mxu0 0.0
    %267 = vmatpush.msra.mxu0 0.0
    %268 = vmatpush.msra.mxu0 0.0
    %269 = vmatpush.msra.mxu0 0.0
    %270 = vmatpush.msra.mxu0 0.0
    %271 = vmatpush.msra.mxu0 %v256
    %272 = vmatpush.msra.mxu0 %v245
    %273 = vmatpush.msra.mxu0 %v244
    %274 = vmatmul.f32.gmra.mxu0 %v249
    %v275 = vpop.f32.mrf.mxu0
    %v276 = vadd.f32 0.0, %v275
    %277 = vmatmul.f32.gmra.mxu0 %v252
    %v278 = vpop.f32.mrf.mxu0
    %v279 = vadd.f32 0.0, %v278
    %280 = vdwg.mxu0
    %vm281 = vcmask 261120
    %v282 = vsel %vm281, %v276, 0.0
    %283 = vadd.xlane.f32.xlu0 %v282
    %v284 = vpop.xlane.xlu0 %283
    %v285 = vsel %vm281, %v279, 0.0
    %286 = vadd.xlane.f32.xlu0 %v285
    %v287 = vpop.xlane.xlu0 %286
    %v288 = vrcp.pop 32.0
    %v289 = vmul.f32 32.0, %v288
    %v290 = vsub.f32 1.0, %v289
    %v291 = vmul.f32 %v288, %v290
    %v292 = vadd.f32 %v288, %v291
    %vm293 = vweird.f32 %v288
    %v294 = vsel %vm293, %v288, %v292
    %v295 = vmul.f32 %v284, %v294
    %v296 = vmul.f32 %v287, %v294
    %v297 = vsub.f32 %v276, %v295
    %v298 = vsub.f32 %v279, %v296
    %v299 = vmul.f32 %v297, %v297
    %v300 = vmul.f32 %v298, %v298
    %v301 = vsel %vm281, %v299, 0.0
    %302 = vadd.xlane.f32.xlu0 %v301
    %v303 = vpop.xlane.xlu0 %302
    %v304 = vsel %vm281, %v300, 0.0
    %305 = vadd.xlane.f32.xlu0 %v304
    %v306 = vpop.xlane.xlu0 %305
    %v307 = vmul.f32 %v303, %v294
    %v308 = vmul.f32 %v306, %v294
    %v309 = vadd.f32 %v307, 1e-05
    %v310 = vadd.f32 %v308, 1e-05
    %v311 = vrsqrt.pop %v309
    %v312 = vmul.f32 %v311, %v309
    %v313 = vmul.f32 %v312, %v311
    %v314 = vmul.f32 0.5, %v313
    %v315 = vsub.f32 1.5, %v314
    %v316 = vmul.f32 %v311, %v315
    %vm317 = vweird.f32 %v309
    %vm318 = vweird.f32 %v311
    %vm319 = vmor %vm317, %vm318
    %v320 = vsel %vm319, %v311, %v316
    %v321 = vrsqrt.pop %v310
    %v322 = vmul.f32 %v321, %v310
    %v323 = vmul.f32 %v322, %v321
    %v324 = vmul.f32 0.5, %v323
    %v325 = vsub.f32 1.5, %v324
    %v326 = vmul.f32 %v321, %v325
    %vm327 = vweird.f32 %v310
    %vm328 = vweird.f32 %v321
    %vm329 = vmor %vm327, %vm328
    %v330 = vsel %vm329, %v321, %v326
    %v331 = vmul.f32 %v297, %v320
    %v332 = vmul.f32 %v298, %v330
    %v333 = vld [vmem:[%s2] sm:$0x1]
    %v335 = vperm.slane %v333, 0
    %v337 = vmul.f32 %v331, %v335
    %v338 = vmul.f32 %v332, %v335
    %v339 = vld [vmem:[%s3] sm:$0x1]
    %v341 = vperm.slane %v339, 0
    %v343 = vadd.f32 %v337, %v341
    %v344 = vadd.f32 %v338, %v341
    %v345 = vld [vmem:[#allocation7] sm:$0xff]
    %v346 = vld [vmem:[#allocation7 + $0x8] sm:$0xff]
    %v347 = vld [vmem:[#allocation7 + $0x10] sm:$0xff]
    %v348 = vld [vmem:[#allocation7 + $0x18] sm:$0xff]
    %s349 = scalar_lea.vmem [#allocation7], 32
    %v350 = vld [vmem:[%s349] sm:$0xff]
    %v351 = vld [vmem:[%s349 + $0x8] sm:$0xff]
    %v352 = vld [vmem:[%s349 + $0x10] sm:$0xff]
    %v353 = vld [vmem:[%s349 + $0x18] sm:$0xff]
    %v354 = vld [vmem:[#allocation5] sm:$0xff]
    %v355 = vld [vmem:[#allocation5 + $0x8] sm:$0xff]
    %v356 = vld [vmem:[#allocation5 + $0x10] sm:$0xff]
    %v357 = vld [vmem:[#allocation5 + $0x18] sm:$0xff]
    %v358 = vld [vmem:[%s6] sm:$0x1]
    %v360 = vperm.slane %v358, 0
    %v363 = vsel %vm281, %v343, 0
    %v366 = vsel %vm281, %v344, 0
    %368 = vmatpush.msra.mxu0 0.0
    %369 = vmatpush.msra.mxu0 0.0
    %370 = vmatpush.msra.mxu0 0.0
    %371 = vmatpush.msra.mxu0 0.0
    %372 = vmatpush.msra.mxu0 0.0
    %373 = vmatpush.msra.mxu0 0.0
    %374 = vmatpush.msra.mxu0 0.0
    %375 = vmatpush.msra.mxu0 0.0
    %376 = vmatpush.msra.mxu0 0.0
    %377 = vmatpush.msra.mxu0 0.0
    %378 = vmatpush.msra.mxu0 0.0
    %379 = vmatpush.msra.mxu0 0.0
    %380 = vmatpush.msra.mxu0 %v357
    %381 = vmatpush.msra.mxu0 %v356
    %382 = vmatpush.msra.mxu0 %v355
    %383 = vmatpush.msra.mxu0 %v354
    %384 = vmatmul.f32.gmra.mxu0 %v363
    %v385 = vpop.f32.mrf.mxu0
    %v386 = vadd.f32 %v360, %v385
    %387 = vmatmul.f32.gmra.mxu0 %v366
    %v388 = vpop.f32.mrf.mxu0
    %v389 = vadd.f32 %v360, %v388
    %390 = vdwg.mxu0
    %s391 = scalar_lea.vmem [#allocation5], 32
    %v392 = vld [vmem:[%s391] sm:$0xff]
    %v393 = vld [vmem:[%s391 + $0x8] sm:$0xff]
    %v394 = vld [vmem:[%s391 + $0x10] sm:$0xff]
    %v395 = vld [vmem:[%s391 + $0x18] sm:$0xff]
    %s396 = scalar_lea.vmem %s6, 1
    %v397 = vld [vmem:[%s396] sm:$0x1]
    %v399 = vperm.slane %v397, 0
    %401 = vmatpush.msra.mxu0 0.0
    %402 = vmatpush.msra.mxu0 0.0
    %403 = vmatpush.msra.mxu0 0.0
    %404 = vmatpush.msra.mxu0 0.0
    %405 = vmatpush.msra.mxu0 0.0
    %406 = vmatpush.msra.mxu0 0.0
    %407 = vmatpush.msra.mxu0 0.0
    %408 = vmatpush.msra.mxu0 0.0
    %409 = vmatpush.msra.mxu0 0.0
    %410 = vmatpush.msra.mxu0 0.0
    %411 = vmatpush.msra.mxu0 0.0
    %412 = vmatpush.msra.mxu0 0.0
    %413 = vmatpush.msra.mxu0 %v395
    %414 = vmatpush.msra.mxu0 %v394
    %415 = vmatpush.msra.mxu0 %v393
    %416 = vmatpush.msra.mxu0 %v392
    %417 = vmatmul.f32.gmra.mxu0 %v363
    %v418 = vpop.f32.mrf.mxu0
    %v419 = vadd.f32 %v399, %v418
    %420 = vmatmul.f32.gmra.mxu0 %v366
    %v421 = vpop.f32.mrf.mxu0
    %v422 = vadd.f32 %v399, %v421
    %423 = vdwg.mxu0
    %v425 = vsel %vm281, 0.0, 0
    %427 = vmatpush.msra.mxu0 0.0
    %428 = vmatpush.msra.mxu0 0.0
    %429 = vmatpush.msra.mxu0 0.0
    %430 = vmatpush.msra.mxu0 0.0
    %431 = vmatpush.msra.mxu0 0.0
    %432 = vmatpush.msra.mxu0 0.0
    %433 = vmatpush.msra.mxu0 0.0
    %434 = vmatpush.msra.mxu0 0.0
    %435 = vmatpush.msra.mxu0 0.0
    %436 = vmatpush.msra.mxu0 0.0
    %437 = vmatpush.msra.mxu0 0.0
    %438 = vmatpush.msra.mxu0 0.0
    %439 = vmatpush.msra.mxu0 %v348
    %440 = vmatpush.msra.mxu0 %v347
    %441 = vmatpush.msra.mxu0 %v346
    %442 = vmatpush.msra.mxu0 %v345
    %443 = vmatmul.f32.gmra.mxu0 %v425
    %v444 = vpop.f32.mrf.mxu0
    %v445 = vadd.f32 0.0, %v444
    %446 = vdwg.mxu0
    %v447 = vadd.f32 %v386, %v445
    %v448 = vxor.u32 %v447, 2147483648
    %v449 = vmul.f32 %v448, 1.442695
    %v450 = vpow.pop %v449
    %v451 = vadd.f32 %v450, 1.0
    %v452 = vrcp.pop %v451
    %v453 = vmul.f32 %v451, %v452
    %v454 = vsub.f32 1.0, %v453
    %v455 = vmul.f32 %v452, %v454
    %v456 = vadd.f32 %v452, %v455
    %vm457 = vweird.f32 %v451
    %vm458 = vweird.f32 %v452
    %vm459 = vmor %vm457, %vm458
    %v460 = vsel %vm459, %v452, %v456
    %v461 = vand.u32 2147483647, %v451
    %vm462 = vcmp.eq.f32.partialorder %v461, 8.507059e+37
    %v463 = vand.u32 %v451, 2147483648
    %v464 = vor.u32 1.1754944e-38, %v463
    %v465 = vsel %vm462, %v464, %v460
    %v466 = vmul.f32 1.0, %v465
    %v467 = vtanh.pop %v447
    %v468 = vmul.f32 %v466, 0.0
    %470 = vrot.lane.b32.xlu0 %v467, 64
    %v471 = vpop.permute.xlu0 %470
    %v473 = vmul.f32 %v466, %v471
    %475 = vrot.lane.b32.xlu0 %v473, 32
    %v476 = vpop.permute.xlu0 %475
    %v478 = vadd.f32 %v468, %v476
    %v479 = vtanh.pop %v478
    %481 = vrot.lane.b32.xlu0 %v479, 64
    %v482 = vpop.permute.xlu0 %481
    %v484 = vmul.f32 %v466, %v482
    %485 = vmatpush.msra.mxu0 0.0
    %486 = vmatpush.msra.mxu0 0.0
    %487 = vmatpush.msra.mxu0 0.0
    %488 = vmatpush.msra.mxu0 0.0
    %489 = vmatpush.msra.mxu0 0.0
    %490 = vmatpush.msra.mxu0 0.0
    %491 = vmatpush.msra.mxu0 0.0
    %492 = vmatpush.msra.mxu0 0.0
    %493 = vmatpush.msra.mxu0 0.0
    %494 = vmatpush.msra.mxu0 0.0
    %495 = vmatpush.msra.mxu0 0.0
    %496 = vmatpush.msra.mxu0 0.0
    %497 = vmatpush.msra.mxu0 %v353
    %498 = vmatpush.msra.mxu0 %v352
    %499 = vmatpush.msra.mxu0 %v351
    %500 = vmatpush.msra.mxu0 %v350
    %501 = vmatmul.f32.gmra.mxu0 %v425
    %v502 = vpop.f32.mrf.mxu0
    %v503 = vadd.f32 0.0, %v502
    %504 = vdwg.mxu0
    %v506 = vrot.slane %v503, 2
    %v508 = vadd.f32 %v422, %v506
    %v509 = vxor.u32 %v508, 2147483648
    %v510 = vmul.f32 %v509, 1.442695
    %v511 = vpow.pop %v510
    %v512 = vadd.f32 %v511, 1.0
    %v513 = vrcp.pop %v512
    %v514 = vmul.f32 %v512, %v513
    %v515 = vsub.f32 1.0, %v514
    %v516 = vmul.f32 %v513, %v515
    %v517 = vadd.f32 %v513, %v516
    %vm518 = vweird.f32 %v512
    %vm519 = vweird.f32 %v513
    %vm520 = vmor %vm518, %vm519
    %v521 = vsel %vm520, %v513, %v517
    %v522 = vand.u32 2147483647, %v512
    %vm523 = vcmp.eq.f32.partialorder %v522, 8.507059e+37
    %v524 = vand.u32 %v512, 2147483648
    %v525 = vor.u32 1.1754944e-38, %v524
    %v526 = vsel %vm523, %v525, %v521
    %v527 = vmul.f32 1.0, %v526
    %v528 = vtanh.pop %v508
    %v529 = vmul.f32 %v527, 0.0
    %531 = vrot.lane.b32.xlu0 %v528, 64
    %v532 = vpop.permute.xlu0 %531
    %v534 = vmul.f32 %v527, %v532
    %536 = vrot.lane.b32.xlu0 %v534, 32
    %v537 = vpop.permute.xlu0 %536
    %v539 = vadd.f32 %v529, %v537
    %v540 = vtanh.pop %v539
    %542 = vrot.lane.b32.xlu0 %v540, 64
    %v543 = vpop.permute.xlu0 %542
    %v545 = vmul.f32 %v527, %v543
    %547 = vrot.lane.b32.xlu0 %v484, 32
    %v548 = vpop.permute.xlu0 %547
    %v549 = vsel %vm281, %v548, 0
    %551 = vmatpush.msra.mxu0 0.0
    %552 = vmatpush.msra.mxu0 0.0
    %553 = vmatpush.msra.mxu0 0.0
    %554 = vmatpush.msra.mxu0 0.0
    %555 = vmatpush.msra.mxu0 0.0
    %556 = vmatpush.msra.mxu0 0.0
    %557 = vmatpush.msra.mxu0 0.0
    %558 = vmatpush.msra.mxu0 0.0
    %559 = vmatpush.msra.mxu0 0.0
    %560 = vmatpush.msra.mxu0 0.0
    %561 = vmatpush.msra.mxu0 0.0
    %562 = vmatpush.msra.mxu0 0.0
    %563 = vmatpush.msra.mxu0 %v348
    %564 = vmatpush.msra.mxu0 %v347
    %565 = vmatpush.msra.mxu0 %v346
    %566 = vmatpush.msra.mxu0 %v345
    %567 = vmatmul.f32.gmra.mxu0 %v549
    %v568 = vpop.f32.mrf.mxu0
    %v569 = vadd.f32 0.0, %v568
    %570 = vdwg.mxu0
    %v572 = vrot.slane %v569, 6
    %v574 = vadd.f32 %v386, %v572
    %v575 = vxor.u32 %v574, 2147483648
    %v576 = vmul.f32 %v575, 1.442695
    %v577 = vpow.pop %v576
    %v578 = vadd.f32 %v577, 1.0
    %v579 = vrcp.pop %v578
    %v580 = vmul.f32 %v578, %v579
    %v581 = vsub.f32 1.0, %v580
    %v582 = vmul.f32 %v579, %v581
    %v583 = vadd.f32 %v579, %v582
    %vm584 = vweird.f32 %v578
    %vm585 = vweird.f32 %v579
    %vm586 = vmor %vm584, %vm585
    %v587 = vsel %vm586, %v579, %v583
    %v588 = vand.u32 2147483647, %v578
    %vm589 = vcmp.eq.f32.partialorder %v588, 8.507059e+37
    %v590 = vand.u32 %v578, 2147483648
    %v591 = vor.u32 1.1754944e-38, %v590
    %v592 = vsel %vm589, %v591, %v587
    %v593 = vmul.f32 1.0, %v592
    %v594 = vtanh.pop %v574
    %v596 = vrot.slane %v478, 6
    %v598 = vmul.f32 %v593, %v596
    %600 = vrot.lane.b32.xlu0 %v594, 64
    %v601 = vpop.permute.xlu0 %600
    %v603 = vmul.f32 %v593, %v601
    %605 = vrot.lane.b32.xlu0 %v603, 32
    %v606 = vpop.permute.xlu0 %605
    %v608 = vadd.f32 %v598, %v606
    %v609 = vtanh.pop %v608
    %611 = vrot.lane.b32.xlu0 %v609, 64
    %v612 = vpop.permute.xlu0 %611
    %v614 = vmul.f32 %v593, %v612
    %v616 = vrot.slane %v545, 6
    %617 = vrot.lane.b32.xlu0 %v616, 32
    %v618 = vpop.permute.xlu0 %617
    %v619 = vsel %vm281, %v618, 0
    %621 = vmatpush.msra.mxu0 0.0
    %622 = vmatpush.msra.mxu0 0.0
    %623 = vmatpush.msra.mxu0 0.0
    %624 = vmatpush.msra.mxu0 0.0
    %625 = vmatpush.msra.mxu0 0.0
    %626 = vmatpush.msra.mxu0 0.0
    %627 = vmatpush.msra.mxu0 0.0
    %628 = vmatpush.msra.mxu0 0.0
    %629 = vmatpush.msra.mxu0 0.0
    %630 = vmatpush.msra.mxu0 0.0
    %631 = vmatpush.msra.mxu0 0.0
    %632 = vmatpush.msra.mxu0 0.0
    %633 = vmatpush.msra.mxu0 %v353
    %634 = vmatpush.msra.mxu0 %v352
    %635 = vmatpush.msra.mxu0 %v351
    %636 = vmatpush.msra.mxu0 %v350
    %637 = vmatmul.f32.gmra.mxu0 %v619
    %v638 = vpop.f32.mrf.mxu0
    %v639 = vadd.f32 0.0, %v638
    %640 = vdwg.mxu0
    %v642 = vrot.slane %v639, 4
    %v644 = vadd.f32 %v422, %v642
    %v645 = vxor.u32 %v644, 2147483648
    %v646 = vmul.f32 %v645, 1.442695
    %v647 = vpow.pop %v646
    %v648 = vadd.f32 %v647, 1.0
    %v649 = vrcp.pop %v648
    %v650 = vmul.f32 %v648, %v649
    %v651 = vsub.f32 1.0, %v650
    %v652 = vmul.f32 %v649, %v651
    %v653 = vadd.f32 %v649, %v652
    %vm654 = vweird.f32 %v648
    %vm655 = vweird.f32 %v649
    %vm656 = vmor %vm654, %vm655
    %v657 = vsel %vm656, %v649, %v653
    %v658 = vand.u32 2147483647, %v648
    %vm659 = vcmp.eq.f32.partialorder %v658, 8.507059e+37
    %v660 = vand.u32 %v648, 2147483648
    %v661 = vor.u32 1.1754944e-38, %v660
    %v662 = vsel %vm659, %v661, %v657
    %v663 = vmul.f32 1.0, %v662
    %v664 = vtanh.pop %v644
    %v666 = vrot.slane %v539, 2
    %v668 = vmul.f32 %v663, %v666
    %670 = vrot.lane.b32.xlu0 %v664, 64
    %v671 = vpop.permute.xlu0 %670
    %v673 = vmul.f32 %v663, %v671
    %675 = vrot.lane.b32.xlu0 %v673, 32
    %v676 = vpop.permute.xlu0 %675
    %v678 = vadd.f32 %v668, %v676
    %v679 = vtanh.pop %v678
    %681 = vrot.lane.b32.xlu0 %v679, 64
    %v682 = vpop.permute.xlu0 %681
    %v684 = vmul.f32 %v663, %v682
    %v686 = vrot.slane %v614, 2
    %687 = vrot.lane.b32.xlu0 %v686, 32
    %v688 = vpop.permute.xlu0 %687
    %v689 = vsel %vm281, %v688, 0
    %691 = vmatpush.msra.mxu0 0.0
    %692 = vmatpush.msra.mxu0 0.0
    %693 = vmatpush.msra.mxu0 0.0
    %694 = vmatpush.msra.mxu0 0.0
    %695 = vmatpush.msra.mxu0 0.0
    %696 = vmatpush.msra.mxu0 0.0
    %697 = vmatpush.msra.mxu0 0.0
    %698 = vmatpush.msra.mxu0 0.0
    %699 = vmatpush.msra.mxu0 0.0
    %700 = vmatpush.msra.mxu0 0.0
    %701 = vmatpush.msra.mxu0 0.0
    %702 = vmatpush.msra.mxu0 0.0
    %703 = vmatpush.msra.mxu0 %v348
    %704 = vmatpush.msra.mxu0 %v347
    %705 = vmatpush.msra.mxu0 %v346
    %706 = vmatpush.msra.mxu0 %v345
    %707 = vmatmul.f32.gmra.mxu0 %v689
    %v708 = vpop.f32.mrf.mxu0
    %v709 = vadd.f32 0.0, %v708
    %710 = vdwg.mxu0
    %v712 = vrot.slane %v709, 4
    %v714 = vadd.f32 %v386, %v712
    %v715 = vxor.u32 %v714, 2147483648
    %v716 = vmul.f32 %v715, 1.442695
    %v717 = vpow.pop %v716
    %v718 = vadd.f32 %v717, 1.0
    %v719 = vrcp.pop %v718
    %v720 = vmul.f32 %v718, %v719
    %v721 = vsub.f32 1.0, %v720
    %v722 = vmul.f32 %v719, %v721
    %v723 = vadd.f32 %v719, %v722
    %vm724 = vweird.f32 %v718
    %vm725 = vweird.f32 %v719
    %vm726 = vmor %vm724, %vm725
    %v727 = vsel %vm726, %v719, %v723
    %v728 = vand.u32 2147483647, %v718
    %vm729 = vcmp.eq.f32.partialorder %v728, 8.507059e+37
    %v730 = vand.u32 %v718, 2147483648
    %v731 = vor.u32 1.1754944e-38, %v730
    %v732 = vsel %vm729, %v731, %v727
    %v733 = vmul.f32 1.0, %v732
    %v734 = vtanh.pop %v714
    %v736 = vrot.slane %v608, 6
    %v738 = vmul.f32 %v733, %v736
    %740 = vrot.lane.b32.xlu0 %v734, 64
    %v741 = vpop.permute.xlu0 %740
    %v743 = vmul.f32 %v733, %v741
    %745 = vrot.lane.b32.xlu0 %v743, 32
    %v746 = vpop.permute.xlu0 %745
    %v748 = vadd.f32 %v738, %v746
    %v749 = vtanh.pop %v748
    %751 = vrot.lane.b32.xlu0 %v749, 64
    %v752 = vpop.permute.xlu0 %751
    %v754 = vmul.f32 %v733, %v752
    %v756 = vrot.slane %v684, 4
    %757 = vrot.lane.b32.xlu0 %v756, 32
    %v758 = vpop.permute.xlu0 %757
    %v759 = vsel %vm281, %v758, 0
    %761 = vmatpush.msra.mxu0 0.0
    %762 = vmatpush.msra.mxu0 0.0
    %763 = vmatpush.msra.mxu0 0.0
    %764 = vmatpush.msra.mxu0 0.0
    %765 = vmatpush.msra.mxu0 0.0
    %766 = vmatpush.msra.mxu0 0.0
    %767 = vmatpush.msra.mxu0 0.0
    %768 = vmatpush.msra.mxu0 0.0
    %769 = vmatpush.msra.mxu0 0.0
    %770 = vmatpush.msra.mxu0 0.0
    %771 = vmatpush.msra.mxu0 0.0
    %772 = vmatpush.msra.mxu0 0.0
    %773 = vmatpush.msra.mxu0 %v353
    %774 = vmatpush.msra.mxu0 %v352
    %775 = vmatpush.msra.mxu0 %v351
    %776 = vmatpush.msra.mxu0 %v350
    %777 = vmatmul.f32.gmra.mxu0 %v759
    %v778 = vpop.f32.mrf.mxu0
    %v779 = vadd.f32 0.0, %v778
    %780 = vdwg.mxu0
    %v782 = vrot.slane %v779, 6
    %v784 = vadd.f32 %v422, %v782
    %v785 = vxor.u32 %v784, 2147483648
    %v786 = vmul.f32 %v785, 1.442695
    %v787 = vpow.pop %v786
    %v788 = vadd.f32 %v787, 1.0
    %v789 = vrcp.pop %v788
    %v790 = vmul.f32 %v788, %v789
    %v791 = vsub.f32 1.0, %v790
    %v792 = vmul.f32 %v789, %v791
    %v793 = vadd.f32 %v789, %v792
    %vm794 = vweird.f32 %v788
    %vm795 = vweird.f32 %v789
    %vm796 = vmor %vm794, %vm795
    %v797 = vsel %vm796, %v789, %v793
    %v798 = vand.u32 2147483647, %v788
    %vm799 = vcmp.eq.f32.partialorder %v798, 8.507059e+37
    %v800 = vand.u32 %v788, 2147483648
    %v801 = vor.u32 1.1754944e-38, %v800
    %v802 = vsel %vm799, %v801, %v797
    %v803 = vmul.f32 1.0, %v802
    %v804 = vtanh.pop %v784
    %v806 = vrot.slane %v678, 2
    %v808 = vmul.f32 %v803, %v806
    %810 = vrot.lane.b32.xlu0 %v804, 64
    %v811 = vpop.permute.xlu0 %810
    %v813 = vmul.f32 %v803, %v811
    %815 = vrot.lane.b32.xlu0 %v813, 32
    %v816 = vpop.permute.xlu0 %815
    %v818 = vadd.f32 %v808, %v816
    %v819 = vtanh.pop %v818
    %821 = vrot.lane.b32.xlu0 %v819, 64
    %v822 = vpop.permute.xlu0 %821
    %v824 = vmul.f32 %v803, %v822
    %v826 = vrot.slane %v754, 4
    %827 = vrot.lane.b32.xlu0 %v826, 32
    %v828 = vpop.permute.xlu0 %827
    %v829 = vsel %vm281, %v828, 0
    %831 = vmatpush.msra.mxu0 0.0
    %832 = vmatpush.msra.mxu0 0.0
    %833 = vmatpush.msra.mxu0 0.0
    %834 = vmatpush.msra.mxu0 0.0
    %835 = vmatpush.msra.mxu0 0.0
    %836 = vmatpush.msra.mxu0 0.0
    %837 = vmatpush.msra.mxu0 0.0
    %838 = vmatpush.msra.mxu0 0.0
    %839 = vmatpush.msra.mxu0 0.0
    %840 = vmatpush.msra.mxu0 0.0
    %841 = vmatpush.msra.mxu0 0.0
    %842 = vmatpush.msra.mxu0 0.0
    %843 = vmatpush.msra.mxu0 %v348
    %844 = vmatpush.msra.mxu0 %v347
    %845 = vmatpush.msra.mxu0 %v346
    %846 = vmatpush.msra.mxu0 %v345
    %847 = vmatmul.f32.gmra.mxu0 %v829
    %v848 = vpop.f32.mrf.mxu0
    %v849 = vadd.f32 0.0, %v848
    %850 = vdwg.mxu0
    %v852 = vrot.slane %v849, 2
    %v854 = vadd.f32 %v386, %v852
    %v855 = vxor.u32 %v854, 2147483648
    %v856 = vmul.f32 %v855, 1.442695
    %v857 = vpow.pop %v856
    %v858 = vadd.f32 %v857, 1.0
    %v859 = vrcp.pop %v858
    %v860 = vmul.f32 %v858, %v859
    %v861 = vsub.f32 1.0, %v860
    %v862 = vmul.f32 %v859, %v861
    %v863 = vadd.f32 %v859, %v862
    %vm864 = vweird.f32 %v858
    %vm865 = vweird.f32 %v859
    %vm866 = vmor %vm864, %vm865
    %v867 = vsel %vm866, %v859, %v863
    %v868 = vand.u32 2147483647, %v858
    %vm869 = vcmp.eq.f32.partialorder %v868, 8.507059e+37
    %v870 = vand.u32 %v858, 2147483648
    %v871 = vor.u32 1.1754944e-38, %v870
    %v872 = vsel %vm869, %v871, %v867
    %v873 = vmul.f32 1.0, %v872
    %v874 = vtanh.pop %v854
    %v876 = vrot.slane %v748, 6
    %v878 = vmul.f32 %v873, %v876
    %880 = vrot.lane.b32.xlu0 %v874, 64
    %v881 = vpop.permute.xlu0 %880
    %v883 = vmul.f32 %v873, %v881
    %885 = vrot.lane.b32.xlu0 %v883, 32
    %v886 = vpop.permute.xlu0 %885
    %v888 = vadd.f32 %v878, %v886
    %v889 = vtanh.pop %v888
    %891 = vrot.lane.b32.xlu0 %v889, 64
    %v892 = vpop.permute.xlu0 %891
    %v894 = vmul.f32 %v873, %v892
    %v896 = vrot.slane %v824, 2
    %897 = vrot.lane.b32.xlu0 %v896, 32
    %v898 = vpop.permute.xlu0 %897
    %v899 = vsel %vm281, %v898, 0
    %901 = vmatpush.msra.mxu0 0.0
    %902 = vmatpush.msra.mxu0 0.0
    %903 = vmatpush.msra.mxu0 0.0
    %904 = vmatpush.msra.mxu0 0.0
    %905 = vmatpush.msra.mxu0 0.0
    %906 = vmatpush.msra.mxu0 0.0
    %907 = vmatpush.msra.mxu0 0.0
    %908 = vmatpush.msra.mxu0 0.0
    %909 = vmatpush.msra.mxu0 0.0
    %910 = vmatpush.msra.mxu0 0.0
    %911 = vmatpush.msra.mxu0 0.0
    %912 = vmatpush.msra.mxu0 0.0
    %913 = vmatpush.msra.mxu0 %v353
    %914 = vmatpush.msra.mxu0 %v352
    %915 = vmatpush.msra.mxu0 %v351
    %916 = vmatpush.msra.mxu0 %v350
    %917 = vmatmul.f32.gmra.mxu0 %v899
    %v918 = vpop.f32.mrf.mxu0
    %v919 = vadd.f32 0.0, %v918
    %920 = vdwg.mxu0
    %v921 = vadd.f32 %v422, %v919
    %v922 = vxor.u32 %v921, 2147483648
    %v923 = vmul.f32 %v922, 1.442695
    %v924 = vpow.pop %v923
    %v925 = vadd.f32 %v924, 1.0
    %v926 = vrcp.pop %v925
    %v927 = vmul.f32 %v925, %v926
    %v928 = vsub.f32 1.0, %v927
    %v929 = vmul.f32 %v926, %v928
    %v930 = vadd.f32 %v926, %v929
    %vm931 = vweird.f32 %v925
    %vm932 = vweird.f32 %v926
    %vm933 = vmor %vm931, %vm932
    %v934 = vsel %vm933, %v926, %v930
    %v935 = vand.u32 2147483647, %v925
    %vm936 = vcmp.eq.f32.partialorder %v935, 8.507059e+37
    %v937 = vand.u32 %v925, 2147483648
    %v938 = vor.u32 1.1754944e-38, %v937
    %v939 = vsel %vm936, %v938, %v934
    %v940 = vmul.f32 1.0, %v939
    %v941 = vtanh.pop %v921
    %v943 = vrot.slane %v818, 2
    %v945 = vmul.f32 %v940, %v943
    %947 = vrot.lane.b32.xlu0 %v941, 64
    %v948 = vpop.permute.xlu0 %947
    %v950 = vmul.f32 %v940, %v948
    %952 = vrot.lane.b32.xlu0 %v950, 32
    %v953 = vpop.permute.xlu0 %952
    %v955 = vadd.f32 %v945, %v953
    %v956 = vtanh.pop %v955
    %958 = vrot.lane.b32.xlu0 %v956, 64
    %v959 = vpop.permute.xlu0 %958
    %v961 = vmul.f32 %v940, %v959
    %v963 = vrot.slane %v894, 6
    %964 = vrot.lane.b32.xlu0 %v963, 32
    %v965 = vpop.permute.xlu0 %964
    %v966 = vsel %vm281, %v965, 0
    %968 = vmatpush.msra.mxu0 0.0
    %969 = vmatpush.msra.mxu0 0.0
    %970 = vmatpush.msra.mxu0 0.0
    %971 = vmatpush.msra.mxu0 0.0
    %972 = vmatpush.msra.mxu0 0.0
    %973 = vmatpush.msra.mxu0 0.0
    %974 = vmatpush.msra.mxu0 0.0
    %975 = vmatpush.msra.mxu0 0.0
    %976 = vmatpush.msra.mxu0 0.0
    %977 = vmatpush.msra.mxu0 0.0
    %978 = vmatpush.msra.mxu0 0.0
    %979 = vmatpush.msra.mxu0 0.0
    %980 = vmatpush.msra.mxu0 %v348
    %981 = vmatpush.msra.mxu0 %v347
    %982 = vmatpush.msra.mxu0 %v346
    %983 = vmatpush.msra.mxu0 %v345
    %984 = vmatmul.f32.gmra.mxu0 %v966
    %v985 = vpop.f32.mrf.mxu0
    %v986 = vadd.f32 0.0, %v985
    %987 = vdwg.mxu0
    %v988 = vadd.f32 %v389, %v986
    %v989 = vxor.u32 %v988, 2147483648
    %v990 = vmul.f32 %v989, 1.442695
    %v991 = vpow.pop %v990
    %v992 = vadd.f32 %v991, 1.0
    %v993 = vrcp.pop %v992
    %v994 = vmul.f32 %v992, %v993
    %v995 = vsub.f32 1.0, %v994
    %v996 = vmul.f32 %v993, %v995
    %v997 = vadd.f32 %v993, %v996
    %vm998 = vweird.f32 %v992
    %vm999 = vweird.f32 %v993
    %vm1000 = vmor %vm998, %vm999
    %v1001 = vsel %vm1000, %v993, %v997
    %v1002 = vand.u32 2147483647, %v992
    %vm1003 = vcmp.eq.f32.partialorder %v1002, 8.507059e+37
    %v1004 = vand.u32 %v992, 2147483648
    %v1005 = vor.u32 1.1754944e-38, %v1004
    %v1006 = vsel %vm1003, %v1005, %v1001
    %v1007 = vmul.f32 1.0, %v1006
    %v1008 = vtanh.pop %v988
    %v1010 = vrot.slane %v888, 6
    %v1012 = vmul.f32 %v1007, %v1010
    %1014 = vrot.lane.b32.xlu0 %v1008, 64
    %v1015 = vpop.permute.xlu0 %1014
    %v1017 = vmul.f32 %v1007, %v1015
    %1019 = vrot.lane.b32.xlu0 %v1017, 32
    %v1020 = vpop.permute.xlu0 %1019
    %v1022 = vadd.f32 %v1012, %v1020
    %v1023 = vtanh.pop %v1022
    %1025 = vrot.lane.b32.xlu0 %v1023, 64
    %v1026 = vpop.permute.xlu0 %1025
    %v1028 = vmul.f32 %v1007, %v1026
    %1030 = vrot.lane.b32.xlu0 %v961, 32
    %v1031 = vpop.permute.xlu0 %1030
    %v1032 = vsel %vm281, %v1031, 0
    %1034 = vmatpush.msra.mxu0 0.0
    %1035 = vmatpush.msra.mxu0 0.0
    %1036 = vmatpush.msra.mxu0 0.0
    %1037 = vmatpush.msra.mxu0 0.0
    %1038 = vmatpush.msra.mxu0 0.0
    %1039 = vmatpush.msra.mxu0 0.0
    %1040 = vmatpush.msra.mxu0 0.0
    %1041 = vmatpush.msra.mxu0 0.0
    %1042 = vmatpush.msra.mxu0 0.0
    %1043 = vmatpush.msra.mxu0 0.0
    %1044 = vmatpush.msra.mxu0 0.0
    %1045 = vmatpush.msra.mxu0 0.0
    %1046 = vmatpush.msra.mxu0 %v353
    %1047 = vmatpush.msra.mxu0 %v352
    %1048 = vmatpush.msra.mxu0 %v351
    %1049 = vmatpush.msra.mxu0 %v350
    %1050 = vmatmul.f32.gmra.mxu0 %v1032
    %v1051 = vpop.f32.mrf.mxu0
    %v1052 = vadd.f32 0.0, %v1051
    %1053 = vdwg.mxu0
    %v1055 = vrot.slane %v1052, 2
    %v1057 = vadd.f32 %v419, %v1055
    %v1058 = vxor.u32 %v1057, 2147483648
    %v1059 = vmul.f32 %v1058, 1.442695
    %v1060 = vpow.pop %v1059
    %v1061 = vadd.f32 %v1060, 1.0
    %v1062 = vrcp.pop %v1061
    %v1063 = vmul.f32 %v1061, %v1062
    %v1064 = vsub.f32 1.0, %v1063
    %v1065 = vmul.f32 %v1062, %v1064
    %v1066 = vadd.f32 %v1062, %v1065
    %vm1067 = vweird.f32 %v1061
    %vm1068 = vweird.f32 %v1062
    %vm1069 = vmor %vm1067, %vm1068
    %v1070 = vsel %vm1069, %v1062, %v1066
    %v1071 = vand.u32 2147483647, %v1061
    %vm1072 = vcmp.eq.f32.partialorder %v1071, 8.507059e+37
    %v1073 = vand.u32 %v1061, 2147483648
    %v1074 = vor.u32 1.1754944e-38, %v1073
    %v1075 = vsel %vm1072, %v1074, %v1070
    %v1076 = vmul.f32 1.0, %v1075
    %v1077 = vtanh.pop %v1057
    %v1079 = vrot.slane %v955, 2
    %v1081 = vmul.f32 %v1076, %v1079
    %1083 = vrot.lane.b32.xlu0 %v1077, 64
    %v1084 = vpop.permute.xlu0 %1083
    %v1086 = vmul.f32 %v1076, %v1084
    %1088 = vrot.lane.b32.xlu0 %v1086, 32
    %v1089 = vpop.permute.xlu0 %1088
    %v1091 = vadd.f32 %v1081, %v1089
    %v1092 = vtanh.pop %v1091
    %1094 = vrot.lane.b32.xlu0 %v1092, 64
    %v1095 = vpop.permute.xlu0 %1094
    %v1097 = vmul.f32 %v1076, %v1095
    %1099 = vrot.lane.b32.xlu0 %v1028, 32
    %v1100 = vpop.permute.xlu0 %1099
    %v1101 = vsel %vm281, %v1100, 0
    %1103 = vmatpush.msra.mxu0 0.0
    %1104 = vmatpush.msra.mxu0 0.0
    %1105 = vmatpush.msra.mxu0 0.0
    %1106 = vmatpush.msra.mxu0 0.0
    %1107 = vmatpush.msra.mxu0 0.0
    %1108 = vmatpush.msra.mxu0 0.0
    %1109 = vmatpush.msra.mxu0 0.0
    %1110 = vmatpush.msra.mxu0 0.0
    %1111 = vmatpush.msra.mxu0 0.0
    %1112 = vmatpush.msra.mxu0 0.0
    %1113 = vmatpush.msra.mxu0 0.0
    %1114 = vmatpush.msra.mxu0 0.0
    %1115 = vmatpush.msra.mxu0 %v348
    %1116 = vmatpush.msra.mxu0 %v347
    %1117 = vmatpush.msra.mxu0 %v346
    %1118 = vmatpush.msra.mxu0 %v345
    %1119 = vmatmul.f32.gmra.mxu0 %v1101
    %v1120 = vpop.f32.mrf.mxu0
    %v1121 = vadd.f32 0.0, %v1120
    %1122 = vdwg.mxu0
    %v1124 = vrot.slane %v1121, 6
    %v1126 = vadd.f32 %v389, %v1124
    %v1127 = vxor.u32 %v1126, 2147483648
    %v1128 = vmul.f32 %v1127, 1.442695
    %v1129 = vpow.pop %v1128
    %v1130 = vadd.f32 %v1129, 1.0
    %v1131 = vrcp.pop %v1130
    %v1132 = vmul.f32 %v1130, %v1131
    %v1133 = vsub.f32 1.0, %v1132
    %v1134 = vmul.f32 %v1131, %v1133
    %v1135 = vadd.f32 %v1131, %v1134
    %vm1136 = vweird.f32 %v1130
    %vm1137 = vweird.f32 %v1131
    %vm1138 = vmor %vm1136, %vm1137
    %v1139 = vsel %vm1138, %v1131, %v1135
    %v1140 = vand.u32 2147483647, %v1130
    %vm1141 = vcmp.eq.f32.partialorder %v1140, 8.507059e+37
    %v1142 = vand.u32 %v1130, 2147483648
    %v1143 = vor.u32 1.1754944e-38, %v1142
    %v1144 = vsel %vm1141, %v1143, %v1139
    %v1145 = vmul.f32 1.0, %v1144
    %v1146 = vtanh.pop %v1126
    %v1148 = vrot.slane %v1022, 6
    %v1150 = vmul.f32 %v1145, %v1148
    %1152 = vrot.lane.b32.xlu0 %v1146, 64
    %v1153 = vpop.permute.xlu0 %1152
    %v1155 = vmul.f32 %v1145, %v1153
    %1157 = vrot.lane.b32.xlu0 %v1155, 32
    %v1158 = vpop.permute.xlu0 %1157
    %v1160 = vadd.f32 %v1150, %v1158
    %v1161 = vtanh.pop %v1160
    %1163 = vrot.lane.b32.xlu0 %v1161, 64
    %v1164 = vpop.permute.xlu0 %1163
    %v1166 = vmul.f32 %v1145, %v1164
    %v1168 = vrot.slane %v1097, 6
    %1169 = vrot.lane.b32.xlu0 %v1168, 32
    %v1170 = vpop.permute.xlu0 %1169
    %v1171 = vsel %vm281, %v1170, 0
    %1173 = vmatpush.msra.mxu0 0.0
    %1174 = vmatpush.msra.mxu0 0.0
    %1175 = vmatpush.msra.mxu0 0.0
    %1176 = vmatpush.msra.mxu0 0.0
    %1177 = vmatpush.msra.mxu0 0.0
    %1178 = vmatpush.msra.mxu0 0.0
    %1179 = vmatpush.msra.mxu0 0.0
    %1180 = vmatpush.msra.mxu0 0.0
    %1181 = vmatpush.msra.mxu0 0.0
    %1182 = vmatpush.msra.mxu0 0.0
    %1183 = vmatpush.msra.mxu0 0.0
    %1184 = vmatpush.msra.mxu0 0.0
    %1185 = vmatpush.msra.mxu0 %v353
    %1186 = vmatpush.msra.mxu0 %v352
    %1187 = vmatpush.msra.mxu0 %v351
    %1188 = vmatpush.msra.mxu0 %v350
    %1189 = vmatmul.f32.gmra.mxu0 %v1171
    %v1190 = vpop.f32.mrf.mxu0
    %v1191 = vadd.f32 0.0, %v1190
    %1192 = vdwg.mxu0
    %v1194 = vrot.slane %v1191, 4
    %v1196 = vadd.f32 %v419, %v1194
    %v1197 = vxor.u32 %v1196, 2147483648
    %v1198 = vmul.f32 %v1197, 1.442695
    %v1199 = vpow.pop %v1198
    %v1200 = vadd.f32 %v1199, 1.0
    %v1201 = vrcp.pop %v1200
    %v1202 = vmul.f32 %v1200, %v1201
    %v1203 = vsub.f32 1.0, %v1202
    %v1204 = vmul.f32 %v1201, %v1203
    %v1205 = vadd.f32 %v1201, %v1204
    %vm1206 = vweird.f32 %v1200
    %vm1207 = vweird.f32 %v1201
    %vm1208 = vmor %vm1206, %vm1207
    %v1209 = vsel %vm1208, %v1201, %v1205
    %v1210 = vand.u32 2147483647, %v1200
    %vm1211 = vcmp.eq.f32.partialorder %v1210, 8.507059e+37
    %v1212 = vand.u32 %v1200, 2147483648
    %v1213 = vor.u32 1.1754944e-38, %v1212
    %v1214 = vsel %vm1211, %v1213, %v1209
    %v1215 = vmul.f32 1.0, %v1214
    %v1216 = vtanh.pop %v1196
    %v1218 = vrot.slane %v1091, 2
    %v1220 = vmul.f32 %v1215, %v1218
    %1222 = vrot.lane.b32.xlu0 %v1216, 64
    %v1223 = vpop.permute.xlu0 %1222
    %v1225 = vmul.f32 %v1215, %v1223
    %1227 = vrot.lane.b32.xlu0 %v1225, 32
    %v1228 = vpop.permute.xlu0 %1227
    %v1230 = vadd.f32 %v1220, %v1228
    %v1231 = vtanh.pop %v1230
    %1233 = vrot.lane.b32.xlu0 %v1231, 64
    %v1234 = vpop.permute.xlu0 %1233
    %v1236 = vmul.f32 %v1215, %v1234
    %v1238 = vrot.slane %v1166, 2
    %1239 = vrot.lane.b32.xlu0 %v1238, 32
    %v1240 = vpop.permute.xlu0 %1239
    %v1241 = vsel %vm281, %v1240, 0
    %1243 = vmatpush.msra.mxu0 0.0
    %1244 = vmatpush.msra.mxu0 0.0
    %1245 = vmatpush.msra.mxu0 0.0
    %1246 = vmatpush.msra.mxu0 0.0
    %1247 = vmatpush.msra.mxu0 0.0
    %1248 = vmatpush.msra.mxu0 0.0
    %1249 = vmatpush.msra.mxu0 0.0
    %1250 = vmatpush.msra.mxu0 0.0
    %1251 = vmatpush.msra.mxu0 0.0
    %1252 = vmatpush.msra.mxu0 0.0
    %1253 = vmatpush.msra.mxu0 0.0
    %1254 = vmatpush.msra.mxu0 0.0
    %1255 = vmatpush.msra.mxu0 %v348
    %1256 = vmatpush.msra.mxu0 %v347
    %1257 = vmatpush.msra.mxu0 %v346
    %1258 = vmatpush.msra.mxu0 %v345
    %1259 = vmatmul.f32.gmra.mxu0 %v1241
    %v1260 = vpop.f32.mrf.mxu0
    %v1261 = vadd.f32 0.0, %v1260
    %1262 = vdwg.mxu0
    %v1264 = vrot.slane %v1261, 4
    %v1266 = vadd.f32 %v389, %v1264
    %v1267 = vxor.u32 %v1266, 2147483648
    %v1268 = vmul.f32 %v1267, 1.442695
    %v1269 = vpow.pop %v1268
    %v1270 = vadd.f32 %v1269, 1.0
    %v1271 = vrcp.pop %v1270
    %v1272 = vmul.f32 %v1270, %v1271
    %v1273 = vsub.f32 1.0, %v1272
    %v1274 = vmul.f32 %v1271, %v1273
    %v1275 = vadd.f32 %v1271, %v1274
    %vm1276 = vweird.f32 %v1270
    %vm1277 = vweird.f32 %v1271
    %vm1278 = vmor %vm1276, %vm1277
    %v1279 = vsel %vm1278, %v1271, %v1275
    %v1280 = vand.u32 2147483647, %v1270
    %vm1281 = vcmp.eq.f32.partialorder %v1280, 8.507059e+37
    %v1282 = vand.u32 %v1270, 2147483648
    %v1283 = vor.u32 1.1754944e-38, %v1282
    %v1284 = vsel %vm1281, %v1283, %v1279
    %v1285 = vmul.f32 1.0, %v1284
    %v1286 = vtanh.pop %v1266
    %v1288 = vrot.slane %v1160, 6
    %v1290 = vmul.f32 %v1285, %v1288
    %1292 = vrot.lane.b32.xlu0 %v1286, 64
    %v1293 = vpop.permute.xlu0 %1292
    %v1295 = vmul.f32 %v1285, %v1293
    %1297 = vrot.lane.b32.xlu0 %v1295, 32
    %v1298 = vpop.permute.xlu0 %1297
    %v1300 = vadd.f32 %v1290, %v1298
    %v1301 = vtanh.pop %v1300
    %1303 = vrot.lane.b32.xlu0 %v1301, 64
    %v1304 = vpop.permute.xlu0 %1303
    %v1306 = vmul.f32 %v1285, %v1304
    %v1308 = vrot.slane %v1236, 4
    %1309 = vrot.lane.b32.xlu0 %v1308, 32
    %v1310 = vpop.permute.xlu0 %1309
    %v1311 = vsel %vm281, %v1310, 0
    %1313 = vmatpush.msra.mxu0 0.0
    %1314 = vmatpush.msra.mxu0 0.0
    %1315 = vmatpush.msra.mxu0 0.0
    %1316 = vmatpush.msra.mxu0 0.0
    %1317 = vmatpush.msra.mxu0 0.0
    %1318 = vmatpush.msra.mxu0 0.0
    %1319 = vmatpush.msra.mxu0 0.0
    %1320 = vmatpush.msra.mxu0 0.0
    %1321 = vmatpush.msra.mxu0 0.0
    %1322 = vmatpush.msra.mxu0 0.0
    %1323 = vmatpush.msra.mxu0 0.0
    %1324 = vmatpush.msra.mxu0 0.0
    %1325 = vmatpush.msra.mxu0 %v353
    %1326 = vmatpush.msra.mxu0 %v352
    %1327 = vmatpush.msra.mxu0 %v351
    %1328 = vmatpush.msra.mxu0 %v350
    %1329 = vmatmul.f32.gmra.mxu0 %v1311
    %v1330 = vpop.f32.mrf.mxu0
    %v1331 = vadd.f32 0.0, %v1330
    %1332 = vdwg.mxu0
    %v1334 = vrot.slane %v1331, 6
    %v1336 = vadd.f32 %v419, %v1334
    %v1337 = vxor.u32 %v1336, 2147483648
    %v1338 = vmul.f32 %v1337, 1.442695
    %v1339 = vpow.pop %v1338
    %v1340 = vadd.f32 %v1339, 1.0
    %v1341 = vrcp.pop %v1340
    %v1342 = vmul.f32 %v1340, %v1341
    %v1343 = vsub.f32 1.0, %v1342
    %v1344 = vmul.f32 %v1341, %v1343
    %v1345 = vadd.f32 %v1341, %v1344
    %vm1346 = vweird.f32 %v1340
    %vm1347 = vweird.f32 %v1341
    %vm1348 = vmor %vm1346, %vm1347
    %v1349 = vsel %vm1348, %v1341, %v1345
    %v1350 = vand.u32 2147483647, %v1340
    %vm1351 = vcmp.eq.f32.partialorder %v1350, 8.507059e+37
    %v1352 = vand.u32 %v1340, 2147483648
    %v1353 = vor.u32 1.1754944e-38, %v1352
    %v1354 = vsel %vm1351, %v1353, %v1349
    %v1355 = vmul.f32 1.0, %v1354
    %v1356 = vtanh.pop %v1336
    %v1358 = vrot.slane %v1230, 2
    %v1360 = vmul.f32 %v1355, %v1358
    %1362 = vrot.lane.b32.xlu0 %v1356, 64
    %v1363 = vpop.permute.xlu0 %1362
    %v1365 = vmul.f32 %v1355, %v1363
    %1367 = vrot.lane.b32.xlu0 %v1365, 32
    %v1368 = vpop.permute.xlu0 %1367
    %v1370 = vadd.f32 %v1360, %v1368
    %v1371 = vtanh.pop %v1370
    %1373 = vrot.lane.b32.xlu0 %v1371, 64
    %v1374 = vpop.permute.xlu0 %1373
    %v1376 = vmul.f32 %v1355, %v1374
    %v1378 = vrot.slane %v1306, 4
    %1379 = vrot.lane.b32.xlu0 %v1378, 32
    %v1380 = vpop.permute.xlu0 %1379
    %v1381 = vsel %vm281, %v1380, 0
    %1383 = vmatpush.msra.mxu0 0.0
    %1384 = vmatpush.msra.mxu0 0.0
    %1385 = vmatpush.msra.mxu0 0.0
    %1386 = vmatpush.msra.mxu0 0.0
    %1387 = vmatpush.msra.mxu0 0.0
    %1388 = vmatpush.msra.mxu0 0.0
    %1389 = vmatpush.msra.mxu0 0.0
    %1390 = vmatpush.msra.mxu0 0.0
    %1391 = vmatpush.msra.mxu0 0.0
    %1392 = vmatpush.msra.mxu0 0.0
    %1393 = vmatpush.msra.mxu0 0.0
    %1394 = vmatpush.msra.mxu0 0.0
    %1395 = vmatpush.msra.mxu0 %v348
    %1396 = vmatpush.msra.mxu0 %v347
    %1397 = vmatpush.msra.mxu0 %v346
    %1398 = vmatpush.msra.mxu0 %v345
    %1399 = vmatmul.f32.gmra.mxu0 %v1381
    %v1400 = vpop.f32.mrf.mxu0
    %v1401 = vadd.f32 0.0, %v1400
    %1402 = vdwg.mxu0
    %v1404 = vrot.slane %v1401, 2
    %v1406 = vadd.f32 %v389, %v1404
    %v1407 = vxor.u32 %v1406, 2147483648
    %v1408 = vmul.f32 %v1407, 1.442695
    %v1409 = vpow.pop %v1408
    %v1410 = vadd.f32 %v1409, 1.0
    %v1411 = vrcp.pop %v1410
    %v1412 = vmul.f32 %v1410, %v1411
    %v1413 = vsub.f32 1.0, %v1412
    %v1414 = vmul.f32 %v1411, %v1413
    %v1415 = vadd.f32 %v1411, %v1414
    %vm1416 = vweird.f32 %v1410
    %vm1417 = vweird.f32 %v1411
    %vm1418 = vmor %vm1416, %vm1417
    %v1419 = vsel %vm1418, %v1411, %v1415
    %v1420 = vand.u32 2147483647, %v1410
    %vm1421 = vcmp.eq.f32.partialorder %v1420, 8.507059e+37
    %v1422 = vand.u32 %v1410, 2147483648
    %v1423 = vor.u32 1.1754944e-38, %v1422
    %v1424 = vsel %vm1421, %v1423, %v1419
    %v1425 = vmul.f32 1.0, %v1424
    %v1426 = vtanh.pop %v1406
    %v1428 = vrot.slane %v1300, 6
    %v1430 = vmul.f32 %v1425, %v1428
    %1432 = vrot.lane.b32.xlu0 %v1426, 64
    %v1433 = vpop.permute.xlu0 %1432
    %v1435 = vmul.f32 %v1425, %v1433
    %1437 = vrot.lane.b32.xlu0 %v1435, 32
    %v1438 = vpop.permute.xlu0 %1437
    %v1440 = vadd.f32 %v1430, %v1438
    %v1441 = vtanh.pop %v1440
    %1443 = vrot.lane.b32.xlu0 %v1441, 64
    %v1444 = vpop.permute.xlu0 %1443
    %v1446 = vmul.f32 %v1425, %v1444
    %v1448 = vrot.slane %v1376, 2
    %1449 = vrot.lane.b32.xlu0 %v1448, 32
    %v1450 = vpop.permute.xlu0 %1449
    %v1451 = vsel %vm281, %v1450, 0
    %1453 = vmatpush.msra.mxu0 0.0
    %1454 = vmatpush.msra.mxu0 0.0
    %1455 = vmatpush.msra.mxu0 0.0
    %1456 = vmatpush.msra.mxu0 0.0
    %1457 = vmatpush.msra.mxu0 0.0
    %1458 = vmatpush.msra.mxu0 0.0
    %1459 = vmatpush.msra.mxu0 0.0
    %1460 = vmatpush.msra.mxu0 0.0
    %1461 = vmatpush.msra.mxu0 0.0
    %1462 = vmatpush.msra.mxu0 0.0
    %1463 = vmatpush.msra.mxu0 0.0
    %1464 = vmatpush.msra.mxu0 0.0
    %1465 = vmatpush.msra.mxu0 %v353
    %1466 = vmatpush.msra.mxu0 %v352
    %1467 = vmatpush.msra.mxu0 %v351
    %1468 = vmatpush.msra.mxu0 %v350
    %1469 = vmatmul.f32.gmra.mxu0 %v1451
    %v1470 = vpop.f32.mrf.mxu0
    %v1471 = vadd.f32 0.0, %v1470
    %1472 = vdwg.mxu0
    %v1473 = vadd.f32 %v419, %v1471
    %v1474 = vxor.u32 %v1473, 2147483648
    %v1475 = vmul.f32 %v1474, 1.442695
    %v1476 = vpow.pop %v1475
    %v1477 = vadd.f32 %v1476, 1.0
    %v1478 = vrcp.pop %v1477
    %v1479 = vmul.f32 %v1477, %v1478
    %v1480 = vsub.f32 1.0, %v1479
    %v1481 = vmul.f32 %v1478, %v1480
    %v1482 = vadd.f32 %v1478, %v1481
    %vm1483 = vweird.f32 %v1477
    %vm1484 = vweird.f32 %v1478
    %vm1485 = vmor %vm1483, %vm1484
    %v1486 = vsel %vm1485, %v1478, %v1482
    %v1487 = vand.u32 2147483647, %v1477
    %vm1488 = vcmp.eq.f32.partialorder %v1487, 8.507059e+37
    %v1489 = vand.u32 %v1477, 2147483648
    %v1490 = vor.u32 1.1754944e-38, %v1489
    %v1491 = vsel %vm1488, %v1490, %v1486
    %v1492 = vmul.f32 1.0, %v1491
    %v1493 = vtanh.pop %v1473
    %v1495 = vrot.slane %v1370, 2
    %v1497 = vmul.f32 %v1492, %v1495
    %1499 = vrot.lane.b32.xlu0 %v1493, 64
    %v1500 = vpop.permute.xlu0 %1499
    %v1502 = vmul.f32 %v1492, %v1500
    %1504 = vrot.lane.b32.xlu0 %v1502, 32
    %v1505 = vpop.permute.xlu0 %1504
    %v1507 = vadd.f32 %v1497, %v1505
    %v1508 = vtanh.pop %v1507
    %1510 = vrot.lane.b32.xlu0 %v1508, 64
    %v1511 = vpop.permute.xlu0 %1510
    %v1513 = vmul.f32 %v1492, %v1511
    %v1514 = vld [vmem:[#allocation11] sm:$0xff]
    %v1515 = vld [vmem:[#allocation11 + $0x8] sm:$0xff]
    %v1516 = vld [vmem:[#allocation11 + $0x10] sm:$0xff]
    %v1517 = vld [vmem:[#allocation11 + $0x18] sm:$0xff]
    %s1518 = scalar_lea.vmem [#allocation11], 32
    %v1519 = vld [vmem:[%s1518] sm:$0xff]
    %v1520 = vld [vmem:[%s1518 + $0x8] sm:$0xff]
    %v1521 = vld [vmem:[%s1518 + $0x10] sm:$0xff]
    %v1522 = vld [vmem:[%s1518 + $0x18] sm:$0xff]
    %v1523 = vld [vmem:[#allocation8] sm:$0xff]
    %v1524 = vld [vmem:[#allocation8 + $0x8] sm:$0xff]
    %v1525 = vld [vmem:[#allocation8 + $0x10] sm:$0xff]
    %v1526 = vld [vmem:[#allocation8 + $0x18] sm:$0xff]
    %v1527 = vld [vmem:[#allocation10] sm:$0xff]
    %v1528 = vld [vmem:[#allocation10 + $0x8] sm:$0xff]
    %v1529 = vld [vmem:[#allocation10 + $0x10] sm:$0xff]
    %v1530 = vld [vmem:[#allocation10 + $0x18] sm:$0xff]
    %1532 = vrot.lane.b32.xlu0 %v1513, 32
    %v1533 = vpop.permute.xlu0 %1532
    %v1534 = vsel %vm281, %v1533, 0
    %1536 = vmatpush.msra.mxu0 0.0
    %1537 = vmatpush.msra.mxu0 0.0
    %1538 = vmatpush.msra.mxu0 0.0
    %1539 = vmatpush.msra.mxu0 0.0
    %1540 = vmatpush.msra.mxu0 0.0
    %1541 = vmatpush.msra.mxu0 0.0
    %1542 = vmatpush.msra.mxu0 0.0
    %1543 = vmatpush.msra.mxu0 0.0
    %1544 = vmatpush.msra.mxu0 0.0
    %1545 = vmatpush.msra.mxu0 0.0
    %1546 = vmatpush.msra.mxu0 0.0
    %1547 = vmatpush.msra.mxu0 0.0
    %1548 = vmatpush.msra.mxu0 %v1530
    %1549 = vmatpush.msra.mxu0 %v1529
    %1550 = vmatpush.msra.mxu0 %v1528
    %1551 = vmatpush.msra.mxu0 %v1527
    %1552 = vmatmul.f32.gmra.mxu0 %v1534
    %v1553 = vpop.f32.mrf.mxu0
    %v1554 = vadd.f32 0.0, %v1553
    %1555 = vdwg.mxu0
    %1556 = vmatpush.msra.mxu0 0.0
    %1557 = vmatpush.msra.mxu0 0.0
    %1558 = vmatpush.msra.mxu0 0.0
    %1559 = vmatpush.msra.mxu0 0.0
    %1560 = vmatpush.msra.mxu0 0.0
    %1561 = vmatpush.msra.mxu0 0.0
    %1562 = vmatpush.msra.mxu0 0.0
    %1563 = vmatpush.msra.mxu0 0.0
    %1564 = vmatpush.msra.mxu0 0.0
    %1565 = vmatpush.msra.mxu0 0.0
    %1566 = vmatpush.msra.mxu0 0.0
    %1567 = vmatpush.msra.mxu0 0.0
    %1568 = vmatpush.msra.mxu0 %v1526
    %1569 = vmatpush.msra.mxu0 %v1525
    %1570 = vmatpush.msra.mxu0 %v1524
    %1571 = vmatpush.msra.mxu0 %v1523
    %1572 = vmatmul.f32.gmra.mxu0 %v549
    %v1573 = vpop.f32.mrf.mxu0
    %v1574 = vadd.f32 %v1554, %v1573
    %1575 = vdwg.mxu0
    %v1576 = vld [vmem:[#allocation13] sm:$0x1]
    %v1578 = vperm.slane %v1576, 0
    %v1580 = vadd.f32 %v1574, %v1578
    %1581 = vmatpush.msra.mxu0 0.0
    %1582 = vmatpush.msra.mxu0 0.0
    %1583 = vmatpush.msra.mxu0 0.0
    %1584 = vmatpush.msra.mxu0 0.0
    %1585 = vmatpush.msra.mxu0 0.0
    %1586 = vmatpush.msra.mxu0 0.0
    %1587 = vmatpush.msra.mxu0 0.0
    %1588 = vmatpush.msra.mxu0 0.0
    %1589 = vmatpush.msra.mxu0 0.0
    %1590 = vmatpush.msra.mxu0 0.0
    %1591 = vmatpush.msra.mxu0 0.0
    %1592 = vmatpush.msra.mxu0 0.0
    %1593 = vmatpush.msra.mxu0 %v1530
    %1594 = vmatpush.msra.mxu0 %v1529
    %1595 = vmatpush.msra.mxu0 %v1528
    %1596 = vmatpush.msra.mxu0 %v1527
    %1597 = vmatmul.f32.gmra.mxu0 %v1451
    %v1598 = vpop.f32.mrf.mxu0
    %v1599 = vadd.f32 0.0, %v1598
    %1600 = vdwg.mxu0
    %1601 = vmatpush.msra.mxu0 0.0
    %1602 = vmatpush.msra.mxu0 0.0
    %1603 = vmatpush.msra.mxu0 0.0
    %1604 = vmatpush.msra.mxu0 0.0
    %1605 = vmatpush.msra.mxu0 0.0
    %1606 = vmatpush.msra.mxu0 0.0
    %1607 = vmatpush.msra.mxu0 0.0
    %1608 = vmatpush.msra.mxu0 0.0
    %1609 = vmatpush.msra.mxu0 0.0
    %1610 = vmatpush.msra.mxu0 0.0
    %1611 = vmatpush.msra.mxu0 0.0
    %1612 = vmatpush.msra.mxu0 0.0
    %1613 = vmatpush.msra.mxu0 %v1526
    %1614 = vmatpush.msra.mxu0 %v1525
    %1615 = vmatpush.msra.mxu0 %v1524
    %1616 = vmatpush.msra.mxu0 %v1523
    %1617 = vmatmul.f32.gmra.mxu0 %v689
    %v1618 = vpop.f32.mrf.mxu0
    %v1619 = vadd.f32 %v1599, %v1618
    %1620 = vdwg.mxu0
    %v1621 = vadd.f32 %v1619, %v1578
    %1622 = vmatpush.msra.mxu0 0.0
    %1623 = vmatpush.msra.mxu0 0.0
    %1624 = vmatpush.msra.mxu0 0.0
    %1625 = vmatpush.msra.mxu0 0.0
    %1626 = vmatpush.msra.mxu0 0.0
    %1627 = vmatpush.msra.mxu0 0.0
    %1628 = vmatpush.msra.mxu0 0.0
    %1629 = vmatpush.msra.mxu0 0.0
    %1630 = vmatpush.msra.mxu0 0.0
    %1631 = vmatpush.msra.mxu0 0.0
    %1632 = vmatpush.msra.mxu0 0.0
    %1633 = vmatpush.msra.mxu0 0.0
    %1634 = vmatpush.msra.mxu0 %v1530
    %1635 = vmatpush.msra.mxu0 %v1529
    %1636 = vmatpush.msra.mxu0 %v1528
    %1637 = vmatpush.msra.mxu0 %v1527
    %1638 = vmatmul.f32.gmra.mxu0 %v1311
    %v1639 = vpop.f32.mrf.mxu0
    %v1640 = vadd.f32 0.0, %v1639
    %1641 = vdwg.mxu0
    %1642 = vmatpush.msra.mxu0 0.0
    %1643 = vmatpush.msra.mxu0 0.0
    %1644 = vmatpush.msra.mxu0 0.0
    %1645 = vmatpush.msra.mxu0 0.0
    %1646 = vmatpush.msra.mxu0 0.0
    %1647 = vmatpush.msra.mxu0 0.0
    %1648 = vmatpush.msra.mxu0 0.0
    %1649 = vmatpush.msra.mxu0 0.0
    %1650 = vmatpush.msra.mxu0 0.0
    %1651 = vmatpush.msra.mxu0 0.0
    %1652 = vmatpush.msra.mxu0 0.0
    %1653 = vmatpush.msra.mxu0 0.0
    %1654 = vmatpush.msra.mxu0 %v1526
    %1655 = vmatpush.msra.mxu0 %v1525
    %1656 = vmatpush.msra.mxu0 %v1524
    %1657 = vmatpush.msra.mxu0 %v1523
    %1658 = vmatmul.f32.gmra.mxu0 %v829
    %v1659 = vpop.f32.mrf.mxu0
    %v1660 = vadd.f32 %v1640, %v1659
    %1661 = vdwg.mxu0
    %v1662 = vadd.f32 %v1660, %v1578
    %1663 = vmatpush.msra.mxu0 0.0
    %1664 = vmatpush.msra.mxu0 0.0
    %1665 = vmatpush.msra.mxu0 0.0
    %1666 = vmatpush.msra.mxu0 0.0
    %1667 = vmatpush.msra.mxu0 0.0
    %1668 = vmatpush.msra.mxu0 0.0
    %1669 = vmatpush.msra.mxu0 0.0
    %1670 = vmatpush.msra.mxu0 0.0
    %1671 = vmatpush.msra.mxu0 0.0
    %1672 = vmatpush.msra.mxu0 0.0
    %1673 = vmatpush.msra.mxu0 0.0
    %1674 = vmatpush.msra.mxu0 0.0
    %1675 = vmatpush.msra.mxu0 %v1530
    %1676 = vmatpush.msra.mxu0 %v1529
    %1677 = vmatpush.msra.mxu0 %v1528
    %1678 = vmatpush.msra.mxu0 %v1527
    %1679 = vmatmul.f32.gmra.mxu0 %v1171
    %v1680 = vpop.f32.mrf.mxu0
    %v1681 = vadd.f32 0.0, %v1680
    %1682 = vdwg.mxu0
    %1683 = vmatpush.msra.mxu0 0.0
    %1684 = vmatpush.msra.mxu0 0.0
    %1685 = vmatpush.msra.mxu0 0.0
    %1686 = vmatpush.msra.mxu0 0.0
    %1687 = vmatpush.msra.mxu0 0.0
    %1688 = vmatpush.msra.mxu0 0.0
    %1689 = vmatpush.msra.mxu0 0.0
    %1690 = vmatpush.msra.mxu0 0.0
    %1691 = vmatpush.msra.mxu0 0.0
    %1692 = vmatpush.msra.mxu0 0.0
    %1693 = vmatpush.msra.mxu0 0.0
    %1694 = vmatpush.msra.mxu0 0.0
    %1695 = vmatpush.msra.mxu0 %v1526
    %1696 = vmatpush.msra.mxu0 %v1525
    %1697 = vmatpush.msra.mxu0 %v1524
    %1698 = vmatpush.msra.mxu0 %v1523
    %1699 = vmatmul.f32.gmra.mxu0 %v966
    %v1700 = vpop.f32.mrf.mxu0
    %v1701 = vadd.f32 %v1681, %v1700
    %1702 = vdwg.mxu0
    %v1703 = vadd.f32 %v1701, %v1578
    %1704 = vmatpush.msra.mxu0 0.0
    %1705 = vmatpush.msra.mxu0 0.0
    %1706 = vmatpush.msra.mxu0 0.0
    %1707 = vmatpush.msra.mxu0 0.0
    %1708 = vmatpush.msra.mxu0 0.0
    %1709 = vmatpush.msra.mxu0 0.0
    %1710 = vmatpush.msra.mxu0 0.0
    %1711 = vmatpush.msra.mxu0 0.0
    %1712 = vmatpush.msra.mxu0 0.0
    %1713 = vmatpush.msra.mxu0 0.0
    %1714 = vmatpush.msra.mxu0 0.0
    %1715 = vmatpush.msra.mxu0 0.0
    %1716 = vmatpush.msra.mxu0 %v1530
    %1717 = vmatpush.msra.mxu0 %v1529
    %1718 = vmatpush.msra.mxu0 %v1528
    %1719 = vmatpush.msra.mxu0 %v1527
    %1720 = vmatmul.f32.gmra.mxu0 %v1032
    %v1721 = vpop.f32.mrf.mxu0
    %v1722 = vadd.f32 0.0, %v1721
    %1723 = vdwg.mxu0
    %1724 = vmatpush.msra.mxu0 0.0
    %1725 = vmatpush.msra.mxu0 0.0
    %1726 = vmatpush.msra.mxu0 0.0
    %1727 = vmatpush.msra.mxu0 0.0
    %1728 = vmatpush.msra.mxu0 0.0
    %1729 = vmatpush.msra.mxu0 0.0
    %1730 = vmatpush.msra.mxu0 0.0
    %1731 = vmatpush.msra.mxu0 0.0
    %1732 = vmatpush.msra.mxu0 0.0
    %1733 = vmatpush.msra.mxu0 0.0
    %1734 = vmatpush.msra.mxu0 0.0
    %1735 = vmatpush.msra.mxu0 0.0
    %1736 = vmatpush.msra.mxu0 %v1526
    %1737 = vmatpush.msra.mxu0 %v1525
    %1738 = vmatpush.msra.mxu0 %v1524
    %1739 = vmatpush.msra.mxu0 %v1523
    %1740 = vmatmul.f32.gmra.mxu0 %v1101
    %v1741 = vpop.f32.mrf.mxu0
    %v1742 = vadd.f32 %v1722, %v1741
    %1743 = vdwg.mxu0
    %v1744 = vadd.f32 %v1742, %v1578
    %1745 = vmatpush.msra.mxu0 0.0
    %1746 = vmatpush.msra.mxu0 0.0
    %1747 = vmatpush.msra.mxu0 0.0
    %1748 = vmatpush.msra.mxu0 0.0
    %1749 = vmatpush.msra.mxu0 0.0
    %1750 = vmatpush.msra.mxu0 0.0
    %1751 = vmatpush.msra.mxu0 0.0
    %1752 = vmatpush.msra.mxu0 0.0
    %1753 = vmatpush.msra.mxu0 0.0
    %1754 = vmatpush.msra.mxu0 0.0
    %1755 = vmatpush.msra.mxu0 0.0
    %1756 = vmatpush.msra.mxu0 0.0
    %1757 = vmatpush.msra.mxu0 %v1530
    %1758 = vmatpush.msra.mxu0 %v1529
    %1759 = vmatpush.msra.mxu0 %v1528
    %1760 = vmatpush.msra.mxu0 %v1527
    %1761 = vmatmul.f32.gmra.mxu0 %v899
    %v1762 = vpop.f32.mrf.mxu0
    %v1763 = vadd.f32 0.0, %v1762
    %1764 = vdwg.mxu0
    %1765 = vmatpush.msra.mxu0 0.0
    %1766 = vmatpush.msra.mxu0 0.0
    %1767 = vmatpush.msra.mxu0 0.0
    %1768 = vmatpush.msra.mxu0 0.0
    %1769 = vmatpush.msra.mxu0 0.0
    %1770 = vmatpush.msra.mxu0 0.0
    %1771 = vmatpush.msra.mxu0 0.0
    %1772 = vmatpush.msra.mxu0 0.0
    %1773 = vmatpush.msra.mxu0 0.0
    %1774 = vmatpush.msra.mxu0 0.0
    %1775 = vmatpush.msra.mxu0 0.0
    %1776 = vmatpush.msra.mxu0 0.0
    %1777 = vmatpush.msra.mxu0 %v1526
    %1778 = vmatpush.msra.mxu0 %v1525
    %1779 = vmatpush.msra.mxu0 %v1524
    %1780 = vmatpush.msra.mxu0 %v1523
    %1781 = vmatmul.f32.gmra.mxu0 %v1241
    %v1782 = vpop.f32.mrf.mxu0
    %v1783 = vadd.f32 %v1763, %v1782
    %1784 = vdwg.mxu0
    %v1785 = vadd.f32 %v1783, %v1578
    %1786 = vmatpush.msra.mxu0 0.0
    %1787 = vmatpush.msra.mxu0 0.0
    %1788 = vmatpush.msra.mxu0 0.0
    %1789 = vmatpush.msra.mxu0 0.0
    %1790 = vmatpush.msra.mxu0 0.0
    %1791 = vmatpush.msra.mxu0 0.0
    %1792 = vmatpush.msra.mxu0 0.0
    %1793 = vmatpush.msra.mxu0 0.0
    %1794 = vmatpush.msra.mxu0 0.0
    %1795 = vmatpush.msra.mxu0 0.0
    %1796 = vmatpush.msra.mxu0 0.0
    %1797 = vmatpush.msra.mxu0 0.0
    %1798 = vmatpush.msra.mxu0 %v1530
    %1799 = vmatpush.msra.mxu0 %v1529
    %1800 = vmatpush.msra.mxu0 %v1528
    %1801 = vmatpush.msra.mxu0 %v1527
    %1802 = vmatmul.f32.gmra.mxu0 %v759
    %v1803 = vpop.f32.mrf.mxu0
    %v1804 = vadd.f32 0.0, %v1803
    %1805 = vdwg.mxu0
    %1806 = vmatpush.msra.mxu0 0.0
    %1807 = vmatpush.msra.mxu0 0.0
    %1808 = vmatpush.msra.mxu0 0.0
    %1809 = vmatpush.msra.mxu0 0.0
    %1810 = vmatpush.msra.mxu0 0.0
    %1811 = vmatpush.msra.mxu0 0.0
    %1812 = vmatpush.msra.mxu0 0.0
    %1813 = vmatpush.msra.mxu0 0.0
    %1814 = vmatpush.msra.mxu0 0.0
    %1815 = vmatpush.msra.mxu0 0.0
    %1816 = vmatpush.msra.mxu0 0.0
    %1817 = vmatpush.msra.mxu0 0.0
    %1818 = vmatpush.msra.mxu0 %v1526
    %1819 = vmatpush.msra.mxu0 %v1525
    %1820 = vmatpush.msra.mxu0 %v1524
    %1821 = vmatpush.msra.mxu0 %v1523
    %1822 = vmatmul.f32.gmra.mxu0 %v1381
    %v1823 = vpop.f32.mrf.mxu0
    %v1824 = vadd.f32 %v1804, %v1823
    %1825 = vdwg.mxu0
    %v1826 = vadd.f32 %v1824, %v1578
    %1827 = vmatpush.msra.mxu0 0.0
    %1828 = vmatpush.msra.mxu0 0.0
    %1829 = vmatpush.msra.mxu0 0.0
    %1830 = vmatpush.msra.mxu0 0.0
    %1831 = vmatpush.msra.mxu0 0.0
    %1832 = vmatpush.msra.mxu0 0.0
    %1833 = vmatpush.msra.mxu0 0.0
    %1834 = vmatpush.msra.mxu0 0.0
    %1835 = vmatpush.msra.mxu0 0.0
    %1836 = vmatpush.msra.mxu0 0.0
    %1837 = vmatpush.msra.mxu0 0.0
    %1838 = vmatpush.msra.mxu0 0.0
    %1839 = vmatpush.msra.mxu0 %v1530
    %1840 = vmatpush.msra.mxu0 %v1529
    %1841 = vmatpush.msra.mxu0 %v1528
    %1842 = vmatpush.msra.mxu0 %v1527
    %1843 = vmatmul.f32.gmra.mxu0 %v619
    %v1844 = vpop.f32.mrf.mxu0
    %v1845 = vadd.f32 0.0, %v1844
    %1846 = vdwg.mxu0
    %v1848 = vrot.slane %v1446, 6
    %1849 = vrot.lane.b32.xlu0 %v1848, 32
    %v1850 = vpop.permute.xlu0 %1849
    %v1851 = vsel %vm281, %v1850, 0
    %1853 = vmatpush.msra.mxu0 0.0
    %1854 = vmatpush.msra.mxu0 0.0
    %1855 = vmatpush.msra.mxu0 0.0
    %1856 = vmatpush.msra.mxu0 0.0
    %1857 = vmatpush.msra.mxu0 0.0
    %1858 = vmatpush.msra.mxu0 0.0
    %1859 = vmatpush.msra.mxu0 0.0
    %1860 = vmatpush.msra.mxu0 0.0
    %1861 = vmatpush.msra.mxu0 0.0
    %1862 = vmatpush.msra.mxu0 0.0
    %1863 = vmatpush.msra.mxu0 0.0
    %1864 = vmatpush.msra.mxu0 0.0
    %1865 = vmatpush.msra.mxu0 %v1526
    %1866 = vmatpush.msra.mxu0 %v1525
    %1867 = vmatpush.msra.mxu0 %v1524
    %1868 = vmatpush.msra.mxu0 %v1523
    %1869 = vmatmul.f32.gmra.mxu0 %v1851
    %v1870 = vpop.f32.mrf.mxu0
    %v1871 = vadd.f32 %v1845, %v1870
    %1872 = vdwg.mxu0
    %v1873 = vadd.f32 %v1871, %v1578
    %s1874 = scalar_lea.vmem [#allocation8], 32
    %v1875 = vld [vmem:[%s1874] sm:$0xff]
    %v1876 = vld [vmem:[%s1874 + $0x8] sm:$0xff]
    %v1877 = vld [vmem:[%s1874 + $0x10] sm:$0xff]
    %v1878 = vld [vmem:[%s1874 + $0x18] sm:$0xff]
    %s1879 = scalar_lea.vmem [#allocation10], 32
    %v1880 = vld [vmem:[%s1879] sm:$0xff]
    %v1881 = vld [vmem:[%s1879 + $0x8] sm:$0xff]
    %v1882 = vld [vmem:[%s1879 + $0x10] sm:$0xff]
    %v1883 = vld [vmem:[%s1879 + $0x18] sm:$0xff]
    %1884 = vmatpush.msra.mxu0 0.0
    %1885 = vmatpush.msra.mxu0 0.0
    %1886 = vmatpush.msra.mxu0 0.0
    %1887 = vmatpush.msra.mxu0 0.0
    %1888 = vmatpush.msra.mxu0 0.0
    %1889 = vmatpush.msra.mxu0 0.0
    %1890 = vmatpush.msra.mxu0 0.0
    %1891 = vmatpush.msra.mxu0 0.0
    %1892 = vmatpush.msra.mxu0 0.0
    %1893 = vmatpush.msra.mxu0 0.0
    %1894 = vmatpush.msra.mxu0 0.0
    %1895 = vmatpush.msra.mxu0 0.0
    %1896 = vmatpush.msra.mxu0 %v1883
    %1897 = vmatpush.msra.mxu0 %v1882
    %1898 = vmatpush.msra.mxu0 %v1881
    %1899 = vmatpush.msra.mxu0 %v1880
    %1900 = vmatmul.f32.gmra.mxu0 %v1534
    %v1901 = vpop.f32.mrf.mxu0
    %v1902 = vadd.f32 0.0, %v1901
    %1903 = vdwg.mxu0
    %1904 = vmatpush.msra.mxu0 0.0
    %1905 = vmatpush.msra.mxu0 0.0
    %1906 = vmatpush.msra.mxu0 0.0
    %1907 = vmatpush.msra.mxu0 0.0
    %1908 = vmatpush.msra.mxu0 0.0
    %1909 = vmatpush.msra.mxu0 0.0
    %1910 = vmatpush.msra.mxu0 0.0
    %1911 = vmatpush.msra.mxu0 0.0
    %1912 = vmatpush.msra.mxu0 0.0
    %1913 = vmatpush.msra.mxu0 0.0
    %1914 = vmatpush.msra.mxu0 0.0
    %1915 = vmatpush.msra.mxu0 0.0
    %1916 = vmatpush.msra.mxu0 %v1878
    %1917 = vmatpush.msra.mxu0 %v1877
    %1918 = vmatpush.msra.mxu0 %v1876
    %1919 = vmatpush.msra.mxu0 %v1875
    %1920 = vmatmul.f32.gmra.mxu0 %v549
    %v1921 = vpop.f32.mrf.mxu0
    %v1922 = vadd.f32 %v1902, %v1921
    %1923 = vdwg.mxu0
    %s1924 = scalar_lea.vmem [#allocation13], 1
    %v1925 = vld [vmem:[%s1924] sm:$0x1]
    %v1927 = vperm.slane %v1925, 0
    %v1929 = vadd.f32 %v1922, %v1927
    %1930 = vmatpush.msra.mxu0 0.0
    %1931 = vmatpush.msra.mxu0 0.0
    %1932 = vmatpush.msra.mxu0 0.0
    %1933 = vmatpush.msra.mxu0 0.0
    %1934 = vmatpush.msra.mxu0 0.0
    %1935 = vmatpush.msra.mxu0 0.0
    %1936 = vmatpush.msra.mxu0 0.0
    %1937 = vmatpush.msra.mxu0 0.0
    %1938 = vmatpush.msra.mxu0 0.0
    %1939 = vmatpush.msra.mxu0 0.0
    %1940 = vmatpush.msra.mxu0 0.0
    %1941 = vmatpush.msra.mxu0 0.0
    %1942 = vmatpush.msra.mxu0 %v1883
    %1943 = vmatpush.msra.mxu0 %v1882
    %1944 = vmatpush.msra.mxu0 %v1881
    %1945 = vmatpush.msra.mxu0 %v1880
    %1946 = vmatmul.f32.gmra.mxu0 %v1451
    %v1947 = vpop.f32.mrf.mxu0
    %v1948 = vadd.f32 0.0, %v1947
    %1949 = vdwg.mxu0
    %1950 = vmatpush.msra.mxu0 0.0
    %1951 = vmatpush.msra.mxu0 0.0
    %1952 = vmatpush.msra.mxu0 0.0
    %1953 = vmatpush.msra.mxu0 0.0
    %1954 = vmatpush.msra.mxu0 0.0
    %1955 = vmatpush.msra.mxu0 0.0
    %1956 = vmatpush.msra.mxu0 0.0
    %1957 = vmatpush.msra.mxu0 0.0
    %1958 = vmatpush.msra.mxu0 0.0
    %1959 = vmatpush.msra.mxu0 0.0
    %1960 = vmatpush.msra.mxu0 0.0
    %1961 = vmatpush.msra.mxu0 0.0
    %1962 = vmatpush.msra.mxu0 %v1878
    %1963 = vmatpush.msra.mxu0 %v1877
    %1964 = vmatpush.msra.mxu0 %v1876
    %1965 = vmatpush.msra.mxu0 %v1875
    %1966 = vmatmul.f32.gmra.mxu0 %v689
    %v1967 = vpop.f32.mrf.mxu0
    %v1968 = vadd.f32 %v1948, %v1967
    %1969 = vdwg.mxu0
    %v1970 = vadd.f32 %v1968, %v1927
    %1971 = vmatpush.msra.mxu0 0.0
    %1972 = vmatpush.msra.mxu0 0.0
    %1973 = vmatpush.msra.mxu0 0.0
    %1974 = vmatpush.msra.mxu0 0.0
    %1975 = vmatpush.msra.mxu0 0.0
    %1976 = vmatpush.msra.mxu0 0.0
    %1977 = vmatpush.msra.mxu0 0.0
    %1978 = vmatpush.msra.mxu0 0.0
    %1979 = vmatpush.msra.mxu0 0.0
    %1980 = vmatpush.msra.mxu0 0.0
    %1981 = vmatpush.msra.mxu0 0.0
    %1982 = vmatpush.msra.mxu0 0.0
    %1983 = vmatpush.msra.mxu0 %v1883
    %1984 = vmatpush.msra.mxu0 %v1882
    %1985 = vmatpush.msra.mxu0 %v1881
    %1986 = vmatpush.msra.mxu0 %v1880
    %1987 = vmatmul.f32.gmra.mxu0 %v1311
    %v1988 = vpop.f32.mrf.mxu0
    %v1989 = vadd.f32 0.0, %v1988
    %1990 = vdwg.mxu0
    %1991 = vmatpush.msra.mxu0 0.0
    %1992 = vmatpush.msra.mxu0 0.0
    %1993 = vmatpush.msra.mxu0 0.0
    %1994 = vmatpush.msra.mxu0 0.0
    %1995 = vmatpush.msra.mxu0 0.0
    %1996 = vmatpush.msra.mxu0 0.0
    %1997 = vmatpush.msra.mxu0 0.0
    %1998 = vmatpush.msra.mxu0 0.0
    %1999 = vmatpush.msra.mxu0 0.0
    %2000 = vmatpush.msra.mxu0 0.0
    %2001 = vmatpush.msra.mxu0 0.0
    %2002 = vmatpush.msra.mxu0 0.0
    %2003 = vmatpush.msra.mxu0 %v1878
    %2004 = vmatpush.msra.mxu0 %v1877
    %2005 = vmatpush.msra.mxu0 %v1876
    %2006 = vmatpush.msra.mxu0 %v1875
    %2007 = vmatmul.f32.gmra.mxu0 %v829
    %v2008 = vpop.f32.mrf.mxu0
    %v2009 = vadd.f32 %v1989, %v2008
    %2010 = vdwg.mxu0
    %v2011 = vadd.f32 %v2009, %v1927
    %2012 = vmatpush.msra.mxu0 0.0
    %2013 = vmatpush.msra.mxu0 0.0
    %2014 = vmatpush.msra.mxu0 0.0
    %2015 = vmatpush.msra.mxu0 0.0
    %2016 = vmatpush.msra.mxu0 0.0
    %2017 = vmatpush.msra.mxu0 0.0
    %2018 = vmatpush.msra.mxu0 0.0
    %2019 = vmatpush.msra.mxu0 0.0
    %2020 = vmatpush.msra.mxu0 0.0
    %2021 = vmatpush.msra.mxu0 0.0
    %2022 = vmatpush.msra.mxu0 0.0
    %2023 = vmatpush.msra.mxu0 0.0
    %2024 = vmatpush.msra.mxu0 %v1883
    %2025 = vmatpush.msra.mxu0 %v1882
    %2026 = vmatpush.msra.mxu0 %v1881
    %2027 = vmatpush.msra.mxu0 %v1880
    %2028 = vmatmul.f32.gmra.mxu0 %v1171
    %v2029 = vpop.f32.mrf.mxu0
    %v2030 = vadd.f32 0.0, %v2029
    %2031 = vdwg.mxu0
    %2032 = vmatpush.msra.mxu0 0.0
    %2033 = vmatpush.msra.mxu0 0.0
    %2034 = vmatpush.msra.mxu0 0.0
    %2035 = vmatpush.msra.mxu0 0.0
    %2036 = vmatpush.msra.mxu0 0.0
    %2037 = vmatpush.msra.mxu0 0.0
    %2038 = vmatpush.msra.mxu0 0.0
    %2039 = vmatpush.msra.mxu0 0.0
    %2040 = vmatpush.msra.mxu0 0.0
    %2041 = vmatpush.msra.mxu0 0.0
    %2042 = vmatpush.msra.mxu0 0.0
    %2043 = vmatpush.msra.mxu0 0.0
    %2044 = vmatpush.msra.mxu0 %v1878
    %2045 = vmatpush.msra.mxu0 %v1877
    %2046 = vmatpush.msra.mxu0 %v1876
    %2047 = vmatpush.msra.mxu0 %v1875
    %2048 = vmatmul.f32.gmra.mxu0 %v966
    %v2049 = vpop.f32.mrf.mxu0
    %v2050 = vadd.f32 %v2030, %v2049
    %2051 = vdwg.mxu0
    %v2052 = vadd.f32 %v2050, %v1927
    %2053 = vmatpush.msra.mxu0 0.0
    %2054 = vmatpush.msra.mxu0 0.0
    %2055 = vmatpush.msra.mxu0 0.0
    %2056 = vmatpush.msra.mxu0 0.0
    %2057 = vmatpush.msra.mxu0 0.0
    %2058 = vmatpush.msra.mxu0 0.0
    %2059 = vmatpush.msra.mxu0 0.0
    %2060 = vmatpush.msra.mxu0 0.0
    %2061 = vmatpush.msra.mxu0 0.0
    %2062 = vmatpush.msra.mxu0 0.0
    %2063 = vmatpush.msra.mxu0 0.0
    %2064 = vmatpush.msra.mxu0 0.0
    %2065 = vmatpush.msra.mxu0 %v1883
    %2066 = vmatpush.msra.mxu0 %v1882
    %2067 = vmatpush.msra.mxu0 %v1881
    %2068 = vmatpush.msra.mxu0 %v1880
    %2069 = vmatmul.f32.gmra.mxu0 %v1032
    %v2070 = vpop.f32.mrf.mxu0
    %v2071 = vadd.f32 0.0, %v2070
    %2072 = vdwg.mxu0
    %2073 = vmatpush.msra.mxu0 0.0
    %2074 = vmatpush.msra.mxu0 0.0
    %2075 = vmatpush.msra.mxu0 0.0
    %2076 = vmatpush.msra.mxu0 0.0
    %2077 = vmatpush.msra.mxu0 0.0
    %2078 = vmatpush.msra.mxu0 0.0
    %2079 = vmatpush.msra.mxu0 0.0
    %2080 = vmatpush.msra.mxu0 0.0
    %2081 = vmatpush.msra.mxu0 0.0
    %2082 = vmatpush.msra.mxu0 0.0
    %2083 = vmatpush.msra.mxu0 0.0
    %2084 = vmatpush.msra.mxu0 0.0
    %2085 = vmatpush.msra.mxu0 %v1878
    %2086 = vmatpush.msra.mxu0 %v1877
    %2087 = vmatpush.msra.mxu0 %v1876
    %2088 = vmatpush.msra.mxu0 %v1875
    %2089 = vmatmul.f32.gmra.mxu0 %v1101
    %v2090 = vpop.f32.mrf.mxu0
    %v2091 = vadd.f32 %v2071, %v2090
    %2092 = vdwg.mxu0
    %v2093 = vadd.f32 %v2091, %v1927
    %2094 = vmatpush.msra.mxu0 0.0
    %2095 = vmatpush.msra.mxu0 0.0
    %2096 = vmatpush.msra.mxu0 0.0
    %2097 = vmatpush.msra.mxu0 0.0
    %2098 = vmatpush.msra.mxu0 0.0
    %2099 = vmatpush.msra.mxu0 0.0
    %2100 = vmatpush.msra.mxu0 0.0
    %2101 = vmatpush.msra.mxu0 0.0
    %2102 = vmatpush.msra.mxu0 0.0
    %2103 = vmatpush.msra.mxu0 0.0
    %2104 = vmatpush.msra.mxu0 0.0
    %2105 = vmatpush.msra.mxu0 0.0
    %2106 = vmatpush.msra.mxu0 %v1883
    %2107 = vmatpush.msra.mxu0 %v1882
    %2108 = vmatpush.msra.mxu0 %v1881
    %2109 = vmatpush.msra.mxu0 %v1880
    %2110 = vmatmul.f32.gmra.mxu0 %v899
    %v2111 = vpop.f32.mrf.mxu0
    %v2112 = vadd.f32 0.0, %v2111
    %2113 = vdwg.mxu0
    %2114 = vmatpush.msra.mxu0 0.0
    %2115 = vmatpush.msra.mxu0 0.0
    %2116 = vmatpush.msra.mxu0 0.0
    %2117 = vmatpush.msra.mxu0 0.0
    %2118 = vmatpush.msra.mxu0 0.0
    %2119 = vmatpush.msra.mxu0 0.0
    %2120 = vmatpush.msra.mxu0 0.0
    %2121 = vmatpush.msra.mxu0 0.0
    %2122 = vmatpush.msra.mxu0 0.0
    %2123 = vmatpush.msra.mxu0 0.0
    %2124 = vmatpush.msra.mxu0 0.0
    %2125 = vmatpush.msra.mxu0 0.0
    %2126 = vmatpush.msra.mxu0 %v1878
    %2127 = vmatpush.msra.mxu0 %v1877
    %2128 = vmatpush.msra.mxu0 %v1876
    %2129 = vmatpush.msra.mxu0 %v1875
    %2130 = vmatmul.f32.gmra.mxu0 %v1241
    %v2131 = vpop.f32.mrf.mxu0
    %v2132 = vadd.f32 %v2112, %v2131
    %2133 = vdwg.mxu0
    %v2134 = vadd.f32 %v2132, %v1927
    %2135 = vmatpush.msra.mxu0 0.0
    %2136 = vmatpush.msra.mxu0 0.0
    %2137 = vmatpush.msra.mxu0 0.0
    %2138 = vmatpush.msra.mxu0 0.0
    %2139 = vmatpush.msra.mxu0 0.0
    %2140 = vmatpush.msra.mxu0 0.0
    %2141 = vmatpush.msra.mxu0 0.0
    %2142 = vmatpush.msra.mxu0 0.0
    %2143 = vmatpush.msra.mxu0 0.0
    %2144 = vmatpush.msra.mxu0 0.0
    %2145 = vmatpush.msra.mxu0 0.0
    %2146 = vmatpush.msra.mxu0 0.0
    %2147 = vmatpush.msra.mxu0 %v1883
    %2148 = vmatpush.msra.mxu0 %v1882
    %2149 = vmatpush.msra.mxu0 %v1881
    %2150 = vmatpush.msra.mxu0 %v1880
    %2151 = vmatmul.f32.gmra.mxu0 %v759
    %v2152 = vpop.f32.mrf.mxu0
    %v2153 = vadd.f32 0.0, %v2152
    %2154 = vdwg.mxu0
    %2155 = vmatpush.msra.mxu0 0.0
    %2156 = vmatpush.msra.mxu0 0.0
    %2157 = vmatpush.msra.mxu0 0.0
    %2158 = vmatpush.msra.mxu0 0.0
    %2159 = vmatpush.msra.mxu0 0.0
    %2160 = vmatpush.msra.mxu0 0.0
    %2161 = vmatpush.msra.mxu0 0.0
    %2162 = vmatpush.msra.mxu0 0.0
    %2163 = vmatpush.msra.mxu0 0.0
    %2164 = vmatpush.msra.mxu0 0.0
    %2165 = vmatpush.msra.mxu0 0.0
    %2166 = vmatpush.msra.mxu0 0.0
    %2167 = vmatpush.msra.mxu0 %v1878
    %2168 = vmatpush.msra.mxu0 %v1877
    %2169 = vmatpush.msra.mxu0 %v1876
    %2170 = vmatpush.msra.mxu0 %v1875
    %2171 = vmatmul.f32.gmra.mxu0 %v1381
    %v2172 = vpop.f32.mrf.mxu0
    %v2173 = vadd.f32 %v2153, %v2172
    %2174 = vdwg.mxu0
    %v2175 = vadd.f32 %v2173, %v1927
    %2176 = vmatpush.msra.mxu0 0.0
    %2177 = vmatpush.msra.mxu0 0.0
    %2178 = vmatpush.msra.mxu0 0.0
    %2179 = vmatpush.msra.mxu0 0.0
    %2180 = vmatpush.msra.mxu0 0.0
    %2181 = vmatpush.msra.mxu0 0.0
    %2182 = vmatpush.msra.mxu0 0.0
    %2183 = vmatpush.msra.mxu0 0.0
    %2184 = vmatpush.msra.mxu0 0.0
    %2185 = vmatpush.msra.mxu0 0.0
    %2186 = vmatpush.msra.mxu0 0.0
    %2187 = vmatpush.msra.mxu0 0.0
    %2188 = vmatpush.msra.mxu0 %v1883
    %2189 = vmatpush.msra.mxu0 %v1882
    %2190 = vmatpush.msra.mxu0 %v1881
    %2191 = vmatpush.msra.mxu0 %v1880
    %2192 = vmatmul.f32.gmra.mxu0 %v619
    %v2193 = vpop.f32.mrf.mxu0
    %v2194 = vadd.f32 0.0, %v2193
    %2195 = vdwg.mxu0
    %2196 = vmatpush.msra.mxu0 0.0
    %2197 = vmatpush.msra.mxu0 0.0
    %2198 = vmatpush.msra.mxu0 0.0
    %2199 = vmatpush.msra.mxu0 0.0
    %2200 = vmatpush.msra.mxu0 0.0
    %2201 = vmatpush.msra.mxu0 0.0
    %2202 = vmatpush.msra.mxu0 0.0
    %2203 = vmatpush.msra.mxu0 0.0
    %2204 = vmatpush.msra.mxu0 0.0
    %2205 = vmatpush.msra.mxu0 0.0
    %2206 = vmatpush.msra.mxu0 0.0
    %2207 = vmatpush.msra.mxu0 0.0
    %2208 = vmatpush.msra.mxu0 %v1878
    %2209 = vmatpush.msra.mxu0 %v1877
    %2210 = vmatpush.msra.mxu0 %v1876
    %2211 = vmatpush.msra.mxu0 %v1875
    %2212 = vmatmul.f32.gmra.mxu0 %v1851
    %v2213 = vpop.f32.mrf.mxu0
    %v2214 = vadd.f32 %v2194, %v2213
    %2215 = vdwg.mxu0
    %v2216 = vadd.f32 %v2214, %v1927
    %2217 = vmatpush.msra.mxu0 0.0
    %2218 = vmatpush.msra.mxu0 0.0
    %2219 = vmatpush.msra.mxu0 0.0
    %2220 = vmatpush.msra.mxu0 0.0
    %2221 = vmatpush.msra.mxu0 0.0
    %2222 = vmatpush.msra.mxu0 0.0
    %2223 = vmatpush.msra.mxu0 0.0
    %2224 = vmatpush.msra.mxu0 0.0
    %2225 = vmatpush.msra.mxu0 0.0
    %2226 = vmatpush.msra.mxu0 0.0
    %2227 = vmatpush.msra.mxu0 0.0
    %2228 = vmatpush.msra.mxu0 0.0
    %2229 = vmatpush.msra.mxu0 %v1517
    %2230 = vmatpush.msra.mxu0 %v1516
    %2231 = vmatpush.msra.mxu0 %v1515
    %2232 = vmatpush.msra.mxu0 %v1514
    %2233 = vmatmul.f32.gmra.mxu0 %v425
    %v2234 = vpop.f32.mrf.mxu0
    %v2235 = vadd.f32 0.0, %v2234
    %2236 = vdwg.mxu0
    %v2237 = vadd.f32 %v1580, %v2235
    %v2238 = vxor.u32 %v2237, 2147483648
    %v2239 = vmul.f32 %v2238, 1.442695
    %v2240 = vpow.pop %v2239
    %v2241 = vadd.f32 %v2240, 1.0
    %v2242 = vrcp.pop %v2241
    %v2243 = vmul.f32 %v2241, %v2242
    %v2244 = vsub.f32 1.0, %v2243
    %v2245 = vmul.f32 %v2242, %v2244
    %v2246 = vadd.f32 %v2242, %v2245
    %vm2247 = vweird.f32 %v2241
    %vm2248 = vweird.f32 %v2242
    %vm2249 = vmor %vm2247, %vm2248
    %v2250 = vsel %vm2249, %v2242, %v2246
    %v2251 = vand.u32 2147483647, %v2241
    %vm2252 = vcmp.eq.f32.partialorder %v2251, 8.507059e+37
    %v2253 = vand.u32 %v2241, 2147483648
    %v2254 = vor.u32 1.1754944e-38, %v2253
    %v2255 = vsel %vm2252, %v2254, %v2250
    %v2256 = vmul.f32 1.0, %v2255
    %v2257 = vtanh.pop %v2237
    %v2258 = vmul.f32 %v2256, 0.0
    %2260 = vrot.lane.b32.xlu0 %v2257, 64
    %v2261 = vpop.permute.xlu0 %2260
    %v2263 = vmul.f32 %v2256, %v2261
    %2265 = vrot.lane.b32.xlu0 %v2263, 32
    %v2266 = vpop.permute.xlu0 %2265
    %v2268 = vadd.f32 %v2258, %v2266
    %v2269 = vtanh.pop %v2268
    %2271 = vrot.lane.b32.xlu0 %v2269, 64
    %v2272 = vpop.permute.xlu0 %2271
    %v2274 = vmul.f32 %v2256, %v2272
    %2275 = vmatpush.msra.mxu0 0.0
    %2276 = vmatpush.msra.mxu0 0.0
    %2277 = vmatpush.msra.mxu0 0.0
    %2278 = vmatpush.msra.mxu0 0.0
    %2279 = vmatpush.msra.mxu0 0.0
    %2280 = vmatpush.msra.mxu0 0.0
    %2281 = vmatpush.msra.mxu0 0.0
    %2282 = vmatpush.msra.mxu0 0.0
    %2283 = vmatpush.msra.mxu0 0.0
    %2284 = vmatpush.msra.mxu0 0.0
    %2285 = vmatpush.msra.mxu0 0.0
    %2286 = vmatpush.msra.mxu0 0.0
    %2287 = vmatpush.msra.mxu0 %v1522
    %2288 = vmatpush.msra.mxu0 %v1521
    %2289 = vmatpush.msra.mxu0 %v1520
    %2290 = vmatpush.msra.mxu0 %v1519
    %2291 = vmatmul.f32.gmra.mxu0 %v425
    %v2292 = vpop.f32.mrf.mxu0
    %v2293 = vadd.f32 0.0, %v2292
    %2294 = vdwg.mxu0
    %v2295 = vadd.f32 %v2216, %v2293
    %v2296 = vxor.u32 %v2295, 2147483648
    %v2297 = vmul.f32 %v2296, 1.442695
    %v2298 = vpow.pop %v2297
    %v2299 = vadd.f32 %v2298, 1.0
    %v2300 = vrcp.pop %v2299
    %v2301 = vmul.f32 %v2299, %v2300
    %v2302 = vsub.f32 1.0, %v2301
    %v2303 = vmul.f32 %v2300, %v2302
    %v2304 = vadd.f32 %v2300, %v2303
    %vm2305 = vweird.f32 %v2299
    %vm2306 = vweird.f32 %v2300
    %vm2307 = vmor %vm2305, %vm2306
    %v2308 = vsel %vm2307, %v2300, %v2304
    %v2309 = vand.u32 2147483647, %v2299
    %vm2310 = vcmp.eq.f32.partialorder %v2309, 8.507059e+37
    %v2311 = vand.u32 %v2299, 2147483648
    %v2312 = vor.u32 1.1754944e-38, %v2311
    %v2313 = vsel %vm2310, %v2312, %v2308
    %v2314 = vmul.f32 1.0, %v2313
    %v2315 = vtanh.pop %v2295
    %v2316 = vmul.f32 %v2314, 0.0
    %2318 = vrot.lane.b32.xlu0 %v2315, 64
    %v2319 = vpop.permute.xlu0 %2318
    %v2321 = vmul.f32 %v2314, %v2319
    %2323 = vrot.lane.b32.xlu0 %v2321, 32
    %v2324 = vpop.permute.xlu0 %2323
    %v2326 = vadd.f32 %v2316, %v2324
    %v2327 = vtanh.pop %v2326
    %2329 = vrot.lane.b32.xlu0 %v2327, 64
    %v2330 = vpop.permute.xlu0 %2329
    %v2332 = vmul.f32 %v2314, %v2330
    %2334 = vrot.lane.b32.xlu0 %v2274, 32
    %v2335 = vpop.permute.xlu0 %2334
    %v2336 = vsel %vm281, %v2335, 0
    %2338 = vmatpush.msra.mxu0 0.0
    %2339 = vmatpush.msra.mxu0 0.0
    %2340 = vmatpush.msra.mxu0 0.0
    %2341 = vmatpush.msra.mxu0 0.0
    %2342 = vmatpush.msra.mxu0 0.0
    %2343 = vmatpush.msra.mxu0 0.0
    %2344 = vmatpush.msra.mxu0 0.0
    %2345 = vmatpush.msra.mxu0 0.0
    %2346 = vmatpush.msra.mxu0 0.0
    %2347 = vmatpush.msra.mxu0 0.0
    %2348 = vmatpush.msra.mxu0 0.0
    %2349 = vmatpush.msra.mxu0 0.0
    %2350 = vmatpush.msra.mxu0 %v1517
    %2351 = vmatpush.msra.mxu0 %v1516
    %2352 = vmatpush.msra.mxu0 %v1515
    %2353 = vmatpush.msra.mxu0 %v1514
    %2354 = vmatmul.f32.gmra.mxu0 %v2336
    %v2355 = vpop.f32.mrf.mxu0
    %v2356 = vadd.f32 0.0, %v2355
    %2357 = vdwg.mxu0
    %v2358 = vadd.f32 %v1621, %v2356
    %v2359 = vxor.u32 %v2358, 2147483648
    %v2360 = vmul.f32 %v2359, 1.442695
    %v2361 = vpow.pop %v2360
    %v2362 = vadd.f32 %v2361, 1.0
    %v2363 = vrcp.pop %v2362
    %v2364 = vmul.f32 %v2362, %v2363
    %v2365 = vsub.f32 1.0, %v2364
    %v2366 = vmul.f32 %v2363, %v2365
    %v2367 = vadd.f32 %v2363, %v2366
    %vm2368 = vweird.f32 %v2362
    %vm2369 = vweird.f32 %v2363
    %vm2370 = vmor %vm2368, %vm2369
    %v2371 = vsel %vm2370, %v2363, %v2367
    %v2372 = vand.u32 2147483647, %v2362
    %vm2373 = vcmp.eq.f32.partialorder %v2372, 8.507059e+37
    %v2374 = vand.u32 %v2362, 2147483648
    %v2375 = vor.u32 1.1754944e-38, %v2374
    %v2376 = vsel %vm2373, %v2375, %v2371
    %v2377 = vmul.f32 1.0, %v2376
    %v2378 = vtanh.pop %v2358
    %v2379 = vmul.f32 %v2377, %v2268
    %2381 = vrot.lane.b32.xlu0 %v2378, 64
    %v2382 = vpop.permute.xlu0 %2381
    %v2384 = vmul.f32 %v2377, %v2382
    %2386 = vrot.lane.b32.xlu0 %v2384, 32
    %v2387 = vpop.permute.xlu0 %2386
    %v2389 = vadd.f32 %v2379, %v2387
    %v2390 = vtanh.pop %v2389
    %2392 = vrot.lane.b32.xlu0 %v2390, 64
    %v2393 = vpop.permute.xlu0 %2392
    %v2395 = vmul.f32 %v2377, %v2393
    %2397 = vrot.lane.b32.xlu0 %v2332, 32
    %v2398 = vpop.permute.xlu0 %2397
    %v2399 = vsel %vm281, %v2398, 0
    %2401 = vmatpush.msra.mxu0 0.0
    %2402 = vmatpush.msra.mxu0 0.0
    %2403 = vmatpush.msra.mxu0 0.0
    %2404 = vmatpush.msra.mxu0 0.0
    %2405 = vmatpush.msra.mxu0 0.0
    %2406 = vmatpush.msra.mxu0 0.0
    %2407 = vmatpush.msra.mxu0 0.0
    %2408 = vmatpush.msra.mxu0 0.0
    %2409 = vmatpush.msra.mxu0 0.0
    %2410 = vmatpush.msra.mxu0 0.0
    %2411 = vmatpush.msra.mxu0 0.0
    %2412 = vmatpush.msra.mxu0 0.0
    %2413 = vmatpush.msra.mxu0 %v1522
    %2414 = vmatpush.msra.mxu0 %v1521
    %2415 = vmatpush.msra.mxu0 %v1520
    %2416 = vmatpush.msra.mxu0 %v1519
    %2417 = vmatmul.f32.gmra.mxu0 %v2399
    %v2418 = vpop.f32.mrf.mxu0
    %v2419 = vadd.f32 0.0, %v2418
    %2420 = vdwg.mxu0
    %v2421 = vadd.f32 %v2175, %v2419
    %v2422 = vxor.u32 %v2421, 2147483648
    %v2423 = vmul.f32 %v2422, 1.442695
    %v2424 = vpow.pop %v2423
    %v2425 = vadd.f32 %v2424, 1.0
    %v2426 = vrcp.pop %v2425
    %v2427 = vmul.f32 %v2425, %v2426
    %v2428 = vsub.f32 1.0, %v2427
    %v2429 = vmul.f32 %v2426, %v2428
    %v2430 = vadd.f32 %v2426, %v2429
    %vm2431 = vweird.f32 %v2425
    %vm2432 = vweird.f32 %v2426
    %vm2433 = vmor %vm2431, %vm2432
    %v2434 = vsel %vm2433, %v2426, %v2430
    %v2435 = vand.u32 2147483647, %v2425
    %vm2436 = vcmp.eq.f32.partialorder %v2435, 8.507059e+37
    %v2437 = vand.u32 %v2425, 2147483648
    %v2438 = vor.u32 1.1754944e-38, %v2437
    %v2439 = vsel %vm2436, %v2438, %v2434
    %v2440 = vmul.f32 1.0, %v2439
    %v2441 = vtanh.pop %v2421
    %v2442 = vmul.f32 %v2440, %v2326
    %2444 = vrot.lane.b32.xlu0 %v2441, 64
    %v2445 = vpop.permute.xlu0 %2444
    %v2447 = vmul.f32 %v2440, %v2445
    %2449 = vrot.lane.b32.xlu0 %v2447, 32
    %v2450 = vpop.permute.xlu0 %2449
    %v2452 = vadd.f32 %v2442, %v2450
    %v2453 = vtanh.pop %v2452
    %2455 = vrot.lane.b32.xlu0 %v2453, 64
    %v2456 = vpop.permute.xlu0 %2455
    %v2458 = vmul.f32 %v2440, %v2456
    %2460 = vrot.lane.b32.xlu0 %v2395, 32
    %v2461 = vpop.permute.xlu0 %2460
    %v2462 = vsel %vm281, %v2461, 0
    %2464 = vmatpush.msra.mxu0 0.0
    %2465 = vmatpush.msra.mxu0 0.0
    %2466 = vmatpush.msra.mxu0 0.0
    %2467 = vmatpush.msra.mxu0 0.0
    %2468 = vmatpush.msra.mxu0 0.0
    %2469 = vmatpush.msra.mxu0 0.0
    %2470 = vmatpush.msra.mxu0 0.0
    %2471 = vmatpush.msra.mxu0 0.0
    %2472 = vmatpush.msra.mxu0 0.0
    %2473 = vmatpush.msra.mxu0 0.0
    %2474 = vmatpush.msra.mxu0 0.0
    %2475 = vmatpush.msra.mxu0 0.0
    %2476 = vmatpush.msra.mxu0 %v1517
    %2477 = vmatpush.msra.mxu0 %v1516
    %2478 = vmatpush.msra.mxu0 %v1515
    %2479 = vmatpush.msra.mxu0 %v1514
    %2480 = vmatmul.f32.gmra.mxu0 %v2462
    %v2481 = vpop.f32.mrf.mxu0
    %v2482 = vadd.f32 0.0, %v2481
    %2483 = vdwg.mxu0
    %v2484 = vadd.f32 %v1662, %v2482
    %v2485 = vxor.u32 %v2484, 2147483648
    %v2486 = vmul.f32 %v2485, 1.442695
    %v2487 = vpow.pop %v2486
    %v2488 = vadd.f32 %v2487, 1.0
    %v2489 = vrcp.pop %v2488
    %v2490 = vmul.f32 %v2488, %v2489
    %v2491 = vsub.f32 1.0, %v2490
    %v2492 = vmul.f32 %v2489, %v2491
    %v2493 = vadd.f32 %v2489, %v2492
    %vm2494 = vweird.f32 %v2488
    %vm2495 = vweird.f32 %v2489
    %vm2496 = vmor %vm2494, %vm2495
    %v2497 = vsel %vm2496, %v2489, %v2493
    %v2498 = vand.u32 2147483647, %v2488
    %vm2499 = vcmp.eq.f32.partialorder %v2498, 8.507059e+37
    %v2500 = vand.u32 %v2488, 2147483648
    %v2501 = vor.u32 1.1754944e-38, %v2500
    %v2502 = vsel %vm2499, %v2501, %v2497
    %v2503 = vmul.f32 1.0, %v2502
    %v2504 = vtanh.pop %v2484
    %v2505 = vmul.f32 %v2503, %v2389
    %2507 = vrot.lane.b32.xlu0 %v2504, 64
    %v2508 = vpop.permute.xlu0 %2507
    %v2510 = vmul.f32 %v2503, %v2508
    %2512 = vrot.lane.b32.xlu0 %v2510, 32
    %v2513 = vpop.permute.xlu0 %2512
    %v2515 = vadd.f32 %v2505, %v2513
    %v2516 = vtanh.pop %v2515
    %2518 = vrot.lane.b32.xlu0 %v2516, 64
    %v2519 = vpop.permute.xlu0 %2518
    %v2521 = vmul.f32 %v2503, %v2519
    %2523 = vrot.lane.b32.xlu0 %v2458, 32
    %v2524 = vpop.permute.xlu0 %2523
    %v2525 = vsel %vm281, %v2524, 0
    %2527 = vmatpush.msra.mxu0 0.0
    %2528 = vmatpush.msra.mxu0 0.0
    %2529 = vmatpush.msra.mxu0 0.0
    %2530 = vmatpush.msra.mxu0 0.0
    %2531 = vmatpush.msra.mxu0 0.0
    %2532 = vmatpush.msra.mxu0 0.0
    %2533 = vmatpush.msra.mxu0 0.0
    %2534 = vmatpush.msra.mxu0 0.0
    %2535 = vmatpush.msra.mxu0 0.0
    %2536 = vmatpush.msra.mxu0 0.0
    %2537 = vmatpush.msra.mxu0 0.0
    %2538 = vmatpush.msra.mxu0 0.0
    %2539 = vmatpush.msra.mxu0 %v1522
    %2540 = vmatpush.msra.mxu0 %v1521
    %2541 = vmatpush.msra.mxu0 %v1520
    %2542 = vmatpush.msra.mxu0 %v1519
    %2543 = vmatmul.f32.gmra.mxu0 %v2525
    %v2544 = vpop.f32.mrf.mxu0
    %v2545 = vadd.f32 0.0, %v2544
    %2546 = vdwg.mxu0
    %v2547 = vadd.f32 %v2134, %v2545
    %v2548 = vxor.u32 %v2547, 2147483648
    %v2549 = vmul.f32 %v2548, 1.442695
    %v2550 = vpow.pop %v2549
    %v2551 = vadd.f32 %v2550, 1.0
    %v2552 = vrcp.pop %v2551
    %v2553 = vmul.f32 %v2551, %v2552
    %v2554 = vsub.f32 1.0, %v2553
    %v2555 = vmul.f32 %v2552, %v2554
    %v2556 = vadd.f32 %v2552, %v2555
    %vm2557 = vweird.f32 %v2551
    %vm2558 = vweird.f32 %v2552
    %vm2559 = vmor %vm2557, %vm2558
    %v2560 = vsel %vm2559, %v2552, %v2556
    %v2561 = vand.u32 2147483647, %v2551
    %vm2562 = vcmp.eq.f32.partialorder %v2561, 8.507059e+37
    %v2563 = vand.u32 %v2551, 2147483648
    %v2564 = vor.u32 1.1754944e-38, %v2563
    %v2565 = vsel %vm2562, %v2564, %v2560
    %v2566 = vmul.f32 1.0, %v2565
    %v2567 = vtanh.pop %v2547
    %v2568 = vmul.f32 %v2566, %v2452
    %2570 = vrot.lane.b32.xlu0 %v2567, 64
    %v2571 = vpop.permute.xlu0 %2570
    %v2573 = vmul.f32 %v2566, %v2571
    %2575 = vrot.lane.b32.xlu0 %v2573, 32
    %v2576 = vpop.permute.xlu0 %2575
    %v2578 = vadd.f32 %v2568, %v2576
    %v2579 = vtanh.pop %v2578
    %2581 = vrot.lane.b32.xlu0 %v2579, 64
    %v2582 = vpop.permute.xlu0 %2581
    %v2584 = vmul.f32 %v2566, %v2582
    %2586 = vrot.lane.b32.xlu0 %v2521, 32
    %v2587 = vpop.permute.xlu0 %2586
    %v2588 = vsel %vm281, %v2587, 0
    %2590 = vmatpush.msra.mxu0 0.0
    %2591 = vmatpush.msra.mxu0 0.0
    %2592 = vmatpush.msra.mxu0 0.0
    %2593 = vmatpush.msra.mxu0 0.0
    %2594 = vmatpush.msra.mxu0 0.0
    %2595 = vmatpush.msra.mxu0 0.0
    %2596 = vmatpush.msra.mxu0 0.0
    %2597 = vmatpush.msra.mxu0 0.0
    %2598 = vmatpush.msra.mxu0 0.0
    %2599 = vmatpush.msra.mxu0 0.0
    %2600 = vmatpush.msra.mxu0 0.0
    %2601 = vmatpush.msra.mxu0 0.0
    %2602 = vmatpush.msra.mxu0 %v1517
    %2603 = vmatpush.msra.mxu0 %v1516
    %2604 = vmatpush.msra.mxu0 %v1515
    %2605 = vmatpush.msra.mxu0 %v1514
    %2606 = vmatmul.f32.gmra.mxu0 %v2588
    %v2607 = vpop.f32.mrf.mxu0
    %v2608 = vadd.f32 0.0, %v2607
    %2609 = vdwg.mxu0
    %v2610 = vadd.f32 %v1703, %v2608
    %v2611 = vxor.u32 %v2610, 2147483648
    %v2612 = vmul.f32 %v2611, 1.442695
    %v2613 = vpow.pop %v2612
    %v2614 = vadd.f32 %v2613, 1.0
    %v2615 = vrcp.pop %v2614
    %v2616 = vmul.f32 %v2614, %v2615
    %v2617 = vsub.f32 1.0, %v2616
    %v2618 = vmul.f32 %v2615, %v2617
    %v2619 = vadd.f32 %v2615, %v2618
    %vm2620 = vweird.f32 %v2614
    %vm2621 = vweird.f32 %v2615
    %vm2622 = vmor %vm2620, %vm2621
    %v2623 = vsel %vm2622, %v2615, %v2619
    %v2624 = vand.u32 2147483647, %v2614
    %vm2625 = vcmp.eq.f32.partialorder %v2624, 8.507059e+37
    %v2626 = vand.u32 %v2614, 2147483648
    %v2627 = vor.u32 1.1754944e-38, %v2626
    %v2628 = vsel %vm2625, %v2627, %v2623
    %v2629 = vmul.f32 1.0, %v2628
    %v2630 = vtanh.pop %v2610
    %v2631 = vmul.f32 %v2629, %v2515
    %2633 = vrot.lane.b32.xlu0 %v2630, 64
    %v2634 = vpop.permute.xlu0 %2633
    %v2636 = vmul.f32 %v2629, %v2634
    %2638 = vrot.lane.b32.xlu0 %v2636, 32
    %v2639 = vpop.permute.xlu0 %2638
    %v2641 = vadd.f32 %v2631, %v2639
    %v2642 = vtanh.pop %v2641
    %2644 = vrot.lane.b32.xlu0 %v2642, 64
    %v2645 = vpop.permute.xlu0 %2644
    %v2647 = vmul.f32 %v2629, %v2645
    %2649 = vrot.lane.b32.xlu0 %v2584, 32
    %v2650 = vpop.permute.xlu0 %2649
    %v2651 = vsel %vm281, %v2650, 0
    %2653 = vmatpush.msra.mxu0 0.0
    %2654 = vmatpush.msra.mxu0 0.0
    %2655 = vmatpush.msra.mxu0 0.0
    %2656 = vmatpush.msra.mxu0 0.0
    %2657 = vmatpush.msra.mxu0 0.0
    %2658 = vmatpush.msra.mxu0 0.0
    %2659 = vmatpush.msra.mxu0 0.0
    %2660 = vmatpush.msra.mxu0 0.0
    %2661 = vmatpush.msra.mxu0 0.0
    %2662 = vmatpush.msra.mxu0 0.0
    %2663 = vmatpush.msra.mxu0 0.0
    %2664 = vmatpush.msra.mxu0 0.0
    %2665 = vmatpush.msra.mxu0 %v1522
    %2666 = vmatpush.msra.mxu0 %v1521
    %2667 = vmatpush.msra.mxu0 %v1520
    %2668 = vmatpush.msra.mxu0 %v1519
    %2669 = vmatmul.f32.gmra.mxu0 %v2651
    %v2670 = vpop.f32.mrf.mxu0
    %v2671 = vadd.f32 0.0, %v2670
    %2672 = vdwg.mxu0
    %v2673 = vadd.f32 %v2093, %v2671
    %v2674 = vxor.u32 %v2673, 2147483648
    %v2675 = vmul.f32 %v2674, 1.442695
    %v2676 = vpow.pop %v2675
    %v2677 = vadd.f32 %v2676, 1.0
    %v2678 = vrcp.pop %v2677
    %v2679 = vmul.f32 %v2677, %v2678
    %v2680 = vsub.f32 1.0, %v2679
    %v2681 = vmul.f32 %v2678, %v2680
    %v2682 = vadd.f32 %v2678, %v2681
    %vm2683 = vweird.f32 %v2677
    %vm2684 = vweird.f32 %v2678
    %vm2685 = vmor %vm2683, %vm2684
    %v2686 = vsel %vm2685, %v2678, %v2682
    %v2687 = vand.u32 2147483647, %v2677
    %vm2688 = vcmp.eq.f32.partialorder %v2687, 8.507059e+37
    %v2689 = vand.u32 %v2677, 2147483648
    %v2690 = vor.u32 1.1754944e-38, %v2689
    %v2691 = vsel %vm2688, %v2690, %v2686
    %v2692 = vmul.f32 1.0, %v2691
    %v2693 = vtanh.pop %v2673
    %v2694 = vmul.f32 %v2692, %v2578
    %2696 = vrot.lane.b32.xlu0 %v2693, 64
    %v2697 = vpop.permute.xlu0 %2696
    %v2699 = vmul.f32 %v2692, %v2697
    %2701 = vrot.lane.b32.xlu0 %v2699, 32
    %v2702 = vpop.permute.xlu0 %2701
    %v2704 = vadd.f32 %v2694, %v2702
    %v2705 = vtanh.pop %v2704
    %2707 = vrot.lane.b32.xlu0 %v2705, 64
    %v2708 = vpop.permute.xlu0 %2707
    %v2710 = vmul.f32 %v2692, %v2708
    %2712 = vrot.lane.b32.xlu0 %v2647, 32
    %v2713 = vpop.permute.xlu0 %2712
    %v2714 = vsel %vm281, %v2713, 0
    %2716 = vmatpush.msra.mxu0 0.0
    %2717 = vmatpush.msra.mxu0 0.0
    %2718 = vmatpush.msra.mxu0 0.0
    %2719 = vmatpush.msra.mxu0 0.0
    %2720 = vmatpush.msra.mxu0 0.0
    %2721 = vmatpush.msra.mxu0 0.0
    %2722 = vmatpush.msra.mxu0 0.0
    %2723 = vmatpush.msra.mxu0 0.0
    %2724 = vmatpush.msra.mxu0 0.0
    %2725 = vmatpush.msra.mxu0 0.0
    %2726 = vmatpush.msra.mxu0 0.0
    %2727 = vmatpush.msra.mxu0 0.0
    %2728 = vmatpush.msra.mxu0 %v1517
    %2729 = vmatpush.msra.mxu0 %v1516
    %2730 = vmatpush.msra.mxu0 %v1515
    %2731 = vmatpush.msra.mxu0 %v1514
    %2732 = vmatmul.f32.gmra.mxu0 %v2714
    %v2733 = vpop.f32.mrf.mxu0
    %v2734 = vadd.f32 0.0, %v2733
    %2735 = vdwg.mxu0
    %v2736 = vadd.f32 %v1744, %v2734
    %v2737 = vxor.u32 %v2736, 2147483648
    %v2738 = vmul.f32 %v2737, 1.442695
    %v2739 = vpow.pop %v2738
    %v2740 = vadd.f32 %v2739, 1.0
    %v2741 = vrcp.pop %v2740
    %v2742 = vmul.f32 %v2740, %v2741
    %v2743 = vsub.f32 1.0, %v2742
    %v2744 = vmul.f32 %v2741, %v2743
    %v2745 = vadd.f32 %v2741, %v2744
    %vm2746 = vweird.f32 %v2740
    %vm2747 = vweird.f32 %v2741
    %vm2748 = vmor %vm2746, %vm2747
    %v2749 = vsel %vm2748, %v2741, %v2745
    %v2750 = vand.u32 2147483647, %v2740
    %vm2751 = vcmp.eq.f32.partialorder %v2750, 8.507059e+37
    %v2752 = vand.u32 %v2740, 2147483648
    %v2753 = vor.u32 1.1754944e-38, %v2752
    %v2754 = vsel %vm2751, %v2753, %v2749
    %v2755 = vmul.f32 1.0, %v2754
    %v2756 = vtanh.pop %v2736
    %v2757 = vmul.f32 %v2755, %v2641
    %2759 = vrot.lane.b32.xlu0 %v2756, 64
    %v2760 = vpop.permute.xlu0 %2759
    %v2762 = vmul.f32 %v2755, %v2760
    %2764 = vrot.lane.b32.xlu0 %v2762, 32
    %v2765 = vpop.permute.xlu0 %2764
    %v2767 = vadd.f32 %v2757, %v2765
    %v2768 = vtanh.pop %v2767
    %2770 = vrot.lane.b32.xlu0 %v2768, 64
    %v2771 = vpop.permute.xlu0 %2770
    %v2773 = vmul.f32 %v2755, %v2771
    %2775 = vrot.lane.b32.xlu0 %v2710, 32
    %v2776 = vpop.permute.xlu0 %2775
    %v2777 = vsel %vm281, %v2776, 0
    %2779 = vmatpush.msra.mxu0 0.0
    %2780 = vmatpush.msra.mxu0 0.0
    %2781 = vmatpush.msra.mxu0 0.0
    %2782 = vmatpush.msra.mxu0 0.0
    %2783 = vmatpush.msra.mxu0 0.0
    %2784 = vmatpush.msra.mxu0 0.0
    %2785 = vmatpush.msra.mxu0 0.0
    %2786 = vmatpush.msra.mxu0 0.0
    %2787 = vmatpush.msra.mxu0 0.0
    %2788 = vmatpush.msra.mxu0 0.0
    %2789 = vmatpush.msra.mxu0 0.0
    %2790 = vmatpush.msra.mxu0 0.0
    %2791 = vmatpush.msra.mxu0 %v1522
    %2792 = vmatpush.msra.mxu0 %v1521
    %2793 = vmatpush.msra.mxu0 %v1520
    %2794 = vmatpush.msra.mxu0 %v1519
    %2795 = vmatmul.f32.gmra.mxu0 %v2777
    %v2796 = vpop.f32.mrf.mxu0
    %v2797 = vadd.f32 0.0, %v2796
    %2798 = vdwg.mxu0
    %v2799 = vadd.f32 %v2052, %v2797
    %v2800 = vxor.u32 %v2799, 2147483648
    %v2801 = vmul.f32 %v2800, 1.442695
    %v2802 = vpow.pop %v2801
    %v2803 = vadd.f32 %v2802, 1.0
    %v2804 = vrcp.pop %v2803
    %v2805 = vmul.f32 %v2803, %v2804
    %v2806 = vsub.f32 1.0, %v2805
    %v2807 = vmul.f32 %v2804, %v2806
    %v2808 = vadd.f32 %v2804, %v2807
    %vm2809 = vweird.f32 %v2803
    %vm2810 = vweird.f32 %v2804
    %vm2811 = vmor %vm2809, %vm2810
    %v2812 = vsel %vm2811, %v2804, %v2808
    %v2813 = vand.u32 2147483647, %v2803
    %vm2814 = vcmp.eq.f32.partialorder %v2813, 8.507059e+37
    %v2815 = vand.u32 %v2803, 2147483648
    %v2816 = vor.u32 1.1754944e-38, %v2815
    %v2817 = vsel %vm2814, %v2816, %v2812
    %v2818 = vmul.f32 1.0, %v2817
    %v2819 = vtanh.pop %v2799
    %v2820 = vmul.f32 %v2818, %v2704
    %2822 = vrot.lane.b32.xlu0 %v2819, 64
    %v2823 = vpop.permute.xlu0 %2822
    %v2825 = vmul.f32 %v2818, %v2823
    %2827 = vrot.lane.b32.xlu0 %v2825, 32
    %v2828 = vpop.permute.xlu0 %2827
    %v2830 = vadd.f32 %v2820, %v2828
    %v2831 = vtanh.pop %v2830
    %2833 = vrot.lane.b32.xlu0 %v2831, 64
    %v2834 = vpop.permute.xlu0 %2833
    %v2836 = vmul.f32 %v2818, %v2834
    %2838 = vrot.lane.b32.xlu0 %v2773, 32
    %v2839 = vpop.permute.xlu0 %2838
    %v2840 = vsel %vm281, %v2839, 0
    %2842 = vmatpush.msra.mxu0 0.0
    %2843 = vmatpush.msra.mxu0 0.0
    %2844 = vmatpush.msra.mxu0 0.0
    %2845 = vmatpush.msra.mxu0 0.0
    %2846 = vmatpush.msra.mxu0 0.0
    %2847 = vmatpush.msra.mxu0 0.0
    %2848 = vmatpush.msra.mxu0 0.0
    %2849 = vmatpush.msra.mxu0 0.0
    %2850 = vmatpush.msra.mxu0 0.0
    %2851 = vmatpush.msra.mxu0 0.0
    %2852 = vmatpush.msra.mxu0 0.0
    %2853 = vmatpush.msra.mxu0 0.0
    %2854 = vmatpush.msra.mxu0 %v1517
    %2855 = vmatpush.msra.mxu0 %v1516
    %2856 = vmatpush.msra.mxu0 %v1515
    %2857 = vmatpush.msra.mxu0 %v1514
    %2858 = vmatmul.f32.gmra.mxu0 %v2840
    %v2859 = vpop.f32.mrf.mxu0
    %v2860 = vadd.f32 0.0, %v2859
    %2861 = vdwg.mxu0
    %v2862 = vadd.f32 %v1785, %v2860
    %v2863 = vxor.u32 %v2862, 2147483648
    %v2864 = vmul.f32 %v2863, 1.442695
    %v2865 = vpow.pop %v2864
    %v2866 = vadd.f32 %v2865, 1.0
    %v2867 = vrcp.pop %v2866
    %v2868 = vmul.f32 %v2866, %v2867
    %v2869 = vsub.f32 1.0, %v2868
    %v2870 = vmul.f32 %v2867, %v2869
    %v2871 = vadd.f32 %v2867, %v2870
    %vm2872 = vweird.f32 %v2866
    %vm2873 = vweird.f32 %v2867
    %vm2874 = vmor %vm2872, %vm2873
    %v2875 = vsel %vm2874, %v2867, %v2871
    %v2876 = vand.u32 2147483647, %v2866
    %vm2877 = vcmp.eq.f32.partialorder %v2876, 8.507059e+37
    %v2878 = vand.u32 %v2866, 2147483648
    %v2879 = vor.u32 1.1754944e-38, %v2878
    %v2880 = vsel %vm2877, %v2879, %v2875
    %v2881 = vmul.f32 1.0, %v2880
    %v2882 = vtanh.pop %v2862
    %v2883 = vmul.f32 %v2881, %v2767
    %2885 = vrot.lane.b32.xlu0 %v2882, 64
    %v2886 = vpop.permute.xlu0 %2885
    %v2888 = vmul.f32 %v2881, %v2886
    %2890 = vrot.lane.b32.xlu0 %v2888, 32
    %v2891 = vpop.permute.xlu0 %2890
    %v2893 = vadd.f32 %v2883, %v2891
    %v2894 = vtanh.pop %v2893
    %2896 = vrot.lane.b32.xlu0 %v2894, 64
    %v2897 = vpop.permute.xlu0 %2896
    %v2899 = vmul.f32 %v2881, %v2897
    %2901 = vrot.lane.b32.xlu0 %v2836, 32
    %v2902 = vpop.permute.xlu0 %2901
    %v2903 = vsel %vm281, %v2902, 0
    %2905 = vmatpush.msra.mxu0 0.0
    %2906 = vmatpush.msra.mxu0 0.0
    %2907 = vmatpush.msra.mxu0 0.0
    %2908 = vmatpush.msra.mxu0 0.0
    %2909 = vmatpush.msra.mxu0 0.0
    %2910 = vmatpush.msra.mxu0 0.0
    %2911 = vmatpush.msra.mxu0 0.0
    %2912 = vmatpush.msra.mxu0 0.0
    %2913 = vmatpush.msra.mxu0 0.0
    %2914 = vmatpush.msra.mxu0 0.0
    %2915 = vmatpush.msra.mxu0 0.0
    %2916 = vmatpush.msra.mxu0 0.0
    %2917 = vmatpush.msra.mxu0 %v1522
    %2918 = vmatpush.msra.mxu0 %v1521
    %2919 = vmatpush.msra.mxu0 %v1520
    %2920 = vmatpush.msra.mxu0 %v1519
    %2921 = vmatmul.f32.gmra.mxu0 %v2903
    %v2922 = vpop.f32.mrf.mxu0
    %v2923 = vadd.f32 0.0, %v2922
    %2924 = vdwg.mxu0
    %v2925 = vadd.f32 %v2011, %v2923
    %v2926 = vxor.u32 %v2925, 2147483648
    %v2927 = vmul.f32 %v2926, 1.442695
    %v2928 = vpow.pop %v2927
    %v2929 = vadd.f32 %v2928, 1.0
    %v2930 = vrcp.pop %v2929
    %v2931 = vmul.f32 %v2929, %v2930
    %v2932 = vsub.f32 1.0, %v2931
    %v2933 = vmul.f32 %v2930, %v2932
    %v2934 = vadd.f32 %v2930, %v2933
    %vm2935 = vweird.f32 %v2929
    %vm2936 = vweird.f32 %v2930
    %vm2937 = vmor %vm2935, %vm2936
    %v2938 = vsel %vm2937, %v2930, %v2934
    %v2939 = vand.u32 2147483647, %v2929
    %vm2940 = vcmp.eq.f32.partialorder %v2939, 8.507059e+37
    %v2941 = vand.u32 %v2929, 2147483648
    %v2942 = vor.u32 1.1754944e-38, %v2941
    %v2943 = vsel %vm2940, %v2942, %v2938
    %v2944 = vmul.f32 1.0, %v2943
    %v2945 = vtanh.pop %v2925
    %v2946 = vmul.f32 %v2944, %v2830
    %2948 = vrot.lane.b32.xlu0 %v2945, 64
    %v2949 = vpop.permute.xlu0 %2948
    %v2951 = vmul.f32 %v2944, %v2949
    %2953 = vrot.lane.b32.xlu0 %v2951, 32
    %v2954 = vpop.permute.xlu0 %2953
    %v2956 = vadd.f32 %v2946, %v2954
    %v2957 = vtanh.pop %v2956
    %2959 = vrot.lane.b32.xlu0 %v2957, 64
    %v2960 = vpop.permute.xlu0 %2959
    %v2962 = vmul.f32 %v2944, %v2960
    %2964 = vrot.lane.b32.xlu0 %v2899, 32
    %v2965 = vpop.permute.xlu0 %2964
    %v2966 = vsel %vm281, %v2965, 0
    %2968 = vmatpush.msra.mxu0 0.0
    %2969 = vmatpush.msra.mxu0 0.0
    %2970 = vmatpush.msra.mxu0 0.0
    %2971 = vmatpush.msra.mxu0 0.0
    %2972 = vmatpush.msra.mxu0 0.0
    %2973 = vmatpush.msra.mxu0 0.0
    %2974 = vmatpush.msra.mxu0 0.0
    %2975 = vmatpush.msra.mxu0 0.0
    %2976 = vmatpush.msra.mxu0 0.0
    %2977 = vmatpush.msra.mxu0 0.0
    %2978 = vmatpush.msra.mxu0 0.0
    %2979 = vmatpush.msra.mxu0 0.0
    %2980 = vmatpush.msra.mxu0 %v1517
    %2981 = vmatpush.msra.mxu0 %v1516
    %2982 = vmatpush.msra.mxu0 %v1515
    %2983 = vmatpush.msra.mxu0 %v1514
    %2984 = vmatmul.f32.gmra.mxu0 %v2966
    %v2985 = vpop.f32.mrf.mxu0
    %v2986 = vadd.f32 0.0, %v2985
    %2987 = vdwg.mxu0
    %v2988 = vadd.f32 %v1826, %v2986
    %v2989 = vxor.u32 %v2988, 2147483648
    %v2990 = vmul.f32 %v2989, 1.442695
    %v2991 = vpow.pop %v2990
    %v2992 = vadd.f32 %v2991, 1.0
    %v2993 = vrcp.pop %v2992
    %v2994 = vmul.f32 %v2992, %v2993
    %v2995 = vsub.f32 1.0, %v2994
    %v2996 = vmul.f32 %v2993, %v2995
    %v2997 = vadd.f32 %v2993, %v2996
    %vm2998 = vweird.f32 %v2992
    %vm2999 = vweird.f32 %v2993
    %vm3000 = vmor %vm2998, %vm2999
    %v3001 = vsel %vm3000, %v2993, %v2997
    %v3002 = vand.u32 2147483647, %v2992
    %vm3003 = vcmp.eq.f32.partialorder %v3002, 8.507059e+37
    %v3004 = vand.u32 %v2992, 2147483648
    %v3005 = vor.u32 1.1754944e-38, %v3004
    %v3006 = vsel %vm3003, %v3005, %v3001
    %v3007 = vmul.f32 1.0, %v3006
    %v3008 = vtanh.pop %v2988
    %v3009 = vmul.f32 %v3007, %v2893
    %3011 = vrot.lane.b32.xlu0 %v3008, 64
    %v3012 = vpop.permute.xlu0 %3011
    %v3014 = vmul.f32 %v3007, %v3012
    %3016 = vrot.lane.b32.xlu0 %v3014, 32
    %v3017 = vpop.permute.xlu0 %3016
    %v3019 = vadd.f32 %v3009, %v3017
    %v3020 = vtanh.pop %v3019
    %3022 = vrot.lane.b32.xlu0 %v3020, 64
    %v3023 = vpop.permute.xlu0 %3022
    %v3025 = vmul.f32 %v3007, %v3023
    %3027 = vrot.lane.b32.xlu0 %v2962, 32
    %v3028 = vpop.permute.xlu0 %3027
    %v3029 = vsel %vm281, %v3028, 0
    %3031 = vmatpush.msra.mxu0 0.0
    %3032 = vmatpush.msra.mxu0 0.0
    %3033 = vmatpush.msra.mxu0 0.0
    %3034 = vmatpush.msra.mxu0 0.0
    %3035 = vmatpush.msra.mxu0 0.0
    %3036 = vmatpush.msra.mxu0 0.0
    %3037 = vmatpush.msra.mxu0 0.0
    %3038 = vmatpush.msra.mxu0 0.0
    %3039 = vmatpush.msra.mxu0 0.0
    %3040 = vmatpush.msra.mxu0 0.0
    %3041 = vmatpush.msra.mxu0 0.0
    %3042 = vmatpush.msra.mxu0 0.0
    %3043 = vmatpush.msra.mxu0 %v1522
    %3044 = vmatpush.msra.mxu0 %v1521
    %3045 = vmatpush.msra.mxu0 %v1520
    %3046 = vmatpush.msra.mxu0 %v1519
    %3047 = vmatmul.f32.gmra.mxu0 %v3029
    %v3048 = vpop.f32.mrf.mxu0
    %v3049 = vadd.f32 0.0, %v3048
    %3050 = vdwg.mxu0
    %v3051 = vadd.f32 %v1970, %v3049
    %v3052 = vxor.u32 %v3051, 2147483648
    %v3053 = vmul.f32 %v3052, 1.442695
    %v3054 = vpow.pop %v3053
    %v3055 = vadd.f32 %v3054, 1.0
    %v3056 = vrcp.pop %v3055
    %v3057 = vmul.f32 %v3055, %v3056
    %v3058 = vsub.f32 1.0, %v3057
    %v3059 = vmul.f32 %v3056, %v3058
    %v3060 = vadd.f32 %v3056, %v3059
    %vm3061 = vweird.f32 %v3055
    %vm3062 = vweird.f32 %v3056
    %vm3063 = vmor %vm3061, %vm3062
    %v3064 = vsel %vm3063, %v3056, %v3060
    %v3065 = vand.u32 2147483647, %v3055
    %vm3066 = vcmp.eq.f32.partialorder %v3065, 8.507059e+37
    %v3067 = vand.u32 %v3055, 2147483648
    %v3068 = vor.u32 1.1754944e-38, %v3067
    %v3069 = vsel %vm3066, %v3068, %v3064
    %v3070 = vmul.f32 1.0, %v3069
    %v3071 = vtanh.pop %v3051
    %v3072 = vmul.f32 %v3070, %v2956
    %3074 = vrot.lane.b32.xlu0 %v3071, 64
    %v3075 = vpop.permute.xlu0 %3074
    %v3077 = vmul.f32 %v3070, %v3075
    %3079 = vrot.lane.b32.xlu0 %v3077, 32
    %v3080 = vpop.permute.xlu0 %3079
    %v3082 = vadd.f32 %v3072, %v3080
    %v3083 = vtanh.pop %v3082
    %3085 = vrot.lane.b32.xlu0 %v3083, 64
    %v3086 = vpop.permute.xlu0 %3085
    %v3088 = vmul.f32 %v3070, %v3086
    %3090 = vrot.lane.b32.xlu0 %v3025, 32
    %v3091 = vpop.permute.xlu0 %3090
    %v3092 = vsel %vm281, %v3091, 0
    %3094 = vmatpush.msra.mxu0 0.0
    %3095 = vmatpush.msra.mxu0 0.0
    %3096 = vmatpush.msra.mxu0 0.0
    %3097 = vmatpush.msra.mxu0 0.0
    %3098 = vmatpush.msra.mxu0 0.0
    %3099 = vmatpush.msra.mxu0 0.0
    %3100 = vmatpush.msra.mxu0 0.0
    %3101 = vmatpush.msra.mxu0 0.0
    %3102 = vmatpush.msra.mxu0 0.0
    %3103 = vmatpush.msra.mxu0 0.0
    %3104 = vmatpush.msra.mxu0 0.0
    %3105 = vmatpush.msra.mxu0 0.0
    %3106 = vmatpush.msra.mxu0 %v1517
    %3107 = vmatpush.msra.mxu0 %v1516
    %3108 = vmatpush.msra.mxu0 %v1515
    %3109 = vmatpush.msra.mxu0 %v1514
    %3110 = vmatmul.f32.gmra.mxu0 %v3092
    %v3111 = vpop.f32.mrf.mxu0
    %v3112 = vadd.f32 0.0, %v3111
    %3113 = vdwg.mxu0
    %v3114 = vadd.f32 %v1873, %v3112
    %v3115 = vxor.u32 %v3114, 2147483648
    %v3116 = vmul.f32 %v3115, 1.442695
    %v3117 = vpow.pop %v3116
    %v3118 = vadd.f32 %v3117, 1.0
    %v3119 = vrcp.pop %v3118
    %v3120 = vmul.f32 %v3118, %v3119
    %v3121 = vsub.f32 1.0, %v3120
    %v3122 = vmul.f32 %v3119, %v3121
    %v3123 = vadd.f32 %v3119, %v3122
    %vm3124 = vweird.f32 %v3118
    %vm3125 = vweird.f32 %v3119
    %vm3126 = vmor %vm3124, %vm3125
    %v3127 = vsel %vm3126, %v3119, %v3123
    %v3128 = vand.u32 2147483647, %v3118
    %vm3129 = vcmp.eq.f32.partialorder %v3128, 8.507059e+37
    %v3130 = vand.u32 %v3118, 2147483648
    %v3131 = vor.u32 1.1754944e-38, %v3130
    %v3132 = vsel %vm3129, %v3131, %v3127
    %v3133 = vmul.f32 1.0, %v3132
    %v3134 = vtanh.pop %v3114
    %v3135 = vmul.f32 %v3133, %v3019
    %3137 = vrot.lane.b32.xlu0 %v3134, 64
    %v3138 = vpop.permute.xlu0 %3137
    %v3140 = vmul.f32 %v3133, %v3138
    %3142 = vrot.lane.b32.xlu0 %v3140, 32
    %v3143 = vpop.permute.xlu0 %3142
    %v3145 = vadd.f32 %v3135, %v3143
    %v3146 = vtanh.pop %v3145
    %3148 = vrot.lane.b32.xlu0 %v3146, 64
    %v3149 = vpop.permute.xlu0 %3148
    %v3151 = vmul.f32 %v3133, %v3149
    %3153 = vrot.lane.b32.xlu0 %v3088, 32
    %v3154 = vpop.permute.xlu0 %3153
    %v3155 = vsel %vm281, %v3154, 0
    %3157 = vmatpush.msra.mxu0 0.0
    %3158 = vmatpush.msra.mxu0 0.0
    %3159 = vmatpush.msra.mxu0 0.0
    %3160 = vmatpush.msra.mxu0 0.0
    %3161 = vmatpush.msra.mxu0 0.0
    %3162 = vmatpush.msra.mxu0 0.0
    %3163 = vmatpush.msra.mxu0 0.0
    %3164 = vmatpush.msra.mxu0 0.0
    %3165 = vmatpush.msra.mxu0 0.0
    %3166 = vmatpush.msra.mxu0 0.0
    %3167 = vmatpush.msra.mxu0 0.0
    %3168 = vmatpush.msra.mxu0 0.0
    %3169 = vmatpush.msra.mxu0 %v1522
    %3170 = vmatpush.msra.mxu0 %v1521
    %3171 = vmatpush.msra.mxu0 %v1520
    %3172 = vmatpush.msra.mxu0 %v1519
    %3173 = vmatmul.f32.gmra.mxu0 %v3155
    %v3174 = vpop.f32.mrf.mxu0
    %v3175 = vadd.f32 0.0, %v3174
    %3176 = vdwg.mxu0
    %v3177 = vadd.f32 %v1929, %v3175
    %v3178 = vxor.u32 %v3177, 2147483648
    %v3179 = vmul.f32 %v3178, 1.442695
    %v3180 = vpow.pop %v3179
    %v3181 = vadd.f32 %v3180, 1.0
    %v3182 = vrcp.pop %v3181
    %v3183 = vmul.f32 %v3181, %v3182
    %v3184 = vsub.f32 1.0, %v3183
    %v3185 = vmul.f32 %v3182, %v3184
    %v3186 = vadd.f32 %v3182, %v3185
    %vm3187 = vweird.f32 %v3181
    %vm3188 = vweird.f32 %v3182
    %vm3189 = vmor %vm3187, %vm3188
    %v3190 = vsel %vm3189, %v3182, %v3186
    %v3191 = vand.u32 2147483647, %v3181
    %vm3192 = vcmp.eq.f32.partialorder %v3191, 8.507059e+37
    %v3193 = vand.u32 %v3181, 2147483648
    %v3194 = vor.u32 1.1754944e-38, %v3193
    %v3195 = vsel %vm3192, %v3194, %v3190
    %v3196 = vmul.f32 1.0, %v3195
    %v3197 = vtanh.pop %v3177
    %v3198 = vmul.f32 %v3196, %v3082
    %3200 = vrot.lane.b32.xlu0 %v3197, 64
    %v3201 = vpop.permute.xlu0 %3200
    %v3203 = vmul.f32 %v3196, %v3201
    %3205 = vrot.lane.b32.xlu0 %v3203, 32
    %v3206 = vpop.permute.xlu0 %3205
    %v3208 = vadd.f32 %v3198, %v3206
    %v3209 = vtanh.pop %v3208
    %3211 = vrot.lane.b32.xlu0 %v3209, 64
    %v3212 = vpop.permute.xlu0 %3211
    %v3214 = vmul.f32 %v3196, %v3212
    %v3215 = vld [vmem:[#allocation14] sm:$0xff]
    %v3216 = vld [vmem:[#allocation14 + $0x8] sm:$0xff]
    %v3217 = vld [vmem:[#allocation14 + $0x10] sm:$0xff]
    %v3218 = vld [vmem:[#allocation14 + $0x18] sm:$0xff]
    %s3219 = scalar_lea.vmem [#allocation14], 256
    %v3220 = vld [vmem:[%s3219] sm:$0xff]
    %v3221 = vld [vmem:[%s3219 + $0x8] sm:$0xff]
    %v3222 = vld [vmem:[%s3219 + $0x10] sm:$0xff]
    %v3223 = vld [vmem:[%s3219 + $0x18] sm:$0xff]
    %s3224 = scalar_lea.vmem [#allocation14], 32
    %v3225 = vld [vmem:[%s3224] sm:$0xff]
    %v3226 = vld [vmem:[%s3224 + $0x8] sm:$0xff]
    %v3227 = vld [vmem:[%s3224 + $0x10] sm:$0xff]
    %v3228 = vld [vmem:[%s3224 + $0x18] sm:$0xff]
    %3229 = vmatpush.msra.mxu0 0.0
    %3230 = vmatpush.msra.mxu0 0.0
    %3231 = vmatpush.msra.mxu0 0.0
    %3232 = vmatpush.msra.mxu0 0.0
    %3233 = vmatpush.msra.mxu0 0.0
    %3234 = vmatpush.msra.mxu0 0.0
    %3235 = vmatpush.msra.mxu0 0.0
    %3236 = vmatpush.msra.mxu0 0.0
    %3237 = vmatpush.msra.mxu0 0.0
    %3238 = vmatpush.msra.mxu0 0.0
    %3239 = vmatpush.msra.mxu0 0.0
    %3240 = vmatpush.msra.mxu0 0.0
    %3241 = vmatpush.msra.mxu0 %v3228
    %3242 = vmatpush.msra.mxu0 %v3227
    %3243 = vmatpush.msra.mxu0 %v3226
    %3244 = vmatpush.msra.mxu0 %v3225
    %3245 = vmatmul.f32.gmra.mxu0 %v2462
    %v3246 = vpop.f32.mrf.mxu0
    %v3247 = vadd.f32 0.0, %v3246
    %3248 = vdwg.mxu0
    %3249 = vmatpush.msra.mxu0 0.0
    %3250 = vmatpush.msra.mxu0 0.0
    %3251 = vmatpush.msra.mxu0 0.0
    %3252 = vmatpush.msra.mxu0 0.0
    %3253 = vmatpush.msra.mxu0 0.0
    %3254 = vmatpush.msra.mxu0 0.0
    %3255 = vmatpush.msra.mxu0 0.0
    %3256 = vmatpush.msra.mxu0 0.0
    %3257 = vmatpush.msra.mxu0 0.0
    %3258 = vmatpush.msra.mxu0 0.0
    %3259 = vmatpush.msra.mxu0 0.0
    %3260 = vmatpush.msra.mxu0 0.0
    %3261 = vmatpush.msra.mxu0 %v3218
    %3262 = vmatpush.msra.mxu0 %v3217
    %3263 = vmatpush.msra.mxu0 %v3216
    %3264 = vmatpush.msra.mxu0 %v3215
    %3265 = vmatmul.f32.gmra.mxu0 %v2336
    %v3266 = vpop.f32.mrf.mxu0
    %v3267 = vadd.f32 %v3247, %v3266
    %3268 = vdwg.mxu0
    %s3269 = scalar_lea.vmem [#allocation14], 288
    %v3270 = vld [vmem:[%s3269] sm:$0xff]
    %v3271 = vld [vmem:[%s3269 + $0x8] sm:$0xff]
    %v3272 = vld [vmem:[%s3269 + $0x10] sm:$0xff]
    %v3273 = vld [vmem:[%s3269 + $0x18] sm:$0xff]
    %3274 = vmatpush.msra.mxu0 0.0
    %3275 = vmatpush.msra.mxu0 0.0
    %3276 = vmatpush.msra.mxu0 0.0
    %3277 = vmatpush.msra.mxu0 0.0
    %3278 = vmatpush.msra.mxu0 0.0
    %3279 = vmatpush.msra.mxu0 0.0
    %3280 = vmatpush.msra.mxu0 0.0
    %3281 = vmatpush.msra.mxu0 0.0
    %3282 = vmatpush.msra.mxu0 0.0
    %3283 = vmatpush.msra.mxu0 0.0
    %3284 = vmatpush.msra.mxu0 0.0
    %3285 = vmatpush.msra.mxu0 0.0
    %3286 = vmatpush.msra.mxu0 %v3273
    %3287 = vmatpush.msra.mxu0 %v3272
    %3288 = vmatpush.msra.mxu0 %v3271
    %3289 = vmatpush.msra.mxu0 %v3270
    %3290 = vmatmul.f32.gmra.mxu0 %v3155
    %v3291 = vpop.f32.mrf.mxu0
    %v3292 = vadd.f32 0.0, %v3291
    %3293 = vdwg.mxu0
    %3295 = vrot.lane.b32.xlu0 %v3214, 32
    %v3296 = vpop.permute.xlu0 %3295
    %v3297 = vsel %vm281, %v3296, 0
    %3299 = vmatpush.msra.mxu0 0.0
    %3300 = vmatpush.msra.mxu0 0.0
    %3301 = vmatpush.msra.mxu0 0.0
    %3302 = vmatpush.msra.mxu0 0.0
    %3303 = vmatpush.msra.mxu0 0.0
    %3304 = vmatpush.msra.mxu0 0.0
    %3305 = vmatpush.msra.mxu0 0.0
    %3306 = vmatpush.msra.mxu0 0.0
    %3307 = vmatpush.msra.mxu0 0.0
    %3308 = vmatpush.msra.mxu0 0.0
    %3309 = vmatpush.msra.mxu0 0.0
    %3310 = vmatpush.msra.mxu0 0.0
    %3311 = vmatpush.msra.mxu0 %v3223
    %3312 = vmatpush.msra.mxu0 %v3222
    %3313 = vmatpush.msra.mxu0 %v3221
    %3314 = vmatpush.msra.mxu0 %v3220
    %3315 = vmatmul.f32.gmra.mxu0 %v3297
    %v3316 = vpop.f32.mrf.mxu0
    %v3317 = vadd.f32 %v3292, %v3316
    %3318 = vdwg.mxu0
    %s3319 = scalar_lea.vmem [#allocation14], 64
    %v3320 = vld [vmem:[%s3319] sm:$0xff]
    %v3321 = vld [vmem:[%s3319 + $0x8] sm:$0xff]
    %v3322 = vld [vmem:[%s3319 + $0x10] sm:$0xff]
    %v3323 = vld [vmem:[%s3319 + $0x18] sm:$0xff]
    %3324 = vmatpush.msra.mxu0 0.0
    %3325 = vmatpush.msra.mxu0 0.0
    %3326 = vmatpush.msra.mxu0 0.0
    %3327 = vmatpush.msra.mxu0 0.0
    %3328 = vmatpush.msra.mxu0 0.0
    %3329 = vmatpush.msra.mxu0 0.0
    %3330 = vmatpush.msra.mxu0 0.0
    %3331 = vmatpush.msra.mxu0 0.0
    %3332 = vmatpush.msra.mxu0 0.0
    %3333 = vmatpush.msra.mxu0 0.0
    %3334 = vmatpush.msra.mxu0 0.0
    %3335 = vmatpush.msra.mxu0 0.0
    %3336 = vmatpush.msra.mxu0 %v3323
    %3337 = vmatpush.msra.mxu0 %v3322
    %3338 = vmatpush.msra.mxu0 %v3321
    %3339 = vmatpush.msra.mxu0 %v3320
    %3340 = vmatmul.f32.gmra.mxu0 %v2588
    %v3341 = vpop.f32.mrf.mxu0
    %v3342 = vadd.f32 0.0, %v3341
    %3343 = vdwg.mxu0
    %v3344 = vadd.f32 %v3267, %v3342
    %s3345 = scalar_lea.vmem [#allocation14], 320
    %v3346 = vld [vmem:[%s3345] sm:$0xff]
    %v3347 = vld [vmem:[%s3345 + $0x8] sm:$0xff]
    %v3348 = vld [vmem:[%s3345 + $0x10] sm:$0xff]
    %v3349 = vld [vmem:[%s3345 + $0x18] sm:$0xff]
    %3350 = vmatpush.msra.mxu0 0.0
    %3351 = vmatpush.msra.mxu0 0.0
    %3352 = vmatpush.msra.mxu0 0.0
    %3353 = vmatpush.msra.mxu0 0.0
    %3354 = vmatpush.msra.mxu0 0.0
    %3355 = vmatpush.msra.mxu0 0.0
    %3356 = vmatpush.msra.mxu0 0.0
    %3357 = vmatpush.msra.mxu0 0.0
    %3358 = vmatpush.msra.mxu0 0.0
    %3359 = vmatpush.msra.mxu0 0.0
    %3360 = vmatpush.msra.mxu0 0.0
    %3361 = vmatpush.msra.mxu0 0.0
    %3362 = vmatpush.msra.mxu0 %v3349
    %3363 = vmatpush.msra.mxu0 %v3348
    %3364 = vmatpush.msra.mxu0 %v3347
    %3365 = vmatpush.msra.mxu0 %v3346
    %3366 = vmatmul.f32.gmra.mxu0 %v3029
    %v3367 = vpop.f32.mrf.mxu0
    %v3368 = vadd.f32 0.0, %v3367
    %3369 = vdwg.mxu0
    %v3370 = vadd.f32 %v3317, %v3368
    %s3371 = scalar_lea.vmem [#allocation14], 96
    %v3372 = vld [vmem:[%s3371] sm:$0xff]
    %v3373 = vld [vmem:[%s3371 + $0x8] sm:$0xff]
    %v3374 = vld [vmem:[%s3371 + $0x10] sm:$0xff]
    %v3375 = vld [vmem:[%s3371 + $0x18] sm:$0xff]
    %3376 = vmatpush.msra.mxu0 0.0
    %3377 = vmatpush.msra.mxu0 0.0
    %3378 = vmatpush.msra.mxu0 0.0
    %3379 = vmatpush.msra.mxu0 0.0
    %3380 = vmatpush.msra.mxu0 0.0
    %3381 = vmatpush.msra.mxu0 0.0
    %3382 = vmatpush.msra.mxu0 0.0
    %3383 = vmatpush.msra.mxu0 0.0
    %3384 = vmatpush.msra.mxu0 0.0
    %3385 = vmatpush.msra.mxu0 0.0
    %3386 = vmatpush.msra.mxu0 0.0
    %3387 = vmatpush.msra.mxu0 0.0
    %3388 = vmatpush.msra.mxu0 %v3375
    %3389 = vmatpush.msra.mxu0 %v3374
    %3390 = vmatpush.msra.mxu0 %v3373
    %3391 = vmatpush.msra.mxu0 %v3372
    %3392 = vmatmul.f32.gmra.mxu0 %v2714
    %v3393 = vpop.f32.mrf.mxu0
    %v3394 = vadd.f32 0.0, %v3393
    %3395 = vdwg.mxu0
    %v3396 = vadd.f32 %v3344, %v3394
    %s3397 = scalar_lea.vmem [#allocation14], 352
    %v3398 = vld [vmem:[%s3397] sm:$0xff]
    %v3399 = vld [vmem:[%s3397 + $0x8] sm:$0xff]
    %v3400 = vld [vmem:[%s3397 + $0x10] sm:$0xff]
    %v3401 = vld [vmem:[%s3397 + $0x18] sm:$0xff]
    %3402 = vmatpush.msra.mxu0 0.0
    %3403 = vmatpush.msra.mxu0 0.0
    %3404 = vmatpush.msra.mxu0 0.0
    %3405 = vmatpush.msra.mxu0 0.0
    %3406 = vmatpush.msra.mxu0 0.0
    %3407 = vmatpush.msra.mxu0 0.0
    %3408 = vmatpush.msra.mxu0 0.0
    %3409 = vmatpush.msra.mxu0 0.0
    %3410 = vmatpush.msra.mxu0 0.0
    %3411 = vmatpush.msra.mxu0 0.0
    %3412 = vmatpush.msra.mxu0 0.0
    %3413 = vmatpush.msra.mxu0 0.0
    %3414 = vmatpush.msra.mxu0 %v3401
    %3415 = vmatpush.msra.mxu0 %v3400
    %3416 = vmatpush.msra.mxu0 %v3399
    %3417 = vmatpush.msra.mxu0 %v3398
    %3418 = vmatmul.f32.gmra.mxu0 %v2903
    %v3419 = vpop.f32.mrf.mxu0
    %v3420 = vadd.f32 0.0, %v3419
    %3421 = vdwg.mxu0
    %v3422 = vadd.f32 %v3370, %v3420
    %s3423 = scalar_lea.vmem [#allocation14], 128
    %v3424 = vld [vmem:[%s3423] sm:$0xff]
    %v3425 = vld [vmem:[%s3423 + $0x8] sm:$0xff]
    %v3426 = vld [vmem:[%s3423 + $0x10] sm:$0xff]
    %v3427 = vld [vmem:[%s3423 + $0x18] sm:$0xff]
    %3428 = vmatpush.msra.mxu0 0.0
    %3429 = vmatpush.msra.mxu0 0.0
    %3430 = vmatpush.msra.mxu0 0.0
    %3431 = vmatpush.msra.mxu0 0.0
    %3432 = vmatpush.msra.mxu0 0.0
    %3433 = vmatpush.msra.mxu0 0.0
    %3434 = vmatpush.msra.mxu0 0.0
    %3435 = vmatpush.msra.mxu0 0.0
    %3436 = vmatpush.msra.mxu0 0.0
    %3437 = vmatpush.msra.mxu0 0.0
    %3438 = vmatpush.msra.mxu0 0.0
    %3439 = vmatpush.msra.mxu0 0.0
    %3440 = vmatpush.msra.mxu0 %v3427
    %3441 = vmatpush.msra.mxu0 %v3426
    %3442 = vmatpush.msra.mxu0 %v3425
    %3443 = vmatpush.msra.mxu0 %v3424
    %3444 = vmatmul.f32.gmra.mxu0 %v2840
    %v3445 = vpop.f32.mrf.mxu0
    %v3446 = vadd.f32 0.0, %v3445
    %3447 = vdwg.mxu0
    %v3448 = vadd.f32 %v3396, %v3446
    %s3449 = scalar_lea.vmem [#allocation14], 384
    %v3450 = vld [vmem:[%s3449] sm:$0xff]
    %v3451 = vld [vmem:[%s3449 + $0x8] sm:$0xff]
    %v3452 = vld [vmem:[%s3449 + $0x10] sm:$0xff]
    %v3453 = vld [vmem:[%s3449 + $0x18] sm:$0xff]
    %3454 = vmatpush.msra.mxu0 0.0
    %3455 = vmatpush.msra.mxu0 0.0
    %3456 = vmatpush.msra.mxu0 0.0
    %3457 = vmatpush.msra.mxu0 0.0
    %3458 = vmatpush.msra.mxu0 0.0
    %3459 = vmatpush.msra.mxu0 0.0
    %3460 = vmatpush.msra.mxu0 0.0
    %3461 = vmatpush.msra.mxu0 0.0
    %3462 = vmatpush.msra.mxu0 0.0
    %3463 = vmatpush.msra.mxu0 0.0
    %3464 = vmatpush.msra.mxu0 0.0
    %3465 = vmatpush.msra.mxu0 0.0
    %3466 = vmatpush.msra.mxu0 %v3453
    %3467 = vmatpush.msra.mxu0 %v3452
    %3468 = vmatpush.msra.mxu0 %v3451
    %3469 = vmatpush.msra.mxu0 %v3450
    %3470 = vmatmul.f32.gmra.mxu0 %v2777
    %v3471 = vpop.f32.mrf.mxu0
    %v3472 = vadd.f32 0.0, %v3471
    %3473 = vdwg.mxu0
    %v3474 = vadd.f32 %v3422, %v3472
    %s3475 = scalar_lea.vmem [#allocation14], 160
    %v3476 = vld [vmem:[%s3475] sm:$0xff]
    %v3477 = vld [vmem:[%s3475 + $0x8] sm:$0xff]
    %v3478 = vld [vmem:[%s3475 + $0x10] sm:$0xff]
    %v3479 = vld [vmem:[%s3475 + $0x18] sm:$0xff]
    %3480 = vmatpush.msra.mxu0 0.0
    %3481 = vmatpush.msra.mxu0 0.0
    %3482 = vmatpush.msra.mxu0 0.0
    %3483 = vmatpush.msra.mxu0 0.0
    %3484 = vmatpush.msra.mxu0 0.0
    %3485 = vmatpush.msra.mxu0 0.0
    %3486 = vmatpush.msra.mxu0 0.0
    %3487 = vmatpush.msra.mxu0 0.0
    %3488 = vmatpush.msra.mxu0 0.0
    %3489 = vmatpush.msra.mxu0 0.0
    %3490 = vmatpush.msra.mxu0 0.0
    %3491 = vmatpush.msra.mxu0 0.0
    %3492 = vmatpush.msra.mxu0 %v3479
    %3493 = vmatpush.msra.mxu0 %v3478
    %3494 = vmatpush.msra.mxu0 %v3477
    %3495 = vmatpush.msra.mxu0 %v3476
    %3496 = vmatmul.f32.gmra.mxu0 %v2966
    %v3497 = vpop.f32.mrf.mxu0
    %v3498 = vadd.f32 0.0, %v3497
    %3499 = vdwg.mxu0
    %v3500 = vadd.f32 %v3448, %v3498
    %s3501 = scalar_lea.vmem [#allocation14], 416
    %v3502 = vld [vmem:[%s3501] sm:$0xff]
    %v3503 = vld [vmem:[%s3501 + $0x8] sm:$0xff]
    %v3504 = vld [vmem:[%s3501 + $0x10] sm:$0xff]
    %v3505 = vld [vmem:[%s3501 + $0x18] sm:$0xff]
    %3506 = vmatpush.msra.mxu0 0.0
    %3507 = vmatpush.msra.mxu0 0.0
    %3508 = vmatpush.msra.mxu0 0.0
    %3509 = vmatpush.msra.mxu0 0.0
    %3510 = vmatpush.msra.mxu0 0.0
    %3511 = vmatpush.msra.mxu0 0.0
    %3512 = vmatpush.msra.mxu0 0.0
    %3513 = vmatpush.msra.mxu0 0.0
    %3514 = vmatpush.msra.mxu0 0.0
    %3515 = vmatpush.msra.mxu0 0.0
    %3516 = vmatpush.msra.mxu0 0.0
    %3517 = vmatpush.msra.mxu0 0.0
    %3518 = vmatpush.msra.mxu0 %v3505
    %3519 = vmatpush.msra.mxu0 %v3504
    %3520 = vmatpush.msra.mxu0 %v3503
    %3521 = vmatpush.msra.mxu0 %v3502
    %3522 = vmatmul.f32.gmra.mxu0 %v2651
    %v3523 = vpop.f32.mrf.mxu0
    %v3524 = vadd.f32 0.0, %v3523
    %3525 = vdwg.mxu0
    %v3526 = vadd.f32 %v3474, %v3524
    %s3527 = scalar_lea.vmem [#allocation14], 192
    %v3528 = vld [vmem:[%s3527] sm:$0xff]
    %v3529 = vld [vmem:[%s3527 + $0x8] sm:$0xff]
    %v3530 = vld [vmem:[%s3527 + $0x10] sm:$0xff]
    %v3531 = vld [vmem:[%s3527 + $0x18] sm:$0xff]
    %3532 = vmatpush.msra.mxu0 0.0
    %3533 = vmatpush.msra.mxu0 0.0
    %3534 = vmatpush.msra.mxu0 0.0
    %3535 = vmatpush.msra.mxu0 0.0
    %3536 = vmatpush.msra.mxu0 0.0
    %3537 = vmatpush.msra.mxu0 0.0
    %3538 = vmatpush.msra.mxu0 0.0
    %3539 = vmatpush.msra.mxu0 0.0
    %3540 = vmatpush.msra.mxu0 0.0
    %3541 = vmatpush.msra.mxu0 0.0
    %3542 = vmatpush.msra.mxu0 0.0
    %3543 = vmatpush.msra.mxu0 0.0
    %3544 = vmatpush.msra.mxu0 %v3531
    %3545 = vmatpush.msra.mxu0 %v3530
    %3546 = vmatpush.msra.mxu0 %v3529
    %3547 = vmatpush.msra.mxu0 %v3528
    %3548 = vmatmul.f32.gmra.mxu0 %v3092
    %v3549 = vpop.f32.mrf.mxu0
    %v3550 = vadd.f32 0.0, %v3549
    %3551 = vdwg.mxu0
    %v3552 = vadd.f32 %v3500, %v3550
    %s3553 = scalar_lea.vmem [#allocation14], 448
    %v3554 = vld [vmem:[%s3553] sm:$0xff]
    %v3555 = vld [vmem:[%s3553 + $0x8] sm:$0xff]
    %v3556 = vld [vmem:[%s3553 + $0x10] sm:$0xff]
    %v3557 = vld [vmem:[%s3553 + $0x18] sm:$0xff]
    %3558 = vmatpush.msra.mxu0 0.0
    %3559 = vmatpush.msra.mxu0 0.0
    %3560 = vmatpush.msra.mxu0 0.0
    %3561 = vmatpush.msra.mxu0 0.0
    %3562 = vmatpush.msra.mxu0 0.0
    %3563 = vmatpush.msra.mxu0 0.0
    %3564 = vmatpush.msra.mxu0 0.0
    %3565 = vmatpush.msra.mxu0 0.0
    %3566 = vmatpush.msra.mxu0 0.0
    %3567 = vmatpush.msra.mxu0 0.0
    %3568 = vmatpush.msra.mxu0 0.0
    %3569 = vmatpush.msra.mxu0 0.0
    %3570 = vmatpush.msra.mxu0 %v3557
    %3571 = vmatpush.msra.mxu0 %v3556
    %3572 = vmatpush.msra.mxu0 %v3555
    %3573 = vmatpush.msra.mxu0 %v3554
    %3574 = vmatmul.f32.gmra.mxu0 %v2525
    %v3575 = vpop.f32.mrf.mxu0
    %v3576 = vadd.f32 0.0, %v3575
    %3577 = vdwg.mxu0
    %v3578 = vadd.f32 %v3526, %v3576
    %s3579 = scalar_lea.vmem [#allocation14], 224
    %v3580 = vld [vmem:[%s3579] sm:$0xff]
    %v3581 = vld [vmem:[%s3579 + $0x8] sm:$0xff]
    %v3582 = vld [vmem:[%s3579 + $0x10] sm:$0xff]
    %v3583 = vld [vmem:[%s3579 + $0x18] sm:$0xff]
    %3585 = vrot.lane.b32.xlu0 %v3151, 32
    %v3586 = vpop.permute.xlu0 %3585
    %v3587 = vsel %vm281, %v3586, 0
    %3589 = vmatpush.msra.mxu0 0.0
    %3590 = vmatpush.msra.mxu0 0.0
    %3591 = vmatpush.msra.mxu0 0.0
    %3592 = vmatpush.msra.mxu0 0.0
    %3593 = vmatpush.msra.mxu0 0.0
    %3594 = vmatpush.msra.mxu0 0.0
    %3595 = vmatpush.msra.mxu0 0.0
    %3596 = vmatpush.msra.mxu0 0.0
    %3597 = vmatpush.msra.mxu0 0.0
    %3598 = vmatpush.msra.mxu0 0.0
    %3599 = vmatpush.msra.mxu0 0.0
    %3600 = vmatpush.msra.mxu0 0.0
    %3601 = vmatpush.msra.mxu0 %v3583
    %3602 = vmatpush.msra.mxu0 %v3582
    %3603 = vmatpush.msra.mxu0 %v3581
    %3604 = vmatpush.msra.mxu0 %v3580
    %3605 = vmatmul.f32.gmra.mxu0 %v3587
    %v3606 = vpop.f32.mrf.mxu0
    %v3607 = vadd.f32 0.0, %v3606
    %3608 = vdwg.mxu0
    %v3609 = vadd.f32 %v3552, %v3607
    %s3610 = scalar_lea.vmem [#allocation14], 480
    %v3611 = vld [vmem:[%s3610] sm:$0xff]
    %v3612 = vld [vmem:[%s3610 + $0x8] sm:$0xff]
    %v3613 = vld [vmem:[%s3610 + $0x10] sm:$0xff]
    %v3614 = vld [vmem:[%s3610 + $0x18] sm:$0xff]
    %3615 = vmatpush.msra.mxu0 0.0
    %3616 = vmatpush.msra.mxu0 0.0
    %3617 = vmatpush.msra.mxu0 0.0
    %3618 = vmatpush.msra.mxu0 0.0
    %3619 = vmatpush.msra.mxu0 0.0
    %3620 = vmatpush.msra.mxu0 0.0
    %3621 = vmatpush.msra.mxu0 0.0
    %3622 = vmatpush.msra.mxu0 0.0
    %3623 = vmatpush.msra.mxu0 0.0
    %3624 = vmatpush.msra.mxu0 0.0
    %3625 = vmatpush.msra.mxu0 0.0
    %3626 = vmatpush.msra.mxu0 0.0
    %3627 = vmatpush.msra.mxu0 %v3614
    %3628 = vmatpush.msra.mxu0 %v3613
    %3629 = vmatpush.msra.mxu0 %v3612
    %3630 = vmatpush.msra.mxu0 %v3611
    %3631 = vmatmul.f32.gmra.mxu0 %v2399
    %v3632 = vpop.f32.mrf.mxu0
    %v3633 = vadd.f32 0.0, %v3632
    %3634 = vdwg.mxu0
    %v3635 = vadd.f32 %v3578, %v3633
    %v3636 = vadd.f32 %v3609, %v3635
    %v3637 = vld [vmem:[#allocation16] sm:$0x1]
    %v3639 = vperm.slane %v3637, 0
    %v3641 = vadd.f32 %v3636, %v3639
    %v3642 = vld [vmem:[%s15] sm:$0x1]
    %v3644 = vperm.slane %v3642, 0
    %v3646 = vsub.f32 %v3641, %v3644
    %v3647 = vld [vmem:[%s16] sm:$0x1]
    %v3648 = vadd.f32 %v3647, 1e-05
    %v3649 = vrsqrt.pop %v3648
    %v3650 = vmul.f32 %v3649, %v3648
    %v3651 = vmul.f32 %v3650, %v3649
    %v3652 = vmul.f32 0.5, %v3651
    %v3653 = vsub.f32 1.5, %v3652
    %v3654 = vmul.f32 %v3649, %v3653
    %vm3655 = vweird.f32 %v3648
    %vm3656 = vweird.f32 %v3649
    %vm3657 = vmor %vm3655, %vm3656
    %v3658 = vsel %vm3657, %v3649, %v3654
    %v3660 = vperm.slane %v3658, 0
    %v3662 = vmul.f32 %v3646, %v3660
    %v3663 = vld [vmem:[%s13] sm:$0x1]
    %v3665 = vperm.slane %v3663, 0
    %v3667 = vmul.f32 %v3662, %v3665
    %v3668 = vld [vmem:[#allocation17] sm:$0x1]
    %v3670 = vperm.slane %v3668, 0
    %v3672 = vadd.f32 %v3667, %v3670
    %vm3673 = vcmp.gt.f32.partialorder %v3672, 0.0
    %v3674 = vmul.f32 %v3672, 0.2
    %v3675 = vsel %vm3673, %v3672, %v3674
    %v3676 = vld [vmem:[%s17] sm:$0xff]
    %v3677 = vld [vmem:[%s17 + $0x8] sm:$0xff]
    %v3678 = vld [vmem:[%s17 + $0x10] sm:$0xff]
    %v3679 = vld [vmem:[%s17 + $0x18] sm:$0xff]
    %v3680 = vld [vmem:[#allocation19] sm:$0x1]
    %v3682 = vperm.slane %v3680, 0
    %v3685 = vsel %vm281, %v3675, 0
    %3687 = vmatpush.msra.mxu0 0.0
    %3688 = vmatpush.msra.mxu0 0.0
    %3689 = vmatpush.msra.mxu0 0.0
    %3690 = vmatpush.msra.mxu0 0.0
    %3691 = vmatpush.msra.mxu0 0.0
    %3692 = vmatpush.msra.mxu0 0.0
    %3693 = vmatpush.msra.mxu0 0.0
    %3694 = vmatpush.msra.mxu0 0.0
    %3695 = vmatpush.msra.mxu0 0.0
    %3696 = vmatpush.msra.mxu0 0.0
    %3697 = vmatpush.msra.mxu0 0.0
    %3698 = vmatpush.msra.mxu0 0.0
    %3699 = vmatpush.msra.mxu0 %v3679
    %3700 = vmatpush.msra.mxu0 %v3678
    %3701 = vmatpush.msra.mxu0 %v3677
    %3702 = vmatpush.msra.mxu0 %v3676
    %3703 = vmatmul.f32.gmra.mxu0 %v3685
    %v3704 = vpop.f32.mrf.mxu0
    %v3705 = vadd.f32 %v3682, %v3704
    %3706 = vdwg.mxu0
    %3707 = vst [vmem:[#allocation20] sm:$0x3] %v3705
    // Predicated region
    $region122: #{seq_classifier_forward.1} parent=1 // pred_check
      _
    $region123: #{seq_classifier_forward.1} parent=1 // pred_check_branch
      %3709 = sbr.rel (0) target = $region125
    $region124: #{seq_classifier_forward.1} parent=1 // pred_region
      %3711 = vsyncadd [#allocation4], 0
      %s3713 = sshll.u32 [#allocation20], 4
      %s3714 = int_to_ptr.vmem [resolvable:$true] %s3713
      %s3715 = sshll.u32 %s19, 4
      %s3716 = int_to_ptr.hbm [resolvable:$true] %s3715
      %3718 = dma.vmem_to_hbm [thread:$0]  %s3714, 32, %s3716, [#allocation4]
    $region125: #{seq_classifier_forward.1} parent=1 // pred_fallthru
      _
    // Predicated region
    $region126: #{seq_classifier_forward.1} parent=1 // pred_check
      _
    $region127: #{seq_classifier_forward.1} parent=1 // pred_check_branch
      %3720 = sbr.rel (0) target = $region129
    $region128: #{seq_classifier_forward.1} parent=1 // pred_region
      %3722 = dma.done [#allocation4], 32
    $region129: #{seq_classifier_forward.1} parent=1 // pred_fallthru
      _
    %3723 = vsyncpa [#allocation3], 1
    %3724 = vsyncpa [#allocation6], 1
    %3725 = vsyncpa [#allocation9], 1
    %3726 = vsyncpa [#allocation12], 1
    %3727 = vsyncpa [#allocation15], 1
    %3728 = vsyncpa [#allocation18], 1
    %3729 = vsyncpa [#allocation4], 1

</llo_original>
